<compile_context>
chip_gen: v7x
topology: tpu7x:2x2x1
jax: 0.10.0
libtpu: 0.0.40
codegen_flags: <defaults>
</compile_context>

<pallas_src>
import math
import functools

import jax
import jax.numpy as jnp
from jax import lax
from jax.experimental import pallas as pl
from jax.experimental.pallas import tpu as pltpu


# ----------------------------- Pallas kernel --------------------------------

def _layer_norm(x, gamma, beta, eps=1e-5):
    # two-pass statistics for closer parity with torch.nn.LayerNorm in f32
    mean = jnp.mean(x, axis=-1, keepdims=True)
    d = x - mean
    var = jnp.mean(d * d, axis=-1, keepdims=True)
    return d * lax.rsqrt(var + eps) * gamma + beta


def _encoder_layer_kernel(num_heads,
                          x_ref,
                          wqkv_ref, bqkv_ref, wo_ref, bo_ref,
                          ln1w_ref, ln1b_ref, ln2w_ref, ln2b_ref,
                          w1_ref, b1_ref, w2_ref, b2_ref,
                          o_ref,
                          attn_cat_ref):
    l = pl.program_id(1)            # layer axis (inner, "arbitrary")

    # o_ref is the VMEM-resident per-sequence activation across all layers;
    # initialize it from the pre-embedded input once.
    @pl.when(l == 0)
    def _():
        o_ref[0] = x_ref[0]

    x = o_ref[0]                    # (S, H)
    S, H = x.shape
    hd = H // num_heads
    scale = 1.0 / math.sqrt(hd)
    wdt = wqkv_ref.dtype            # matmul weight dtype (f32 or bf16)

    # ---- multi-head self-attention: combined in-projection (like PyTorch) ----
    qkv = jnp.dot(x.astype(wdt), wqkv_ref[0],
                  preferred_element_type=jnp.float32) + bqkv_ref[0]
    q = qkv[:, 0:H] * scale         # fold 1/sqrt(hd) into q
    k = qkv[:, H:2 * H]
    v = qkv[:, 2 * H:3 * H]

    # Per-head attention (full attention within the sequence; no mask needed).
    # Head outputs go into contiguous columns of a VMEM scratch so that the
    # output projection is a single (S,H)@(H,H) matmul with K=H.
    # TODO(synk): static unroll over heads (hd-wide dynamic lane slices do not
    # lower well); per-head temporaries are only (S,S) per sequence here.
    for h in range(num_heads):
        qh = q[:, h * hd:(h + 1) * hd]
        kh = k[:, h * hd:(h + 1) * hd]
        vh = v[:, h * hd:(h + 1) * hd]
        # scores = q . k^T without an explicit transpose (NT dot_general)
        s = lax.dot_general(qh, kh, (((1,), (1,)), ((), ())),
                            preferred_element_type=jnp.float32)   # (S, S)
        s = s - jnp.max(s, axis=-1, keepdims=True)
        p = jnp.exp(s)
        p = p / jnp.sum(p, axis=-1, keepdims=True)                # exact divide
        attn_cat_ref[:, h * hd:(h + 1) * hd] = jnp.dot(
            p, vh, preferred_element_type=jnp.float32)            # (S, hd)

    attn = jnp.dot(attn_cat_ref[...].astype(wdt), wo_ref[0],
                   preferred_element_type=jnp.float32) + bo_ref[0]

    # ---- residual + LayerNorm 1 (post-norm) ----
    x1 = _layer_norm(x + attn, ln1w_ref[0], ln1b_ref[0])

    # ---- feed-forward: Linear -> ReLU -> Linear ----
    ff = jnp.dot(x1.astype(wdt), w1_ref[0],
                 preferred_element_type=jnp.float32) + b1_ref[0]
    ff = jnp.maximum(ff, 0.0)
    ff = jnp.dot(ff.astype(wdt), w2_ref[0],
                 preferred_element_type=jnp.float32) + b2_ref[0]

    # ---- residual + LayerNorm 2; write back the resident activation ----
    o_ref[0] = _layer_norm(x1 + ff, ln2w_ref[0], ln2b_ref[0])


# ------------------------------ JAX wrapper ----------------------------------

def transformer_encoder(x, emb_w, emb_b, pe, stacked, num_heads, *,
                        weight_dtype=jnp.float32,
                        vmem_limit_bytes=56 * 1024 * 1024):
    B, S, D = x.shape
    H = emb_w.shape[1]
    L = stacked["wqkv"].shape[0]
    F = stacked["w1"].shape[2]
    hd = H // num_heads

    # Embedding + positional encoding in plain XLA: read exactly once, so there
    # is no reason to keep (B,S,D)/(D,H)/(S,H) buffers resident in VMEM for L
    # layers inside the fused kernel.
    x_emb = (jnp.dot(x, emb_w) + emb_b + pe[None, :, :]).astype(jnp.float32)

    # Optionally cast the big matmul weights (bf16 halves weight DMA / VMEM and
    # hits the bf16 MXU path on v6e/v7x; f32 kept as default for PyTorch parity).
    wqkv = stacked["wqkv"].astype(weight_dtype)
    wo = stacked["wo"].astype(weight_dtype)
    w1 = stacked["w1"].astype(weight_dtype)
    w2 = stacked["w2"].astype(weight_dtype)

    resident = pl.BlockSpec((1, S, H), lambda b, l: (b, 0, 0))

    def per_layer(shape):
        zeros = (0,) * len(shape)
        return pl.BlockSpec((1,) + shape, lambda b, l, z=zeros: (l,) + z)

    kernel = functools.partial(_encoder_layer_kernel, num_heads)

    flops = int(B * L * (2 * S * H * 3 * H              # qkv projection
                         + num_heads * 4 * S * S * hd   # scores + p@v
                         + 2 * S * H * H                # output projection
                         + 4 * S * H * F))              # FFN
    transcendentals = int(B * L * num_heads * S * S)
    weight_bytes = (int(wqkv.size) * wqkv.dtype.itemsize
                    + int(wo.size) * wo.dtype.itemsize
                    + int(w1.size) * w1.dtype.itemsize
                    + int(w2.size) * w2.dtype.itemsize
                    + 4 * sum(int(stacked[k].size)
                              for k in ("bqkv", "bo", "ln1w", "ln1b",
                                        "ln2w", "ln2b", "b1", "b2")))
    bytes_accessed = int(2 * 4 * B * S * H + B * weight_bytes)

    out = pl.pallas_call(
        kernel,
        out_shape=jax.ShapeDtypeStruct((B, S, H), jnp.float32),
        grid=(B, L),
        in_specs=[
            resident,                                        # pre-embedded activation
            per_layer((H, 3 * H)), per_layer((1, 3 * H)),    # wqkv, bqkv
            per_layer((H, H)), per_layer((1, H)),            # wo, bo
            per_layer((1, H)), per_layer((1, H)),            # ln1 gamma/beta
            per_layer((1, H)), per_layer((1, H)),            # ln2 gamma/beta
            per_layer((H, F)), per_layer((1, F)),            # w1, b1
            per_layer((F, H)), per_layer((1, H)),            # w2, b2
        ],
        out_specs=resident,                                  # VMEM-resident across layers
        scratch_shapes=[pltpu.VMEM((S, H), jnp.float32)],    # per-head concat buffer
        input_output_aliases={0: 0},                         # reuse x_emb's HBM buffer
        compiler_params=pltpu.CompilerParams(
            dimension_semantics=("parallel", "arbitrary"),
            vmem_limit_bytes=vmem_limit_bytes),
        cost_estimate=pl.CostEstimate(flops=flops,
                                      transcendentals=transcendentals,
                                      bytes_accessed=bytes_accessed),
    )(x_emb, wqkv, stacked["bqkv"], wo, stacked["bo"],
      stacked["ln1w"], stacked["ln1b"], stacked["ln2w"], stacked["ln2b"],
      w1, stacked["b1"], w2, stacked["b2"])
    return out


# ------------------------------ parameter setup -----------------------------

def make_positional_encoding(d_model, seq_len):
    pos = jnp.arange(seq_len, dtype=jnp.float32)[:, None]                      # (S, 1)
    div = jnp.exp(jnp.arange(0, d_model, 2, dtype=jnp.float32)
                  * (-math.log(10000.0) / d_model))                            # (d_model/2,)
    pe = jnp.zeros((seq_len, d_model), jnp.float32)
    pe = pe.at[:, 0::2].set(jnp.sin(pos * div))
    if d_model > 1:
        if d_model % 2 == 0:
            pe = pe.at[:, 1::2].set(jnp.cos(pos * div))
        else:
            pe = pe.at[:, 1::2].set(jnp.cos(pos * div[:-1]))
    return pe


def _init_linear(key, fan_in, fan_out):
    # deterministic, PyTorch-Linear-like uniform init; weight returned as (in, out)
    kw, kb = jax.random.split(key)
    bound = 1.0 / math.sqrt(fan_in)
    w = jax.random.uniform(kw, (fan_in, fan_out), jnp.float32, -bound, bound)
    b = jax.random.uniform(kb, (1, fan_out), jnp.float32, -bound, bound)
    return w, b


def init_params(key, input_dim, hidden_dim, num_layers, dim_feedforward):
    keys = jax.random.split(key, 1 + num_layers)
    emb_w, emb_b = _init_linear(keys[0], input_dim, hidden_dim)
    layers = []
    for i in range(num_layers):
        lk = jax.random.split(keys[1 + i], 4)
        wqkv, bqkv = _init_linear(lk[0], hidden_dim, 3 * hidden_dim)
        wo, bo = _init_linear(lk[1], hidden_dim, hidden_dim)
        w1, b1 = _init_linear(lk[2], hidden_dim, dim_feedforward)
        w2, b2 = _init_linear(lk[3], dim_feedforward, hidden_dim)
        layers.append(dict(
            wqkv=wqkv, bqkv=bqkv, wo=wo, bo=bo,
            ln1w=jnp.ones((1, hidden_dim), jnp.float32),
            ln1b=jnp.zeros((1, hidden_dim), jnp.float32),
            ln2w=jnp.ones((1, hidden_dim), jnp.float32),
            ln2b=jnp.zeros((1, hidden_dim), jnp.float32),
            w1=w1, b1=b1, w2=w2, b2=b2,
        ))
    # stack per-layer params along a leading layer axis for the fused kernel
    stacked = {k: jnp.stack([lyr[k] for lyr in layers], axis=0) for k in layers[0]}
    return emb_w, emb_b, stacked


# ----------------------------------- main ------------------------------------

if __name__ == "__main__":
    B, S = 2, 8
    input_dim, hidden_dim = 16, 32
    num_layers, num_heads = 2, 4
    dim_feedforward = 2048     # nn.TransformerEncoderLayer default
    # TODO(synk): dropout=0.1 is stochastic in train mode; here it is eval-mode identity.
    # TODO(synk): demo H=32 is not lane-dense (128); realistic H>=128 multiples avoid masked stores.

    key = jax.random.PRNGKey(0)
    kx, kp = jax.random.split(key)
    x = jax.random.normal(kx, (B, S, input_dim), jnp.float32)

    emb_w, emb_b, stacked = init_params(kp, input_dim, hidden_dim,
                                        num_layers, dim_feedforward)
    pe = make_positional_encoding(hidden_dim, S)

    out = transformer_encoder(x, emb_w, emb_b, pe, stacked, num_heads)
    out = jax.block_until_ready(out)
    assert out.shape == (B, S, hidden_dim) and out.dtype == jnp.float32
    print("KERNEL_OK")
</pallas_src>

<mosaic_0001>
module attributes {stable_mosaic.version = 11 : i64} {
  func.func @_encoder_layer_kernel(%arg0: i32, %arg1: i32, %arg2: memref<1x8x32xf32, #tpu.memory_space<vmem>>, %arg3: memref<1x32x96xf32, #tpu.memory_space<vmem>>, %arg4: memref<1x1x96xf32, #tpu.memory_space<vmem>>, %arg5: memref<1x32x32xf32, #tpu.memory_space<vmem>>, %arg6: memref<1x1x32xf32, #tpu.memory_space<vmem>>, %arg7: memref<1x1x32xf32, #tpu.memory_space<vmem>>, %arg8: memref<1x1x32xf32, #tpu.memory_space<vmem>>, %arg9: memref<1x1x32xf32, #tpu.memory_space<vmem>>, %arg10: memref<1x1x32xf32, #tpu.memory_space<vmem>>, %arg11: memref<1x32x2048xf32, #tpu.memory_space<vmem>>, %arg12: memref<1x1x2048xf32, #tpu.memory_space<vmem>>, %arg13: memref<1x2048x32xf32, #tpu.memory_space<vmem>>, %arg14: memref<1x1x32xf32, #tpu.memory_space<vmem>>, %arg15: memref<1x8x32xf32, #tpu.memory_space<vmem>>, %arg16: memref<8x32xf32, #tpu.memory_space<vmem>>) attributes {dimension_semantics = [#tpu.dimension_semantics<parallel>, #tpu.dimension_semantics<arbitrary>], iteration_bounds = array<i64: 2, 2>, scalar_prefetch = 0 : i64, scratch_operands = 1 : i64, tpu.core_type = #tpu.core_type<tc>, window_params = [{transform_indices = @transform_0, window_bounds = array<i64: 1, 8, 32>}, {transform_indices = @transform_1, window_bounds = array<i64: 1, 32, 96>}, {transform_indices = @transform_2, window_bounds = array<i64: 1, 1, 96>}, {transform_indices = @transform_3, window_bounds = array<i64: 1, 32, 32>}, {transform_indices = @transform_4, window_bounds = array<i64: 1, 1, 32>}, {transform_indices = @transform_5, window_bounds = array<i64: 1, 1, 32>}, {transform_indices = @transform_6, window_bounds = array<i64: 1, 1, 32>}, {transform_indices = @transform_7, window_bounds = array<i64: 1, 1, 32>}, {transform_indices = @transform_8, window_bounds = array<i64: 1, 1, 32>}, {transform_indices = @transform_9, window_bounds = array<i64: 1, 32, 2048>}, {transform_indices = @transform_10, window_bounds = array<i64: 1, 1, 2048>}, {transform_indices = @transform_11, window_bounds = array<i64: 1, 2048, 32>}, {transform_indices = @transform_12, window_bounds = array<i64: 1, 1, 32>}, {transform_indices = @transform_13, window_bounds = array<i64: 1, 8, 32>}]} {
    %c0_i32 = arith.constant 0 : i32
    %0 = arith.cmpi eq, %arg1, %c0_i32 : i32
    %1 = arith.extui %0 : i1 to i32
    %c0_i32_0 = arith.constant 0 : i32
    %2 = arith.cmpi ne, %1, %c0_i32_0 : i32
    scf.if %2 {
      %c0_80 = arith.constant 0 : index
      %c0_81 = arith.constant 0 : index
      %c0_82 = arith.constant 0 : index
      %154 = vector.load %arg2[%c0_80, %c0_81, %c0_82] : memref<1x8x32xf32, #tpu.memory_space<vmem>>, vector<1x8x32xf32>
      %155 = vector.shape_cast %154 : vector<1x8x32xf32> to vector<8x32xf32>
      %c0_83 = arith.constant 0 : index
      %c0_84 = arith.constant 0 : index
      %c0_85 = arith.constant 0 : index
      %156 = vector.load %arg15[%c0_83, %c0_84, %c0_85] : memref<1x8x32xf32, #tpu.memory_space<vmem>>, vector<1x8x32xf32>
      %157 = vector.shape_cast %156 : vector<1x8x32xf32> to vector<8x32xf32>
      %158 = vector.shape_cast %155 : vector<8x32xf32> to vector<1x8x32xf32>
      tpu.vector_store %arg15[%c0_83, %c0_84, %c0_85], %158 {strides = array<i32>} : memref<1x8x32xf32, #tpu.memory_space<vmem>>, vector<1x8x32xf32>,
    } else {
    }
    %c0 = arith.constant 0 : index
    %c0_1 = arith.constant 0 : index
    %c0_2 = arith.constant 0 : index
    %3 = vector.load %arg15[%c0, %c0_1, %c0_2] : memref<1x8x32xf32, #tpu.memory_space<vmem>>, vector<1x8x32xf32>
    %4 = vector.shape_cast %3 : vector<1x8x32xf32> to vector<8x32xf32>
    %c0_3 = arith.constant 0 : index
    %c0_4 = arith.constant 0 : index
    %c0_5 = arith.constant 0 : index
    %5 = vector.load %arg3[%c0_3, %c0_4, %c0_5] : memref<1x32x96xf32, #tpu.memory_space<vmem>>, vector<1x32x96xf32>
    %6 = vector.shape_cast %5 : vector<1x32x96xf32> to vector<32x96xf32>
    %cst = arith.constant dense<0.000000e+00> : vector<8x96xf32>
    %7 = tpu.matmul %4, %6, %cst {dimension_numbers = #tpu.dot_dimension_numbers<[1], [0], [0], [1], [0, 0, 1, 1], [], []>} : vector<8x32xf32>, vector<32x96xf32>, vector<8x96xf32> -> vector<8x96xf32>
    %c0_6 = arith.constant 0 : index
    %c0_7 = arith.constant 0 : index
    %c0_8 = arith.constant 0 : index
    %8 = vector.load %arg4[%c0_6, %c0_7, %c0_8] : memref<1x1x96xf32, #tpu.memory_space<vmem>>, vector<1x1x96xf32>
    %9 = vector.shape_cast %8 : vector<1x1x96xf32> to vector<1x96xf32>
    %10 = vector.broadcast %9 : vector<1x96xf32> to vector<8x96xf32>
    %11 = arith.addf %7, %10 : vector<8x96xf32>
    %12 = vector.extract_strided_slice %11 {offsets = [0, 0], sizes = [8, 32], strides = [1, 1]} : vector<8x96xf32> to vector<8x32xf32>
    %cst_9 = arith.constant 0.353553385 : f32
    %13 = vector.broadcast %cst_9 : f32 to vector<8x32xf32>
    %14 = arith.mulf %12, %13 : vector<8x32xf32>
    %15 = vector.extract_strided_slice %11 {offsets = [0, 32], sizes = [8, 32], strides = [1, 1]} : vector<8x96xf32> to vector<8x32xf32>
    %16 = vector.extract_strided_slice %11 {offsets = [0, 64], sizes = [8, 32], strides = [1, 1]} : vector<8x96xf32> to vector<8x32xf32>
    %17 = vector.extract_strided_slice %14 {offsets = [0, 0], sizes = [8, 8], strides = [1, 1]} : vector<8x32xf32> to vector<8x8xf32>
    %18 = vector.extract_strided_slice %15 {offsets = [0, 0], sizes = [8, 8], strides = [1, 1]} : vector<8x32xf32> to vector<8x8xf32>
    %19 = vector.extract_strided_slice %16 {offsets = [0, 0], sizes = [8, 8], strides = [1, 1]} : vector<8x32xf32> to vector<8x8xf32>
    %cst_10 = arith.constant dense<0.000000e+00> : vector<8x8xf32>
    %20 = tpu.matmul %17, %18, %cst_10 {dimension_numbers = #tpu.dot_dimension_numbers<[1], [1], [0], [0], [0, 0, 1, 0], [], []>} : vector<8x8xf32>, vector<8x8xf32>, vector<8x8xf32> -> vector<8x8xf32>
    %cst_11 = arith.constant dense<0xFF800000> : vector<8xf32>
    %21 = vector.multi_reduction <maximumf>, %20, %cst_11 [1] : vector<8x8xf32> to vector<8xf32>
    %22 = vector.shape_cast %21 : vector<8xf32> to vector<8x1xf32>
    %23 = vector.broadcast %22 : vector<8x1xf32> to vector<8x8xf32>
    %24 = arith.subf %20, %23 : vector<8x8xf32>
    %25 = math.exp %24 : vector<8x8xf32>
    %cst_12 = arith.constant dense<0.000000e+00> : vector<8xf32>
    %26 = vector.multi_reduction <add>, %25, %cst_12 [1] : vector<8x8xf32> to vector<8xf32>
    %27 = vector.shape_cast %26 : vector<8xf32> to vector<8x1xf32>
    %28 = vector.broadcast %27 : vector<8x1xf32> to vector<8x8xf32>
    %29 = arith.divf %25, %28 : vector<8x8xf32>
    %cst_13 = arith.constant dense<0.000000e+00> : vector<8x8xf32>
    %30 = tpu.matmul %29, %19, %cst_13 {dimension_numbers = #tpu.dot_dimension_numbers<[1], [0], [0], [1], [0, 0, 1, 1], [], []>} : vector<8x8xf32>, vector<8x8xf32>, vector<8x8xf32> -> vector<8x8xf32>
    %c0_14 = arith.constant 0 : index
    %c0_15 = arith.constant 0 : index
    %31 = vector.load %arg16[%c0_14, %c0_15] : memref<8x32xf32, #tpu.memory_space<vmem>>, vector<8x8xf32>
    tpu.vector_store %arg16[%c0_14, %c0_15], %30 {strides = array<i32>} : memref<8x32xf32, #tpu.memory_space<vmem>>, vector<8x8xf32>,
    %32 = vector.extract_strided_slice %14 {offsets = [0, 8], sizes = [8, 8], strides = [1, 1]} : vector<8x32xf32> to vector<8x8xf32>
    %33 = vector.extract_strided_slice %15 {offsets = [0, 8], sizes = [8, 8], strides = [1, 1]} : vector<8x32xf32> to vector<8x8xf32>
    %34 = vector.extract_strided_slice %16 {offsets = [0, 8], sizes = [8, 8], strides = [1, 1]} : vector<8x32xf32> to vector<8x8xf32>
    %cst_16 = arith.constant dense<0.000000e+00> : vector<8x8xf32>
    %35 = tpu.matmul %32, %33, %cst_16 {dimension_numbers = #tpu.dot_dimension_numbers<[1], [1], [0], [0], [0, 0, 1, 0], [], []>} : vector<8x8xf32>, vector<8x8xf32>, vector<8x8xf32> -> vector<8x8xf32>
    %cst_17 = arith.constant dense<0xFF800000> : vector<8xf32>
    %36 = vector.multi_reduction <maximumf>, %35, %cst_17 [1] : vector<8x8xf32> to vector<8xf32>
    %37 = vector.shape_cast %36 : vector<8xf32> to vector<8x1xf32>
    %38 = vector.broadcast %37 : vector<8x1xf32> to vector<8x8xf32>
    %39 = arith.subf %35, %38 : vector<8x8xf32>
    %40 = math.exp %39 : vector<8x8xf32>
    %cst_18 = arith.constant dense<0.000000e+00> : vector<8xf32>
    %41 = vector.multi_reduction <add>, %40, %cst_18 [1] : vector<8x8xf32> to vector<8xf32>
    %42 = vector.shape_cast %41 : vector<8xf32> to vector<8x1xf32>
    %43 = vector.broadcast %42 : vector<8x1xf32> to vector<8x8xf32>
    %44 = arith.divf %40, %43 : vector<8x8xf32>
    %cst_19 = arith.constant dense<0.000000e+00> : vector<8x8xf32>
    %45 = tpu.matmul %44, %34, %cst_19 {dimension_numbers = #tpu.dot_dimension_numbers<[1], [0], [0], [1], [0, 0, 1, 1], [], []>} : vector<8x8xf32>, vector<8x8xf32>, vector<8x8xf32> -> vector<8x8xf32>
    %c0_20 = arith.constant 0 : index
    %c8 = arith.constant 8 : index
    %46 = vector.load %arg16[%c0_20, %c8] : memref<8x32xf32, #tpu.memory_space<vmem>>, vector<8x8xf32>
    tpu.vector_store %arg16[%c0_20, %c8], %45 {strides = array<i32>} : memref<8x32xf32, #tpu.memory_space<vmem>>, vector<8x8xf32>,
    %47 = vector.extract_strided_slice %14 {offsets = [0, 16], sizes = [8, 8], strides = [1, 1]} : vector<8x32xf32> to vector<8x8xf32>
    %48 = vector.extract_strided_slice %15 {offsets = [0, 16], sizes = [8, 8], strides = [1, 1]} : vector<8x32xf32> to vector<8x8xf32>
    %49 = vector.extract_strided_slice %16 {offsets = [0, 16], sizes = [8, 8], strides = [1, 1]} : vector<8x32xf32> to vector<8x8xf32>
    %cst_21 = arith.constant dense<0.000000e+00> : vector<8x8xf32>
    %50 = tpu.matmul %47, %48, %cst_21 {dimension_numbers = #tpu.dot_dimension_numbers<[1], [1], [0], [0], [0, 0, 1, 0], [], []>} : vector<8x8xf32>, vector<8x8xf32>, vector<8x8xf32> -> vector<8x8xf32>
    %cst_22 = arith.constant dense<0xFF800000> : vector<8xf32>
    %51 = vector.multi_reduction <maximumf>, %50, %cst_22 [1] : vector<8x8xf32> to vector<8xf32>
    %52 = vector.shape_cast %51 : vector<8xf32> to vector<8x1xf32>
    %53 = vector.broadcast %52 : vector<8x1xf32> to vector<8x8xf32>
    %54 = arith.subf %50, %53 : vector<8x8xf32>
    %55 = math.exp %54 : vector<8x8xf32>
    %cst_23 = arith.constant dense<0.000000e+00> : vector<8xf32>
    %56 = vector.multi_reduction <add>, %55, %cst_23 [1] : vector<8x8xf32> to vector<8xf32>
    %57 = vector.shape_cast %56 : vector<8xf32> to vector<8x1xf32>
    %58 = vector.broadcast %57 : vector<8x1xf32> to vector<8x8xf32>
    %59 = arith.divf %55, %58 : vector<8x8xf32>
    %cst_24 = arith.constant dense<0.000000e+00> : vector<8x8xf32>
    %60 = tpu.matmul %59, %49, %cst_24 {dimension_numbers = #tpu.dot_dimension_numbers<[1], [0], [0], [1], [0, 0, 1, 1], [], []>} : vector<8x8xf32>, vector<8x8xf32>, vector<8x8xf32> -> vector<8x8xf32>
    %c0_25 = arith.constant 0 : index
    %c16 = arith.constant 16 : index
    %61 = vector.load %arg16[%c0_25, %c16] : memref<8x32xf32, #tpu.memory_space<vmem>>, vector<8x8xf32>
    tpu.vector_store %arg16[%c0_25, %c16], %60 {strides = array<i32>} : memref<8x32xf32, #tpu.memory_space<vmem>>, vector<8x8xf32>,
    %62 = vector.extract_strided_slice %14 {offsets = [0, 24], sizes = [8, 8], strides = [1, 1]} : vector<8x32xf32> to vector<8x8xf32>
    %63 = vector.extract_strided_slice %15 {offsets = [0, 24], sizes = [8, 8], strides = [1, 1]} : vector<8x32xf32> to vector<8x8xf32>
    %64 = vector.extract_strided_slice %16 {offsets = [0, 24], sizes = [8, 8], strides = [1, 1]} : vector<8x32xf32> to vector<8x8xf32>
    %cst_26 = arith.constant dense<0.000000e+00> : vector<8x8xf32>
    %65 = tpu.matmul %62, %63, %cst_26 {dimension_numbers = #tpu.dot_dimension_numbers<[1], [1], [0], [0], [0, 0, 1, 0], [], []>} : vector<8x8xf32>, vector<8x8xf32>, vector<8x8xf32> -> vector<8x8xf32>
    %cst_27 = arith.constant dense<0xFF800000> : vector<8xf32>
    %66 = vector.multi_reduction <maximumf>, %65, %cst_27 [1] : vector<8x8xf32> to vector<8xf32>
    %67 = vector.shape_cast %66 : vector<8xf32> to vector<8x1xf32>
    %68 = vector.broadcast %67 : vector<8x1xf32> to vector<8x8xf32>
    %69 = arith.subf %65, %68 : vector<8x8xf32>
    %70 = math.exp %69 : vector<8x8xf32>
    %cst_28 = arith.constant dense<0.000000e+00> : vector<8xf32>
    %71 = vector.multi_reduction <add>, %70, %cst_28 [1] : vector<8x8xf32> to vector<8xf32>
    %72 = vector.shape_cast %71 : vector<8xf32> to vector<8x1xf32>
    %73 = vector.broadcast %72 : vector<8x1xf32> to vector<8x8xf32>
    %74 = arith.divf %70, %73 : vector<8x8xf32>
    %cst_29 = arith.constant dense<0.000000e+00> : vector<8x8xf32>
    %75 = tpu.matmul %74, %64, %cst_29 {dimension_numbers = #tpu.dot_dimension_numbers<[1], [0], [0], [1], [0, 0, 1, 1], [], []>} : vector<8x8xf32>, vector<8x8xf32>, vector<8x8xf32> -> vector<8x8xf32>
    %c0_30 = arith.constant 0 : index
    %c24 = arith.constant 24 : index
    %76 = vector.load %arg16[%c0_30, %c24] : memref<8x32xf32, #tpu.memory_space<vmem>>, vector<8x8xf32>
    tpu.vector_store %arg16[%c0_30, %c24], %75 {strides = array<i32>} : memref<8x32xf32, #tpu.memory_space<vmem>>, vector<8x8xf32>,
    %c0_31 = arith.constant 0 : index
    %c0_32 = arith.constant 0 : index
    %77 = vector.load %arg16[%c0_31, %c0_32] : memref<8x32xf32, #tpu.memory_space<vmem>>, vector<8x32xf32>
    %c0_33 = arith.constant 0 : index
    %c0_34 = arith.constant 0 : index
    %c0_35 = arith.constant 0 : index
    %78 = vector.load %arg5[%c0_33, %c0_34, %c0_35] : memref<1x32x32xf32, #tpu.memory_space<vmem>>, vector<1x32x32xf32>
    %79 = vector.shape_cast %78 : vector<1x32x32xf32> to vector<32x32xf32>
    %cst_36 = arith.constant dense<0.000000e+00> : vector<8x32xf32>
    %80 = tpu.matmul %77, %79, %cst_36 {dimension_numbers = #tpu.dot_dimension_numbers<[1], [0], [0], [1], [0, 0, 1, 1], [], []>} : vector<8x32xf32>, vector<32x32xf32>, vector<8x32xf32> -> vector<8x32xf32>
    %c0_37 = arith.constant 0 : index
    %c0_38 = arith.constant 0 : index
    %c0_39 = arith.constant 0 : index
    %81 = vector.load %arg6[%c0_37, %c0_38, %c0_39] : memref<1x1x32xf32, #tpu.memory_space<vmem>>, vector<1x1x32xf32>
    %82 = vector.shape_cast %81 : vector<1x1x32xf32> to vector<1x32xf32>
    %83 = vector.broadcast %82 : vector<1x32xf32> to vector<8x32xf32>
    %84 = arith.addf %80, %83 : vector<8x32xf32>
    %85 = arith.addf %4, %84 : vector<8x32xf32>
    %c0_40 = arith.constant 0 : index
    %c0_41 = arith.constant 0 : index
    %c0_42 = arith.constant 0 : index
    %86 = vector.load %arg7[%c0_40, %c0_41, %c0_42] : memref<1x1x32xf32, #tpu.memory_space<vmem>>, vector<1x1x32xf32>
    %87 = vector.shape_cast %86 : vector<1x1x32xf32> to vector<1x32xf32>
    %c0_43 = arith.constant 0 : index
    %c0_44 = arith.constant 0 : index
    %c0_45 = arith.constant 0 : index
    %88 = vector.load %arg8[%c0_43, %c0_44, %c0_45] : memref<1x1x32xf32, #tpu.memory_space<vmem>>, vector<1x1x32xf32>
    %89 = vector.shape_cast %88 : vector<1x1x32xf32> to vector<1x32xf32>
    %cst_46 = arith.constant dense<0.000000e+00> : vector<8xf32>
    %90 = vector.multi_reduction <add>, %85, %cst_46 [1] : vector<8x32xf32> to vector<8xf32>
    %91 = vector.shape_cast %90 : vector<8xf32> to vector<8x1xf32>
    %cst_47 = arith.constant 3.200000e+01 : f32
    %92 = vector.broadcast %cst_47 : f32 to vector<8x1xf32>
    %93 = arith.divf %91, %92 : vector<8x1xf32>
    %94 = vector.broadcast %93 : vector<8x1xf32> to vector<8x32xf32>
    %95 = arith.subf %85, %94 : vector<8x32xf32>
    %96 = arith.mulf %95, %95 : vector<8x32xf32>
    %cst_48 = arith.constant dense<0.000000e+00> : vector<8xf32>
    %97 = vector.multi_reduction <add>, %96, %cst_48 [1] : vector<8x32xf32> to vector<8xf32>
    %98 = vector.shape_cast %97 : vector<8xf32> to vector<8x1xf32>
    %cst_49 = arith.constant 3.200000e+01 : f32
    %99 = vector.broadcast %cst_49 : f32 to vector<8x1xf32>
    %100 = arith.divf %98, %99 : vector<8x1xf32>
    %cst_50 = arith.constant 9.99999974E-6 : f32
    %101 = vector.broadcast %cst_50 : f32 to vector<8x1xf32>
    %102 = arith.addf %100, %101 : vector<8x1xf32>
    %103 = math.rsqrt %102 : vector<8x1xf32>
    %104 = vector.broadcast %103 : vector<8x1xf32> to vector<8x32xf32>
    %105 = arith.mulf %95, %104 : vector<8x32xf32>
    %106 = vector.broadcast %87 : vector<1x32xf32> to vector<8x32xf32>
    %107 = arith.mulf %105, %106 : vector<8x32xf32>
    %108 = vector.broadcast %89 : vector<1x32xf32> to vector<8x32xf32>
    %109 = arith.addf %107, %108 : vector<8x32xf32>
    %c0_51 = arith.constant 0 : index
    %c0_52 = arith.constant 0 : index
    %c0_53 = arith.constant 0 : index
    %110 = vector.load %arg11[%c0_51, %c0_52, %c0_53] : memref<1x32x2048xf32, #tpu.memory_space<vmem>>, vector<1x32x2048xf32>
    %111 = vector.shape_cast %110 : vector<1x32x2048xf32> to vector<32x2048xf32>
    %cst_54 = arith.constant dense<0.000000e+00> : vector<8x2048xf32>
    %112 = tpu.matmul %109, %111, %cst_54 {dimension_numbers = #tpu.dot_dimension_numbers<[1], [0], [0], [1], [0, 0, 1, 1], [], []>} : vector<8x32xf32>, vector<32x2048xf32>, vector<8x2048xf32> -> vector<8x2048xf32>
    %c0_55 = arith.constant 0 : index
    %c0_56 = arith.constant 0 : index
    %c0_57 = arith.constant 0 : index
    %113 = vector.load %arg12[%c0_55, %c0_56, %c0_57] : memref<1x1x2048xf32, #tpu.memory_space<vmem>>, vector<1x1x2048xf32>
    %114 = vector.shape_cast %113 : vector<1x1x2048xf32> to vector<1x2048xf32>
    %115 = vector.broadcast %114 : vector<1x2048xf32> to vector<8x2048xf32>
    %116 = arith.addf %112, %115 : vector<8x2048xf32>
    %cst_58 = arith.constant 0.000000e+00 : f32
    %117 = vector.broadcast %cst_58 : f32 to vector<8x2048xf32>
    %118 = arith.maximumf %116, %117 : vector<8x2048xf32>
    %c0_59 = arith.constant 0 : index
    %c0_60 = arith.constant 0 : index
    %c0_61 = arith.constant 0 : index
    %119 = vector.load %arg13[%c0_59, %c0_60, %c0_61] : memref<1x2048x32xf32, #tpu.memory_space<vmem>>, vector<1x2048x32xf32>
    %120 = vector.shape_cast %119 : vector<1x2048x32xf32> to vector<2048x32xf32>
    %cst_62 = arith.constant dense<0.000000e+00> : vector<8x32xf32>
    %121 = tpu.matmul %118, %120, %cst_62 {dimension_numbers = #tpu.dot_dimension_numbers<[1], [0], [0], [1], [0, 0, 1, 1], [], []>} : vector<8x2048xf32>, vector<2048x32xf32>, vector<8x32xf32> -> vector<8x32xf32>
    %c0_63 = arith.constant 0 : index
    %c0_64 = arith.constant 0 : index
    %c0_65 = arith.constant 0 : index
    %122 = vector.load %arg14[%c0_63, %c0_64, %c0_65] : memref<1x1x32xf32, #tpu.memory_space<vmem>>, vector<1x1x32xf32>
    %123 = vector.shape_cast %122 : vector<1x1x32xf32> to vector<1x32xf32>
    %124 = vector.broadcast %123 : vector<1x32xf32> to vector<8x32xf32>
    %125 = arith.addf %121, %124 : vector<8x32xf32>
    %126 = arith.addf %109, %125 : vector<8x32xf32>
    %c0_66 = arith.constant 0 : index
    %c0_67 = arith.constant 0 : index
    %c0_68 = arith.constant 0 : index
    %127 = vector.load %arg9[%c0_66, %c0_67, %c0_68] : memref<1x1x32xf32, #tpu.memory_space<vmem>>, vector<1x1x32xf32>
    %128 = vector.shape_cast %127 : vector<1x1x32xf32> to vector<1x32xf32>
    %c0_69 = arith.constant 0 : index
    %c0_70 = arith.constant 0 : index
    %c0_71 = arith.constant 0 : index
    %129 = vector.load %arg10[%c0_69, %c0_70, %c0_71] : memref<1x1x32xf32, #tpu.memory_space<vmem>>, vector<1x1x32xf32>
    %130 = vector.shape_cast %129 : vector<1x1x32xf32> to vector<1x32xf32>
    %cst_72 = arith.constant dense<0.000000e+00> : vector<8xf32>
    %131 = vector.multi_reduction <add>, %126, %cst_72 [1] : vector<8x32xf32> to vector<8xf32>
    %132 = vector.shape_cast %131 : vector<8xf32> to vector<8x1xf32>
    %cst_73 = arith.constant 3.200000e+01 : f32
    %133 = vector.broadcast %cst_73 : f32 to vector<8x1xf32>
    %134 = arith.divf %132, %133 : vector<8x1xf32>
    %135 = vector.broadcast %134 : vector<8x1xf32> to vector<8x32xf32>
    %136 = arith.subf %126, %135 : vector<8x32xf32>
    %137 = arith.mulf %136, %136 : vector<8x32xf32>
    %cst_74 = arith.constant dense<0.000000e+00> : vector<8xf32>
    %138 = vector.multi_reduction <add>, %137, %cst_74 [1] : vector<8x32xf32> to vector<8xf32>
    %139 = vector.shape_cast %138 : vector<8xf32> to vector<8x1xf32>
    %cst_75 = arith.constant 3.200000e+01 : f32
    %140 = vector.broadcast %cst_75 : f32 to vector<8x1xf32>
    %141 = arith.divf %139, %140 : vector<8x1xf32>
    %cst_76 = arith.constant 9.99999974E-6 : f32
    %142 = vector.broadcast %cst_76 : f32 to vector<8x1xf32>
    %143 = arith.addf %141, %142 : vector<8x1xf32>
    %144 = math.rsqrt %143 : vector<8x1xf32>
    %145 = vector.broadcast %144 : vector<8x1xf32> to vector<8x32xf32>
    %146 = arith.mulf %136, %145 : vector<8x32xf32>
    %147 = vector.broadcast %128 : vector<1x32xf32> to vector<8x32xf32>
    %148 = arith.mulf %146, %147 : vector<8x32xf32>
    %149 = vector.broadcast %130 : vector<1x32xf32> to vector<8x32xf32>
    %150 = arith.addf %148, %149 : vector<8x32xf32>
    %c0_77 = arith.constant 0 : index
    %c0_78 = arith.constant 0 : index
    %c0_79 = arith.constant 0 : index
    %151 = vector.load %arg15[%c0_77, %c0_78, %c0_79] : memref<1x8x32xf32, #tpu.memory_space<vmem>>, vector<1x8x32xf32>
    %152 = vector.shape_cast %151 : vector<1x8x32xf32> to vector<8x32xf32>
    %153 = vector.shape_cast %150 : vector<8x32xf32> to vector<1x8x32xf32>
    tpu.vector_store %arg15[%c0_77, %c0_78, %c0_79], %153 {strides = array<i32>} : memref<1x8x32xf32, #tpu.memory_space<vmem>>, vector<1x8x32xf32>,
    return
  }
  func.func @transform_0(%arg0: i32, %arg1: i32) -> (i32, i32, i32) {
    %c0_i32 = arith.constant 0 : i32
    %c0_i32_0 = arith.constant 0 : i32
    %c0_i32_1 = arith.constant 0 : i32
    return %arg0, %c0_i32, %c0_i32_0 : i32, i32, i32
  }
  func.func @transform_1(%arg0: i32, %arg1: i32) -> (i32, i32, i32) {
    %c0_i32 = arith.constant 0 : i32
    %c0_i32_0 = arith.constant 0 : i32
    %c0_i32_1 = arith.constant 0 : i32
    return %arg1, %c0_i32, %c0_i32_0 : i32, i32, i32
  }
  func.func @transform_2(%arg0: i32, %arg1: i32) -> (i32, i32, i32) {
    %c0_i32 = arith.constant 0 : i32
    %c0_i32_0 = arith.constant 0 : i32
    %c0_i32_1 = arith.constant 0 : i32
    return %arg1, %c0_i32, %c0_i32_0 : i32, i32, i32
  }
  func.func @transform_3(%arg0: i32, %arg1: i32) -> (i32, i32, i32) {
    %c0_i32 = arith.constant 0 : i32
    %c0_i32_0 = arith.constant 0 : i32
    %c0_i32_1 = arith.constant 0 : i32
    return %arg1, %c0_i32, %c0_i32_0 : i32, i32, i32
  }
  func.func @transform_4(%arg0: i32, %arg1: i32) -> (i32, i32, i32) {
    %c0_i32 = arith.constant 0 : i32
    %c0_i32_0 = arith.constant 0 : i32
    %c0_i32_1 = arith.constant 0 : i32
    return %arg1, %c0_i32, %c0_i32_0 : i32, i32, i32
  }
  func.func @transform_5(%arg0: i32, %arg1: i32) -> (i32, i32, i32) {
    %c0_i32 = arith.constant 0 : i32
    %c0_i32_0 = arith.constant 0 : i32
    %c0_i32_1 = arith.constant 0 : i32
    return %arg1, %c0_i32, %c0_i32_0 : i32, i32, i32
  }
  func.func @transform_6(%arg0: i32, %arg1: i32) -> (i32, i32, i32) {
    %c0_i32 = arith.constant 0 : i32
    %c0_i32_0 = arith.constant 0 : i32
    %c0_i32_1 = arith.constant 0 : i32
    return %arg1, %c0_i32, %c0_i32_0 : i32, i32, i32
  }
  func.func @transform_7(%arg0: i32, %arg1: i32) -> (i32, i32, i32) {
    %c0_i32 = arith.constant 0 : i32
    %c0_i32_0 = arith.constant 0 : i32
    %c0_i32_1 = arith.constant 0 : i32
    return %arg1, %c0_i32, %c0_i32_0 : i32, i32, i32
  }
  func.func @transform_8(%arg0: i32, %arg1: i32) -> (i32, i32, i32) {
    %c0_i32 = arith.constant 0 : i32
    %c0_i32_0 = arith.constant 0 : i32
    %c0_i32_1 = arith.constant 0 : i32
    return %arg1, %c0_i32, %c0_i32_0 : i32, i32, i32
  }
  func.func @transform_9(%arg0: i32, %arg1: i32) -> (i32, i32, i32) {
    %c0_i32 = arith.constant 0 : i32
    %c0_i32_0 = arith.constant 0 : i32
    %c0_i32_1 = arith.constant 0 : i32
    return %arg1, %c0_i32, %c0_i32_0 : i32, i32, i32
  }
  func.func @transform_10(%arg0: i32, %arg1: i32) -> (i32, i32, i32) {
    %c0_i32 = arith.constant 0 : i32
    %c0_i32_0 = arith.constant 0 : i32
    %c0_i32_1 = arith.constant 0 : i32
    return %arg1, %c0_i32, %c0_i32_0 : i32, i32, i32
  }
  func.func @transform_11(%arg0: i32, %arg1: i32) -> (i32, i32, i32) {
    %c0_i32 = arith.constant 0 : i32
    %c0_i32_0 = arith.constant 0 : i32
    %c0_i32_1 = arith.constant 0 : i32
    return %arg1, %c0_i32, %c0_i32_0 : i32, i32, i32
  }
  func.func @transform_12(%arg0: i32, %arg1: i32) -> (i32, i32, i32) {
    %c0_i32 = arith.constant 0 : i32
    %c0_i32_0 = arith.constant 0 : i32
    %c0_i32_1 = arith.constant 0 : i32
    return %arg1, %c0_i32, %c0_i32_0 : i32, i32, i32
  }
  func.func @transform_13(%arg0: i32, %arg1: i32) -> (i32, i32, i32) {
    %c0_i32 = arith.constant 0 : i32
    %c0_i32_0 = arith.constant 0 : i32
    %c0_i32_1 = arith.constant 0 : i32
    return %arg0, %c0_i32, %c0_i32_0 : i32, i32, i32
  }
}

</mosaic_0001>

<llo_original>
// kernel: tpu_custom_call.1
$region0: #{tpu_custom_call.1}
  #allocation0 [shape = 'u32[]', space=smem, size = 0x4, offset = 0x4, fixed_abs, tag = 'smem constant byte address 0x4 - core index']
  #allocation1 [shape = 'u32[144,128]{1,0:T(1,128)}', space=vmem, size = 0x12000, scoped, tag = 'internal scratch']
  #allocation2 [shape = 'f32[8,32]{1,0:T(8,128)}', space=vmem, size = 0x1000, scoped, tag = 'scratch operand']
  %s0 = inlined_call_operand.hbm [shape: f32[2,8,32], index: 0, kind: input, shape index: {}, may-alias: {0,13}]
  %s1 = inlined_call_operand.vmem [shape: f32[2,32,96], index: 1, kind: input, shape index: {}]
  %s2 = inlined_call_operand.vmem [shape: f32[2,1,96], index: 2, kind: input, shape index: {}]
  %s3 = inlined_call_operand.vmem [shape: f32[2,32,32], index: 3, kind: input, shape index: {}]
  %s4 = inlined_call_operand.vmem [shape: f32[2,1,32], index: 4, kind: input, shape index: {}]
  %s5 = inlined_call_operand.vmem [shape: f32[2,1,32], index: 5, kind: input, shape index: {}]
  %s6 = inlined_call_operand.vmem [shape: f32[2,1,32], index: 6, kind: input, shape index: {}]
  %s7 = inlined_call_operand.vmem [shape: f32[2,1,32], index: 7, kind: input, shape index: {}]
  %s8 = inlined_call_operand.vmem [shape: f32[2,1,32], index: 8, kind: input, shape index: {}]
  %s9 = inlined_call_operand.vmem [shape: f32[2,32,2048], index: 9, kind: input, shape index: {}]
  %s10 = inlined_call_operand.vmem [shape: f32[2,1,2048], index: 10, kind: input, shape index: {}]
  %s11 = inlined_call_operand.vmem [shape: f32[2,2048,32], index: 11, kind: input, shape index: {}]
  %s12 = inlined_call_operand.vmem [shape: f32[2,1,32], index: 12, kind: input, shape index: {}]
  %s13 = inlined_call_operand.hbm [shape: f32[2,8,32], index: 13, kind: output, shape index: {}, may-alias: {0,13}]
  %s14 = sld [smem:[#allocation0]]
  $region93: #{tpu_custom_call.1} parent=0
    _
  %s16 = ssub.s32 1, %s14
  %s17 = scalar_select 0, %s16, %s14
  $region1: #{tpu_custom_call.1} parent=0
    #allocation3 [shape = 'u8[8192]{0}', space=vmem, size = 0x2000, scoped, tag = 'input window, operand 0']
    #allocation4 [shape = 's32[2]{0}', space=sflag, size = 0x8, scoped, tag = 'scoped memory for tpu_custom_call.1']
    #allocation5 [shape = 's32[2]{0}', space=sflag, size = 0x8, scoped, tag = 'scoped memory for tpu_custom_call.1']
    #allocation6 [shape = 'u8[8192]{0}', space=vmem, size = 0x2000, scoped, tag = 'output window, operand 0']
    %18 = vsyncpa [#allocation4], 0
    %s19 = scalar_lea.sflag [#allocation4], 1
    %20 = vsyncpa %s19, 0
    %21 = vsyncpa [#allocation5], 0
    %s22 = scalar_lea.sflag [#allocation5], 1
    %23 = vsyncpa %s22, 0
    loop: start=0, step=1, limit=6
    $region2: #{tpu_custom_call.1} parent=1 // loop_pre_header
      _
    $region3: #{tpu_custom_call.1} parent=1 // loop_header
      %s25 = sphi 0, %s29
      %p26 = scmp.ge.s32.totalorder %s25, 6
      %s32 = sphi 0, %s44
      %s33 = sphi 0, %s40
      %s34 = sphi 0, %s32
      %s35 = sphi 0, %s33
      %s36 = sphi 0, %s34
      %s37 = sphi 0, %s35
      %s47 = sphi 0, %s49
      %s50 = sphi 0, %s47
      %s51 = sphi 0, %s50
      %s67 = sphi 0, %s51
      %s73 = sphi 0, %s75
      %s76 = sphi 0, %s73
      %s77 = sphi 0, %s76
      %s93 = sphi 0, %s77
      %s99 = sphi 0, %s101
      %s102 = sphi 0, %s99
      %s103 = sphi 0, %s102
      %s119 = sphi 0, %s103
      %s125 = sphi 0, %s127
      %s128 = sphi 0, %s125
      %s129 = sphi 0, %s128
      %s145 = sphi 0, %s129
      %s151 = sphi 0, %s153
      %s154 = sphi 0, %s151
      %s155 = sphi 0, %s154
      %s171 = sphi 0, %s155
      %s177 = sphi 0, %s179
      %s180 = sphi 0, %s177
      %s181 = sphi 0, %s180
      %s197 = sphi 0, %s181
      %s203 = sphi 0, %s205
      %s206 = sphi 0, %s203
      %s207 = sphi 0, %s206
      %s223 = sphi 0, %s207
      %s229 = sphi 0, %s231
      %s232 = sphi 0, %s229
      %s233 = sphi 0, %s232
      %s249 = sphi 0, %s233
      %s255 = sphi 0, %s257
      %s258 = sphi 0, %s255
      %s259 = sphi 0, %s258
      %s275 = sphi 0, %s259
      %s281 = sphi 0, %s283
      %s284 = sphi 0, %s281
      %s285 = sphi 0, %s284
      %s301 = sphi 0, %s285
      %s307 = sphi 0, %s309
      %s310 = sphi 0, %s307
      %s311 = sphi 0, %s310
      %s327 = sphi 0, %s311
      %s333 = sphi 0, %s335
      %s336 = sphi 0, %s333
      %s337 = sphi 0, %s336
      %s353 = sphi 0, %s337
      %s359 = sphi 0, %s361
      %s362 = sphi 0, %s359
      %s363 = sphi 0, %s362
      %s379 = sphi 0, %s363
      %s385 = sphi 0, %s387
      %s388 = sphi 0, %s385
      %s389 = sphi 0, %s388
      %s405 = sphi 0, %s389
    $region4: #{tpu_custom_call.1} parent=1 // loop_header_branch
      %28 = sbr.rel (%p26) target = $region8
    $region5: #{tpu_custom_call.1} parent=1 // loop_body
      %s30 = ssub.s32 %s25, 1
      %s31 = ssub.s32 %s25, 2
      %s38 = sadd.s32 1, %s33
      %p39 = scmp.ge.s32.totalorder %s38, 2
      %s40 = scalar_select %p39, 0, %s38
      %s41 = sadd.s32 1, %s32
      %s42 = scalar_select %p39, %s41, %s32
      %p43 = scmp.ge.s32.totalorder %s42, 2
      %s44 = scalar_select %p43, 0, %s42
      %s45 = ssub.s32 %s32, %s44
      %p46 = scmp.eq.s32.totalorder %s45, 0
      %s48 = sadd.s32 %s47, 1
      %s49 = scalar_select %p46, %s47, %s48
      %p52 = pneg %p46
      %p53 = scmp.eq.s32.totalorder %s25, 3
      %p54 = por %p52, %p53
      %p55 = scmp.ne.s32.totalorder %s47, %s50
      %p56 = scmp.eq.s32.totalorder %s25, 0
      %p57 = por %p55, %p56
      %p58 = scmp.ne.s32.totalorder %s47, %s50
      %p59 = scmp.eq.s32.totalorder %s30, 3
      %p60 = por %p58, %p59
      %p61 = scmp.ne.s32.totalorder %s50, %s51
      %p62 = scmp.eq.s32.totalorder %s30, 0
      %p63 = por %p61, %p62
      %p64 = scmp.ne.s32.totalorder %s50, %s51
      %p65 = scmp.eq.s32.totalorder %s31, 3
      %p66 = por %p64, %p65
      %p68 = scmp.ne.s32.totalorder %s51, %s67
      %p69 = scmp.eq.s32.totalorder %s31, 0
      %p70 = por %p68, %p69
      %s71 = ssub.s32 %s33, %s40
      %p72 = scmp.eq.s32.totalorder %s71, 0
      %s74 = sadd.s32 %s73, 1
      %s75 = scalar_select %p72, %s73, %s74
      %p78 = pneg %p72
      %p79 = scmp.eq.s32.totalorder %s25, 3
      %p80 = por %p78, %p79
      %p81 = scmp.ne.s32.totalorder %s73, %s76
      %p82 = scmp.eq.s32.totalorder %s25, 0
      %p83 = por %p81, %p82
      %p84 = scmp.ne.s32.totalorder %s73, %s76
      %p85 = scmp.eq.s32.totalorder %s30, 3
      %p86 = por %p84, %p85
      %p87 = scmp.ne.s32.totalorder %s76, %s77
      %p88 = scmp.eq.s32.totalorder %s30, 0
      %p89 = por %p87, %p88
      %p90 = scmp.ne.s32.totalorder %s76, %s77
      %p91 = scmp.eq.s32.totalorder %s31, 3
      %p92 = por %p90, %p91
      %p94 = scmp.ne.s32.totalorder %s77, %s93
      %p95 = scmp.eq.s32.totalorder %s31, 0
      %p96 = por %p94, %p95
      %s97 = ssub.s32 %s33, %s40
      %p98 = scmp.eq.s32.totalorder %s97, 0
      %s100 = sadd.s32 %s99, 1
      %s101 = scalar_select %p98, %s99, %s100
      %p104 = pneg %p98
      %p105 = scmp.eq.s32.totalorder %s25, 3
      %p106 = por %p104, %p105
      %p107 = scmp.ne.s32.totalorder %s99, %s102
      %p108 = scmp.eq.s32.totalorder %s25, 0
      %p109 = por %p107, %p108
      %p110 = scmp.ne.s32.totalorder %s99, %s102
      %p111 = scmp.eq.s32.totalorder %s30, 3
      %p112 = por %p110, %p111
      %p113 = scmp.ne.s32.totalorder %s102, %s103
      %p114 = scmp.eq.s32.totalorder %s30, 0
      %p115 = por %p113, %p114
      %p116 = scmp.ne.s32.totalorder %s102, %s103
      %p117 = scmp.eq.s32.totalorder %s31, 3
      %p118 = por %p116, %p117
      %p120 = scmp.ne.s32.totalorder %s103, %s119
      %p121 = scmp.eq.s32.totalorder %s31, 0
      %p122 = por %p120, %p121
      %s123 = ssub.s32 %s33, %s40
      %p124 = scmp.eq.s32.totalorder %s123, 0
      %s126 = sadd.s32 %s125, 1
      %s127 = scalar_select %p124, %s125, %s126
      %p130 = pneg %p124
      %p131 = scmp.eq.s32.totalorder %s25, 3
      %p132 = por %p130, %p131
      %p133 = scmp.ne.s32.totalorder %s125, %s128
      %p134 = scmp.eq.s32.totalorder %s25, 0
      %p135 = por %p133, %p134
      %p136 = scmp.ne.s32.totalorder %s125, %s128
      %p137 = scmp.eq.s32.totalorder %s30, 3
      %p138 = por %p136, %p137
      %p139 = scmp.ne.s32.totalorder %s128, %s129
      %p140 = scmp.eq.s32.totalorder %s30, 0
      %p141 = por %p139, %p140
      %p142 = scmp.ne.s32.totalorder %s128, %s129
      %p143 = scmp.eq.s32.totalorder %s31, 3
      %p144 = por %p142, %p143
      %p146 = scmp.ne.s32.totalorder %s129, %s145
      %p147 = scmp.eq.s32.totalorder %s31, 0
      %p148 = por %p146, %p147
      %s149 = ssub.s32 %s33, %s40
      %p150 = scmp.eq.s32.totalorder %s149, 0
      %s152 = sadd.s32 %s151, 1
      %s153 = scalar_select %p150, %s151, %s152
      %p156 = pneg %p150
      %p157 = scmp.eq.s32.totalorder %s25, 3
      %p158 = por %p156, %p157
      %p159 = scmp.ne.s32.totalorder %s151, %s154
      %p160 = scmp.eq.s32.totalorder %s25, 0
      %p161 = por %p159, %p160
      %p162 = scmp.ne.s32.totalorder %s151, %s154
      %p163 = scmp.eq.s32.totalorder %s30, 3
      %p164 = por %p162, %p163
      %p165 = scmp.ne.s32.totalorder %s154, %s155
      %p166 = scmp.eq.s32.totalorder %s30, 0
      %p167 = por %p165, %p166
      %p168 = scmp.ne.s32.totalorder %s154, %s155
      %p169 = scmp.eq.s32.totalorder %s31, 3
      %p170 = por %p168, %p169
      %p172 = scmp.ne.s32.totalorder %s155, %s171
      %p173 = scmp.eq.s32.totalorder %s31, 0
      %p174 = por %p172, %p173
      %s175 = ssub.s32 %s33, %s40
      %p176 = scmp.eq.s32.totalorder %s175, 0
      %s178 = sadd.s32 %s177, 1
      %s179 = scalar_select %p176, %s177, %s178
      %p182 = pneg %p176
      %p183 = scmp.eq.s32.totalorder %s25, 3
      %p184 = por %p182, %p183
      %p185 = scmp.ne.s32.totalorder %s177, %s180
      %p186 = scmp.eq.s32.totalorder %s25, 0
      %p187 = por %p185, %p186
      %p188 = scmp.ne.s32.totalorder %s177, %s180
      %p189 = scmp.eq.s32.totalorder %s30, 3
      %p190 = por %p188, %p189
      %p191 = scmp.ne.s32.totalorder %s180, %s181
      %p192 = scmp.eq.s32.totalorder %s30, 0
      %p193 = por %p191, %p192
      %p194 = scmp.ne.s32.totalorder %s180, %s181
      %p195 = scmp.eq.s32.totalorder %s31, 3
      %p196 = por %p194, %p195
      %p198 = scmp.ne.s32.totalorder %s181, %s197
      %p199 = scmp.eq.s32.totalorder %s31, 0
      %p200 = por %p198, %p199
      %s201 = ssub.s32 %s33, %s40
      %p202 = scmp.eq.s32.totalorder %s201, 0
      %s204 = sadd.s32 %s203, 1
      %s205 = scalar_select %p202, %s203, %s204
      %p208 = pneg %p202
      %p209 = scmp.eq.s32.totalorder %s25, 3
      %p210 = por %p208, %p209
      %p211 = scmp.ne.s32.totalorder %s203, %s206
      %p212 = scmp.eq.s32.totalorder %s25, 0
      %p213 = por %p211, %p212
      %p214 = scmp.ne.s32.totalorder %s203, %s206
      %p215 = scmp.eq.s32.totalorder %s30, 3
      %p216 = por %p214, %p215
      %p217 = scmp.ne.s32.totalorder %s206, %s207
      %p218 = scmp.eq.s32.totalorder %s30, 0
      %p219 = por %p217, %p218
      %p220 = scmp.ne.s32.totalorder %s206, %s207
      %p221 = scmp.eq.s32.totalorder %s31, 3
      %p222 = por %p220, %p221
      %p224 = scmp.ne.s32.totalorder %s207, %s223
      %p225 = scmp.eq.s32.totalorder %s31, 0
      %p226 = por %p224, %p225
      %s227 = ssub.s32 %s33, %s40
      %p228 = scmp.eq.s32.totalorder %s227, 0
      %s230 = sadd.s32 %s229, 1
      %s231 = scalar_select %p228, %s229, %s230
      %p234 = pneg %p228
      %p235 = scmp.eq.s32.totalorder %s25, 3
      %p236 = por %p234, %p235
      %p237 = scmp.ne.s32.totalorder %s229, %s232
      %p238 = scmp.eq.s32.totalorder %s25, 0
      %p239 = por %p237, %p238
      %p240 = scmp.ne.s32.totalorder %s229, %s232
      %p241 = scmp.eq.s32.totalorder %s30, 3
      %p242 = por %p240, %p241
      %p243 = scmp.ne.s32.totalorder %s232, %s233
      %p244 = scmp.eq.s32.totalorder %s30, 0
      %p245 = por %p243, %p244
      %p246 = scmp.ne.s32.totalorder %s232, %s233
      %p247 = scmp.eq.s32.totalorder %s31, 3
      %p248 = por %p246, %p247
      %p250 = scmp.ne.s32.totalorder %s233, %s249
      %p251 = scmp.eq.s32.totalorder %s31, 0
      %p252 = por %p250, %p251
      %s253 = ssub.s32 %s33, %s40
      %p254 = scmp.eq.s32.totalorder %s253, 0
      %s256 = sadd.s32 %s255, 1
      %s257 = scalar_select %p254, %s255, %s256
      %p260 = pneg %p254
      %p261 = scmp.eq.s32.totalorder %s25, 3
      %p262 = por %p260, %p261
      %p263 = scmp.ne.s32.totalorder %s255, %s258
      %p264 = scmp.eq.s32.totalorder %s25, 0
      %p265 = por %p263, %p264
      %p266 = scmp.ne.s32.totalorder %s255, %s258
      %p267 = scmp.eq.s32.totalorder %s30, 3
      %p268 = por %p266, %p267
      %p269 = scmp.ne.s32.totalorder %s258, %s259
      %p270 = scmp.eq.s32.totalorder %s30, 0
      %p271 = por %p269, %p270
      %p272 = scmp.ne.s32.totalorder %s258, %s259
      %p273 = scmp.eq.s32.totalorder %s31, 3
      %p274 = por %p272, %p273
      %p276 = scmp.ne.s32.totalorder %s259, %s275
      %p277 = scmp.eq.s32.totalorder %s31, 0
      %p278 = por %p276, %p277
      %s279 = ssub.s32 %s33, %s40
      %p280 = scmp.eq.s32.totalorder %s279, 0
      %s282 = sadd.s32 %s281, 1
      %s283 = scalar_select %p280, %s281, %s282
      %p286 = pneg %p280
      %p287 = scmp.eq.s32.totalorder %s25, 3
      %p288 = por %p286, %p287
      %p289 = scmp.ne.s32.totalorder %s281, %s284
      %p290 = scmp.eq.s32.totalorder %s25, 0
      %p291 = por %p289, %p290
      %p292 = scmp.ne.s32.totalorder %s281, %s284
      %p293 = scmp.eq.s32.totalorder %s30, 3
      %p294 = por %p292, %p293
      %p295 = scmp.ne.s32.totalorder %s284, %s285
      %p296 = scmp.eq.s32.totalorder %s30, 0
      %p297 = por %p295, %p296
      %p298 = scmp.ne.s32.totalorder %s284, %s285
      %p299 = scmp.eq.s32.totalorder %s31, 3
      %p300 = por %p298, %p299
      %p302 = scmp.ne.s32.totalorder %s285, %s301
      %p303 = scmp.eq.s32.totalorder %s31, 0
      %p304 = por %p302, %p303
      %s305 = ssub.s32 %s33, %s40
      %p306 = scmp.eq.s32.totalorder %s305, 0
      %s308 = sadd.s32 %s307, 1
      %s309 = scalar_select %p306, %s307, %s308
      %p312 = pneg %p306
      %p313 = scmp.eq.s32.totalorder %s25, 3
      %p314 = por %p312, %p313
      %p315 = scmp.ne.s32.totalorder %s307, %s310
      %p316 = scmp.eq.s32.totalorder %s25, 0
      %p317 = por %p315, %p316
      %p318 = scmp.ne.s32.totalorder %s307, %s310
      %p319 = scmp.eq.s32.totalorder %s30, 3
      %p320 = por %p318, %p319
      %p321 = scmp.ne.s32.totalorder %s310, %s311
      %p322 = scmp.eq.s32.totalorder %s30, 0
      %p323 = por %p321, %p322
      %p324 = scmp.ne.s32.totalorder %s310, %s311
      %p325 = scmp.eq.s32.totalorder %s31, 3
      %p326 = por %p324, %p325
      %p328 = scmp.ne.s32.totalorder %s311, %s327
      %p329 = scmp.eq.s32.totalorder %s31, 0
      %p330 = por %p328, %p329
      %s331 = ssub.s32 %s33, %s40
      %p332 = scmp.eq.s32.totalorder %s331, 0
      %s334 = sadd.s32 %s333, 1
      %s335 = scalar_select %p332, %s333, %s334
      %p338 = pneg %p332
      %p339 = scmp.eq.s32.totalorder %s25, 3
      %p340 = por %p338, %p339
      %p341 = scmp.ne.s32.totalorder %s333, %s336
      %p342 = scmp.eq.s32.totalorder %s25, 0
      %p343 = por %p341, %p342
      %p344 = scmp.ne.s32.totalorder %s333, %s336
      %p345 = scmp.eq.s32.totalorder %s30, 3
      %p346 = por %p344, %p345
      %p347 = scmp.ne.s32.totalorder %s336, %s337
      %p348 = scmp.eq.s32.totalorder %s30, 0
      %p349 = por %p347, %p348
      %p350 = scmp.ne.s32.totalorder %s336, %s337
      %p351 = scmp.eq.s32.totalorder %s31, 3
      %p352 = por %p350, %p351
      %p354 = scmp.ne.s32.totalorder %s337, %s353
      %p355 = scmp.eq.s32.totalorder %s31, 0
      %p356 = por %p354, %p355
      %s357 = ssub.s32 %s33, %s40
      %p358 = scmp.eq.s32.totalorder %s357, 0
      %s360 = sadd.s32 %s359, 1
      %s361 = scalar_select %p358, %s359, %s360
      %p364 = pneg %p358
      %p365 = scmp.eq.s32.totalorder %s25, 3
      %p366 = por %p364, %p365
      %p367 = scmp.ne.s32.totalorder %s359, %s362
      %p368 = scmp.eq.s32.totalorder %s25, 0
      %p369 = por %p367, %p368
      %p370 = scmp.ne.s32.totalorder %s359, %s362
      %p371 = scmp.eq.s32.totalorder %s30, 3
      %p372 = por %p370, %p371
      %p373 = scmp.ne.s32.totalorder %s362, %s363
      %p374 = scmp.eq.s32.totalorder %s30, 0
      %p375 = por %p373, %p374
      %p376 = scmp.ne.s32.totalorder %s362, %s363
      %p377 = scmp.eq.s32.totalorder %s31, 3
      %p378 = por %p376, %p377
      %p380 = scmp.ne.s32.totalorder %s363, %s379
      %p381 = scmp.eq.s32.totalorder %s31, 0
      %p382 = por %p380, %p381
      %s383 = ssub.s32 %s32, %s44
      %p384 = scmp.eq.s32.totalorder %s383, 0
      %s386 = sadd.s32 %s385, 1
      %s387 = scalar_select %p384, %s385, %s386
      %p390 = pneg %p384
      %p391 = scmp.eq.s32.totalorder %s25, 3
      %p392 = por %p390, %p391
      %p393 = scmp.ne.s32.totalorder %s385, %s388
      %p394 = scmp.eq.s32.totalorder %s25, 0
      %p395 = por %p393, %p394
      %p396 = scmp.ne.s32.totalorder %s385, %s388
      %p397 = scmp.eq.s32.totalorder %s30, 3
      %p398 = por %p396, %p397
      %p399 = scmp.ne.s32.totalorder %s388, %s389
      %p400 = scmp.eq.s32.totalorder %s30, 0
      %p401 = por %p399, %p400
      %p402 = scmp.ne.s32.totalorder %s388, %s389
      %p403 = scmp.eq.s32.totalorder %s31, 3
      %p404 = por %p402, %p403
      %p406 = scmp.ne.s32.totalorder %s389, %s405
      %p407 = scmp.eq.s32.totalorder %s31, 0
      %p408 = por %p406, %p407
      %p409 = scmp.le.s32.totalorder 1, %s25
      %p410 = scmp.lt.s32.totalorder %s25, 5
      %p411 = pnand %p409, %p410
      %p412 = pneg %p411
      // Predicated region
      $region9: #{tpu_custom_call.1} parent=5 // pred_check
        _
      $region10: #{tpu_custom_call.1} parent=5 // pred_check_branch
        %414 = sbr.rel (%p411) target = $region12
      $region11: #{tpu_custom_call.1} parent=5 // pred_region
        %s415 = ssub.s32 %s25, 1
      $region12: #{tpu_custom_call.1} parent=5 // pred_fallthru
        _
      %p416 = scmp.lt.s32.totalorder %s25, 4
      // Predicated region
      $region13: #{tpu_custom_call.1} parent=5 // pred_check
        %p417 = pneg %p416
      $region14: #{tpu_custom_call.1} parent=5 // pred_check_branch
        %419 = sbr.rel (%p417) target = $region16
      $region15: #{tpu_custom_call.1} parent=5 // pred_region
        // Predicated region
        $region17: #{tpu_custom_call.1} parent=15 // pred_check
          %p420 = pneg %p57
        $region18: #{tpu_custom_call.1} parent=15 // pred_check_branch
          %422 = sbr.rel (%p420) target = $region20
        $region19: #{tpu_custom_call.1} parent=15 // pred_region
          %s423 = sand.u32 %s47, 1
          %s424 = scalar_lea.sflag [#allocation4], %s423
          %s425 = sand.u32 %s47, 1
          %s426 = smul.addr %s425, 8
          %s427 = scalar_lea.vmem [#allocation3], %s426
          %s429 = ssub.s32 128, 128
          %430 = vsyncadd %s424, %s429
          %s431 = smul.addr %s32, 128
          %s432 = scalar_lea.hbm %s0, %s431
          %s434 = sshll.u32 %s427, 4
          %s435 = int_to_ptr.vmem [resolvable:$true] %s434
          %437 = dma.hbm_to_vmem [thread:$0]  %s432, 128, %s435, %s424
        $region20: #{tpu_custom_call.1} parent=15 // pred_fallthru
          _
        // Predicated region
        $region21: #{tpu_custom_call.1} parent=15 // pred_check
          %p438 = pneg %p83
        $region22: #{tpu_custom_call.1} parent=15 // pred_check_branch
          %440 = sbr.rel (%p438) target = $region24
        $region23: #{tpu_custom_call.1} parent=15 // pred_region
          %p441 = scmp.lt.s32.totalorder %s33, 1
          %s442 = scalar_select %p441, %s33, 1
          %s443 = smul.addr %s442, 4
          %s444 = smul.addr %s443, 8
          %s445 = scalar_lea.vmem %s1, %s444
        $region24: #{tpu_custom_call.1} parent=15 // pred_fallthru
          _
        // Predicated region
        $region25: #{tpu_custom_call.1} parent=15 // pred_check
          %p446 = pneg %p109
        $region26: #{tpu_custom_call.1} parent=15 // pred_check_branch
          %448 = sbr.rel (%p446) target = $region28
        $region27: #{tpu_custom_call.1} parent=15 // pred_region
          %p449 = scmp.lt.s32.totalorder %s33, 1
          %s450 = scalar_select %p449, %s33, 1
          %s451 = scalar_lea.vmem %s2, %s450
        $region28: #{tpu_custom_call.1} parent=15 // pred_fallthru
          _
        // Predicated region
        $region29: #{tpu_custom_call.1} parent=15 // pred_check
          %p452 = pneg %p135
        $region30: #{tpu_custom_call.1} parent=15 // pred_check_branch
          %454 = sbr.rel (%p452) target = $region32
        $region31: #{tpu_custom_call.1} parent=15 // pred_region
          %p455 = scmp.lt.s32.totalorder %s33, 1
          %s456 = scalar_select %p455, %s33, 1
          %s457 = smul.addr %s456, 4
          %s458 = smul.addr %s457, 8
          %s459 = scalar_lea.vmem %s3, %s458
        $region32: #{tpu_custom_call.1} parent=15 // pred_fallthru
          _
        // Predicated region
        $region33: #{tpu_custom_call.1} parent=15 // pred_check
          %p460 = pneg %p161
        $region34: #{tpu_custom_call.1} parent=15 // pred_check_branch
          %462 = sbr.rel (%p460) target = $region36
        $region35: #{tpu_custom_call.1} parent=15 // pred_region
          %p463 = scmp.lt.s32.totalorder %s33, 1
          %s464 = scalar_select %p463, %s33, 1
          %s465 = scalar_lea.vmem %s4, %s464
        $region36: #{tpu_custom_call.1} parent=15 // pred_fallthru
          _
        // Predicated region
        $region37: #{tpu_custom_call.1} parent=15 // pred_check
          %p466 = pneg %p187
        $region38: #{tpu_custom_call.1} parent=15 // pred_check_branch
          %468 = sbr.rel (%p466) target = $region40
        $region39: #{tpu_custom_call.1} parent=15 // pred_region
          %p469 = scmp.lt.s32.totalorder %s33, 1
          %s470 = scalar_select %p469, %s33, 1
          %s471 = scalar_lea.vmem %s5, %s470
        $region40: #{tpu_custom_call.1} parent=15 // pred_fallthru
          _
        // Predicated region
        $region41: #{tpu_custom_call.1} parent=15 // pred_check
          %p472 = pneg %p213
        $region42: #{tpu_custom_call.1} parent=15 // pred_check_branch
          %474 = sbr.rel (%p472) target = $region44
        $region43: #{tpu_custom_call.1} parent=15 // pred_region
          %p475 = scmp.lt.s32.totalorder %s33, 1
          %s476 = scalar_select %p475, %s33, 1
          %s477 = scalar_lea.vmem %s6, %s476
        $region44: #{tpu_custom_call.1} parent=15 // pred_fallthru
          _
        // Predicated region
        $region45: #{tpu_custom_call.1} parent=15 // pred_check
          %p478 = pneg %p239
        $region46: #{tpu_custom_call.1} parent=15 // pred_check_branch
          %480 = sbr.rel (%p478) target = $region48
        $region47: #{tpu_custom_call.1} parent=15 // pred_region
          %p481 = scmp.lt.s32.totalorder %s33, 1
          %s482 = scalar_select %p481, %s33, 1
          %s483 = scalar_lea.vmem %s7, %s482
        $region48: #{tpu_custom_call.1} parent=15 // pred_fallthru
          _
        // Predicated region
        $region49: #{tpu_custom_call.1} parent=15 // pred_check
          %p484 = pneg %p265
        $region50: #{tpu_custom_call.1} parent=15 // pred_check_branch
          %486 = sbr.rel (%p484) target = $region52
        $region51: #{tpu_custom_call.1} parent=15 // pred_region
          %p487 = scmp.lt.s32.totalorder %s33, 1
          %s488 = scalar_select %p487, %s33, 1
          %s489 = scalar_lea.vmem %s8, %s488
        $region52: #{tpu_custom_call.1} parent=15 // pred_fallthru
          _
        // Predicated region
        $region53: #{tpu_custom_call.1} parent=15 // pred_check
          %p490 = pneg %p291
        $region54: #{tpu_custom_call.1} parent=15 // pred_check_branch
          %492 = sbr.rel (%p490) target = $region56
        $region55: #{tpu_custom_call.1} parent=15 // pred_region
          %p493 = scmp.lt.s32.totalorder %s33, 1
          %s494 = scalar_select %p493, %s33, 1
          %s495 = smul.addr %s494, 64
          %s496 = smul.addr %s495, 8
          %s497 = scalar_lea.vmem %s9, %s496
        $region56: #{tpu_custom_call.1} parent=15 // pred_fallthru
          _
        // Predicated region
        $region57: #{tpu_custom_call.1} parent=15 // pred_check
          %p498 = pneg %p317
        $region58: #{tpu_custom_call.1} parent=15 // pred_check_branch
          %500 = sbr.rel (%p498) target = $region60
        $region59: #{tpu_custom_call.1} parent=15 // pred_region
          %p501 = scmp.lt.s32.totalorder %s33, 1
          %s502 = scalar_select %p501, %s33, 1
          %s503 = smul.addr %s502, 16
          %s504 = scalar_lea.vmem %s10, %s503
        $region60: #{tpu_custom_call.1} parent=15 // pred_fallthru
          _
        // Predicated region
        $region61: #{tpu_custom_call.1} parent=15 // pred_check
          %p505 = pneg %p343
        $region62: #{tpu_custom_call.1} parent=15 // pred_check_branch
          %507 = sbr.rel (%p505) target = $region64
        $region63: #{tpu_custom_call.1} parent=15 // pred_region
          %p508 = scmp.lt.s32.totalorder %s33, 1
          %s509 = scalar_select %p508, %s33, 1
          %s510 = smul.addr %s509, 256
          %s511 = smul.addr %s510, 8
          %s512 = scalar_lea.vmem %s11, %s511
        $region64: #{tpu_custom_call.1} parent=15 // pred_fallthru
          _
        // Predicated region
        $region65: #{tpu_custom_call.1} parent=15 // pred_check
          %p513 = pneg %p369
        $region66: #{tpu_custom_call.1} parent=15 // pred_check_branch
          %515 = sbr.rel (%p513) target = $region68
        $region67: #{tpu_custom_call.1} parent=15 // pred_region
          %p516 = scmp.lt.s32.totalorder %s33, 1
          %s517 = scalar_select %p516, %s33, 1
          %s518 = scalar_lea.vmem %s12, %s517
        $region68: #{tpu_custom_call.1} parent=15 // pred_fallthru
          _
      $region16: #{tpu_custom_call.1} parent=5 // pred_fallthru
        _
      %p519 = scmp.le.s32.totalorder 1, %s25
      %p520 = scmp.lt.s32.totalorder %s25, 5
      %p521 = pnand %p519, %p520
      %p522 = pneg %p521
      // Predicated region
      $region69: #{tpu_custom_call.1} parent=5 // pred_check
        _
      $region70: #{tpu_custom_call.1} parent=5 // pred_check_branch
        %524 = sbr.rel (%p521) target = $region72
      $region71: #{tpu_custom_call.1} parent=5 // pred_region
        %s525 = ssub.s32 %s25, 1
        %s526 = sand.u32 %s50, 1
        %s527 = scalar_lea.sflag [#allocation4], %s526
        %s528 = sand.u32 %s50, 1
        %s529 = smul.addr %s528, 8
        %s530 = scalar_lea.vmem [#allocation3], %s529
        // Predicated region
        $region73: #{tpu_custom_call.1} parent=71 // pred_check
          %p531 = pneg %p63
        $region74: #{tpu_custom_call.1} parent=71 // pred_check_branch
          %533 = sbr.rel (%p531) target = $region76
        $region75: #{tpu_custom_call.1} parent=71 // pred_region
          %534 = dma.done %s527, 128
        $region76: #{tpu_custom_call.1} parent=71 // pred_fallthru
          _
        %s535 = sand.u32 %s50, 1
        %s536 = scalar_lea.sflag [#allocation4], %s535
        %s537 = sand.u32 %s50, 1
        %s538 = smul.addr %s537, 8
        %s539 = scalar_lea.vmem [#allocation3], %s538
        %p540 = pneg %p63
        %p541 = pneg %p60
        %p542 = scmp.lt.s32.totalorder %s35, 1
        %s543 = scalar_select %p542, %s35, 1
        %s544 = smul.addr %s543, 4
        %s545 = smul.addr %s544, 8
        %s546 = scalar_lea.vmem %s1, %s545
        %p547 = pneg %p89
        %p548 = pneg %p86
        %p549 = scmp.lt.s32.totalorder %s35, 1
        %s550 = scalar_select %p549, %s35, 1
        %s551 = scalar_lea.vmem %s2, %s550
        %p552 = pneg %p115
        %p553 = pneg %p112
        %p554 = scmp.lt.s32.totalorder %s35, 1
        %s555 = scalar_select %p554, %s35, 1
        %s556 = smul.addr %s555, 4
        %s557 = smul.addr %s556, 8
        %s558 = scalar_lea.vmem %s3, %s557
        %p559 = pneg %p141
        %p560 = pneg %p138
        %p561 = scmp.lt.s32.totalorder %s35, 1
        %s562 = scalar_select %p561, %s35, 1
        %s563 = scalar_lea.vmem %s4, %s562
        %p564 = pneg %p167
        %p565 = pneg %p164
        %p566 = scmp.lt.s32.totalorder %s35, 1
        %s567 = scalar_select %p566, %s35, 1
        %s568 = scalar_lea.vmem %s5, %s567
        %p569 = pneg %p193
        %p570 = pneg %p190
        %p571 = scmp.lt.s32.totalorder %s35, 1
        %s572 = scalar_select %p571, %s35, 1
        %s573 = scalar_lea.vmem %s6, %s572
        %p574 = pneg %p219
        %p575 = pneg %p216
        %p576 = scmp.lt.s32.totalorder %s35, 1
        %s577 = scalar_select %p576, %s35, 1
        %s578 = scalar_lea.vmem %s7, %s577
        %p579 = pneg %p245
        %p580 = pneg %p242
        %p581 = scmp.lt.s32.totalorder %s35, 1
        %s582 = scalar_select %p581, %s35, 1
        %s583 = scalar_lea.vmem %s8, %s582
        %p584 = pneg %p271
        %p585 = pneg %p268
        %p586 = scmp.lt.s32.totalorder %s35, 1
        %s587 = scalar_select %p586, %s35, 1
        %s588 = smul.addr %s587, 64
        %s589 = smul.addr %s588, 8
        %s590 = scalar_lea.vmem %s9, %s589
        %p591 = pneg %p297
        %p592 = pneg %p294
        %p593 = scmp.lt.s32.totalorder %s35, 1
        %s594 = scalar_select %p593, %s35, 1
        %s595 = smul.addr %s594, 16
        %s596 = scalar_lea.vmem %s10, %s595
        %p597 = pneg %p323
        %p598 = pneg %p320
        %p599 = scmp.lt.s32.totalorder %s35, 1
        %s600 = scalar_select %p599, %s35, 1
        %s601 = smul.addr %s600, 256
        %s602 = smul.addr %s601, 8
        %s603 = scalar_lea.vmem %s11, %s602
        %p604 = pneg %p349
        %p605 = pneg %p346
        %p606 = scmp.lt.s32.totalorder %s35, 1
        %s607 = scalar_select %p606, %s35, 1
        %s608 = scalar_lea.vmem %s12, %s607
        %p609 = pneg %p375
        %p610 = pneg %p372
        %p611 = pneg %p401
        %p612 = pneg %p398
        %s613 = sand.u32 %s388, 1
        %s614 = scalar_lea.sflag [#allocation5], %s613
        %s615 = sand.u32 %s388, 1
        %s616 = smul.addr %s615, 8
        %s617 = scalar_lea.vmem [#allocation6], %s616
        %p618 = scmp.lt.s32.totalorder %s35, 1
        %s619 = scalar_select %p618, %s35, 1
        %s620 = smul.addr %s619, 4
        %s621 = smul.addr %s620, 8
        %s622 = scalar_lea.vmem %s1, %s621
        %p623 = scmp.lt.s32.totalorder %s35, 1
        %s624 = scalar_select %p623, %s35, 1
        %s625 = scalar_lea.vmem %s2, %s624
        %p626 = scmp.lt.s32.totalorder %s35, 1
        %s627 = scalar_select %p626, %s35, 1
        %s628 = smul.addr %s627, 4
        %s629 = smul.addr %s628, 8
        %s630 = scalar_lea.vmem %s3, %s629
        %p631 = scmp.lt.s32.totalorder %s35, 1
        %s632 = scalar_select %p631, %s35, 1
        %s633 = scalar_lea.vmem %s4, %s632
        %p634 = scmp.lt.s32.totalorder %s35, 1
        %s635 = scalar_select %p634, %s35, 1
        %s636 = scalar_lea.vmem %s5, %s635
        %p637 = scmp.lt.s32.totalorder %s35, 1
        %s638 = scalar_select %p637, %s35, 1
        %s639 = scalar_lea.vmem %s6, %s638
        %p640 = scmp.lt.s32.totalorder %s35, 1
        %s641 = scalar_select %p640, %s35, 1
        %s642 = scalar_lea.vmem %s7, %s641
        %p643 = scmp.lt.s32.totalorder %s35, 1
        %s644 = scalar_select %p643, %s35, 1
        %s645 = scalar_lea.vmem %s8, %s644
        %p646 = scmp.lt.s32.totalorder %s35, 1
        %s647 = scalar_select %p646, %s35, 1
        %s648 = smul.addr %s647, 64
        %s649 = smul.addr %s648, 8
        %s650 = scalar_lea.vmem %s9, %s649
        %p651 = scmp.lt.s32.totalorder %s35, 1
        %s652 = scalar_select %p651, %s35, 1
        %s653 = smul.addr %s652, 16
        %s654 = scalar_lea.vmem %s10, %s653
        %p655 = scmp.lt.s32.totalorder %s35, 1
        %s656 = scalar_select %p655, %s35, 1
        %s657 = smul.addr %s656, 256
        %s658 = smul.addr %s657, 8
        %s659 = scalar_lea.vmem %s11, %s658
        %p660 = scmp.lt.s32.totalorder %s35, 1
        %s661 = scalar_select %p660, %s35, 1
        %s662 = scalar_lea.vmem %s12, %s661
        %p663 = scmp.eq.s32.totalorder %s35, 0
        // Predicated region
        $region77: #{tpu_custom_call.1} parent=71 // pred_check
          %p664 = pneg %p663
        $region78: #{tpu_custom_call.1} parent=71 // pred_check_branch
          %666 = sbr.rel (%p664) target = $region80
        $region79: #{tpu_custom_call.1} parent=71 // pred_region
          %v667 = vld [vmem:[%s530] sm:$0xff]
          %vm668 = vcmask 261120
          %669 = vst.msk [vmem:[%s617] sm:$0xff] %vm668, %v667
        $region80: #{tpu_custom_call.1} parent=71 // pred_fallthru
          _
        %v670 = vld [vmem:[%s617] sm:$0xff]
        %v671 = vld [vmem:[%s622] sm:$0xff]
        %v672 = vld [vmem:[%s622 + $0x8] sm:$0xff]
        %v673 = vld [vmem:[%s622 + $0x10] sm:$0xff]
        %v674 = vld [vmem:[%s622 + $0x18] sm:$0xff]
        %v675 = vld [vmem:[%s625] sm:$0x1]
        %v677 = vlaneseq
        %v678 = vshrl.u32 %v677, 7
        %v679 = vsub.s32 0, %v678
        %v680 = vrot.slane %v675, %v679
        %vm682 = vcmask 261120
        %v684 = vsel %vm682, %v670, 0
        %686 = vmatprep.subr.mxu0 0.0
        %687 = vmatpush1.msra.mxu0 %v671
        %688 = vmatprep.subr.mxu0 0.0
        %689 = vmatpush1.msra.mxu0 %v672
        %690 = vmatprep.subr.mxu0 0.0
        %691 = vmatpush1.msra.mxu0 %v673
        %692 = vmatprep.subr.mxu0 0.0
        %693 = vmatpush1.msra.mxu0 %v674
        %694 = vmatprep.subr.mxu0 0.0
        %695 = vmatpush1.msra.mxu0 0.0
        %696 = vmatprep.subr.mxu0 0.0
        %697 = vmatpush1.msra.mxu0 0.0
        %698 = vmatprep.subr.mxu0 0.0
        %699 = vmatpush1.msra.mxu0 0.0
        %700 = vmatprep.subr.mxu0 0.0
        %701 = vmatpush1.msra.mxu0 0.0
        %702 = vmatprep.subr.mxu0 0.0
        %703 = vmatpush1.msra.mxu0 0.0
        %704 = vmatprep.subr.mxu0 0.0
        %705 = vmatpush1.msra.mxu0 0.0
        %706 = vmatprep.subr.mxu0 0.0
        %707 = vmatpush1.msra.mxu0 0.0
        %708 = vmatprep.subr.mxu0 0.0
        %709 = vmatpush1.msra.mxu0 0.0
        %710 = vmatprep.subr.mxu0 0.0
        %711 = vmatpush1.msra.mxu0 0.0
        %712 = vmatprep.subr.mxu0 0.0
        %713 = vmatpush1.msra.mxu0 0.0
        %714 = vmatprep.subr.mxu0 0.0
        %715 = vmatpush1.msra.mxu0 0.0
        %716 = vmatprep.subr.mxu0 0.0
        %717 = vmatpush1.msra.mxu0 0.0
        %718 = vmatprep.subr.mxu0 0.0
        %719 = vmatpush1.msra.mxu0 0.0
        %720 = vmatprep.subr.mxu0 0.0
        %721 = vmatpush1.msra.mxu0 0.0
        %722 = vmatprep.subr.mxu0 0.0
        %723 = vmatpush1.msra.mxu0 0.0
        %724 = vmatprep.subr.mxu0 0.0
        %725 = vmatpush1.msra.mxu0 0.0
        %726 = vmatprep.subr.mxu0 0.0
        %727 = vmatpush1.msra.mxu0 0.0
        %728 = vmatprep.subr.mxu0 0.0
        %729 = vmatpush1.msra.mxu0 0.0
        %730 = vmatprep.subr.mxu0 0.0
        %731 = vmatpush1.msra.mxu0 0.0
        %732 = vmatprep.subr.mxu0 0.0
        %733 = vmatpush1.msra.mxu0 0.0
        %734 = vmatprep.subr.mxu0 0.0
        %735 = vmatpush1.msra.mxu0 0.0
        %736 = vmatprep.subr.mxu0 0.0
        %737 = vmatpush1.msra.mxu0 0.0
        %738 = vmatprep.subr.mxu0 0.0
        %739 = vmatpush1.msra.mxu0 0.0
        %740 = vmatprep.subr.mxu0 0.0
        %741 = vmatpush1.msra.mxu0 0.0
        %742 = vmatprep.subr.mxu0 0.0
        %743 = vmatpush1.msra.mxu0 0.0
        %744 = vmatprep.subr.mxu0 0.0
        %745 = vmatpush1.msra.mxu0 0.0
        %746 = vmatprep.subr.mxu0 0.0
        %747 = vmatpush1.msra.mxu0 0.0
        %748 = vmatprep.subr.mxu0 0.0
        %749 = vmatpush1.msra.mxu0 0.0
        %750 = vmatprep.mubr.f32.mxu0 0.0
        %751 = vmatmul.mubr.f32.gmra.mrb[0].mxu0 %v684
        %v752 = vpop.f32.mrb[0].mxu0
        %v753 = vadd.f32 %v680, %v752
        %v754 = vpop.f32.mrb[0].mxu0
        %755 = vdwg.mxu0
        %v756 = vmul.f32 %v753, 0.35355338
        %758 = vrot.lane.b32.xlu0 %v753, 96
        %v759 = vpop.permute.xlu0 %758
        %vm760 = vcmask 64512
        %v762 = vsel %vm760, %v756, 0
        %v764 = vsel %vm760, %v759, 0
        %766 = vmatprep.subr.mxu0 0.0
        %767 = vmatpush1.xpose.msra.mxu0 %v764
        %768 = vmatprep.subr.mxu0 0.0
        %769 = vmatpush1.xpose.msra.mxu0 0.0
        %770 = vmatprep.subr.mxu0 0.0
        %771 = vmatpush1.xpose.msra.mxu0 0.0
        %772 = vmatprep.subr.mxu0 0.0
        %773 = vmatpush1.xpose.msra.mxu0 0.0
        %774 = vmatprep.subr.mxu0 0.0
        %775 = vmatpush1.xpose.msra.mxu0 0.0
        %776 = vmatprep.subr.mxu0 0.0
        %777 = vmatpush1.xpose.msra.mxu0 0.0
        %778 = vmatprep.subr.mxu0 0.0
        %779 = vmatpush1.xpose.msra.mxu0 0.0
        %780 = vmatprep.subr.mxu0 0.0
        %781 = vmatpush1.xpose.msra.mxu0 0.0
        %782 = vmatprep.subr.mxu0 0.0
        %783 = vmatpush1.xpose.msra.mxu0 0.0
        %784 = vmatprep.subr.mxu0 0.0
        %785 = vmatpush1.xpose.msra.mxu0 0.0
        %786 = vmatprep.subr.mxu0 0.0
        %787 = vmatpush1.xpose.msra.mxu0 0.0
        %788 = vmatprep.subr.mxu0 0.0
        %789 = vmatpush1.xpose.msra.mxu0 0.0
        %790 = vmatprep.subr.mxu0 0.0
        %791 = vmatpush1.xpose.msra.mxu0 0.0
        %792 = vmatprep.subr.mxu0 0.0
        %793 = vmatpush1.xpose.msra.mxu0 0.0
        %794 = vmatprep.subr.mxu0 0.0
        %795 = vmatpush1.xpose.msra.mxu0 0.0
        %796 = vmatprep.subr.mxu0 0.0
        %797 = vmatpush1.xpose.msra.mxu0 0.0
        %798 = vmatprep.subr.mxu0 0.0
        %799 = vmatpush1.xpose.msra.mxu0 0.0
        %800 = vmatprep.subr.mxu0 0.0
        %801 = vmatpush1.xpose.msra.mxu0 0.0
        %802 = vmatprep.subr.mxu0 0.0
        %803 = vmatpush1.xpose.msra.mxu0 0.0
        %804 = vmatprep.subr.mxu0 0.0
        %805 = vmatpush1.xpose.msra.mxu0 0.0
        %806 = vmatprep.subr.mxu0 0.0
        %807 = vmatpush1.xpose.msra.mxu0 0.0
        %808 = vmatprep.subr.mxu0 0.0
        %809 = vmatpush1.xpose.msra.mxu0 0.0
        %810 = vmatprep.subr.mxu0 0.0
        %811 = vmatpush1.xpose.msra.mxu0 0.0
        %812 = vmatprep.subr.mxu0 0.0
        %813 = vmatpush1.xpose.msra.mxu0 0.0
        %814 = vmatprep.subr.mxu0 0.0
        %815 = vmatpush1.xpose.msra.mxu0 0.0
        %816 = vmatprep.subr.mxu0 0.0
        %817 = vmatpush1.xpose.msra.mxu0 0.0
        %818 = vmatprep.subr.mxu0 0.0
        %819 = vmatpush1.xpose.msra.mxu0 0.0
        %820 = vmatprep.subr.mxu0 0.0
        %821 = vmatpush1.xpose.msra.mxu0 0.0
        %822 = vmatprep.subr.mxu0 0.0
        %823 = vmatpush1.xpose.msra.mxu0 0.0
        %824 = vmatprep.subr.mxu0 0.0
        %825 = vmatpush1.xpose.msra.mxu0 0.0
        %826 = vmatprep.subr.mxu0 0.0
        %827 = vmatpush1.xpose.msra.mxu0 0.0
        %828 = vmatprep.subr.mxu0 0.0
        %829 = vmatpush1.xpose.msra.mxu0 0.0
        %830 = vmatprep.mubr.f32.mxu0 0.0
        %831 = vmatmul.mubr.f32.gmra.mrb[0].mxu0 %v762
        %v832 = vpop.f32.mrb[0].mxu0
        %v833 = vadd.f32 0.0, %v832
        %v834 = vpop.f32.mrb[0].mxu0
        %835 = vdwg.mxu0
        %v836 = vsel %vm760, %v833, -inf
        %837 = vmax.xlane.f32.xlu0 %v836
        %v838 = vpop.xlane.xlu0 %837
        %v839 = vsub.f32 %v833, %v838
        %v840 = vmul.f32 %v839, 1.442695
        %v841 = vpow.pop %v840
        %v842 = vsel %vm760, %v841, 0.0
        %843 = vadd.xlane.f32.xlu0 %v842
        %v844 = vpop.xlane.xlu0 %843
        %v845 = vrcp.pop %v844
        %v846 = vmul.f32 %v841, %v845
        %847 = vrot.lane.b32.xlu0 %v753, 64
        %v848 = vpop.permute.xlu0 %847
        %v851 = vsel %vm760, %v846, 0
        %853 = vmatprep.subr.mxu0 0.0
        %854 = vmatpush1.msra.mxu0 %v848
        %855 = vmatprep.subr.mxu0 0.0
        %856 = vmatpush1.msra.mxu0 0.0
        %857 = vmatprep.subr.mxu0 0.0
        %858 = vmatpush1.msra.mxu0 0.0
        %859 = vmatprep.subr.mxu0 0.0
        %860 = vmatpush1.msra.mxu0 0.0
        %861 = vmatprep.subr.mxu0 0.0
        %862 = vmatpush1.msra.mxu0 0.0
        %863 = vmatprep.subr.mxu0 0.0
        %864 = vmatpush1.msra.mxu0 0.0
        %865 = vmatprep.subr.mxu0 0.0
        %866 = vmatpush1.msra.mxu0 0.0
        %867 = vmatprep.subr.mxu0 0.0
        %868 = vmatpush1.msra.mxu0 0.0
        %869 = vmatprep.subr.mxu0 0.0
        %870 = vmatpush1.msra.mxu0 0.0
        %871 = vmatprep.subr.mxu0 0.0
        %872 = vmatpush1.msra.mxu0 0.0
        %873 = vmatprep.subr.mxu0 0.0
        %874 = vmatpush1.msra.mxu0 0.0
        %875 = vmatprep.subr.mxu0 0.0
        %876 = vmatpush1.msra.mxu0 0.0
        %877 = vmatprep.subr.mxu0 0.0
        %878 = vmatpush1.msra.mxu0 0.0
        %879 = vmatprep.subr.mxu0 0.0
        %880 = vmatpush1.msra.mxu0 0.0
        %881 = vmatprep.subr.mxu0 0.0
        %882 = vmatpush1.msra.mxu0 0.0
        %883 = vmatprep.subr.mxu0 0.0
        %884 = vmatpush1.msra.mxu0 0.0
        %885 = vmatprep.subr.mxu0 0.0
        %886 = vmatpush1.msra.mxu0 0.0
        %887 = vmatprep.subr.mxu0 0.0
        %888 = vmatpush1.msra.mxu0 0.0
        %889 = vmatprep.subr.mxu0 0.0
        %890 = vmatpush1.msra.mxu0 0.0
        %891 = vmatprep.subr.mxu0 0.0
        %892 = vmatpush1.msra.mxu0 0.0
        %893 = vmatprep.subr.mxu0 0.0
        %894 = vmatpush1.msra.mxu0 0.0
        %895 = vmatprep.subr.mxu0 0.0
        %896 = vmatpush1.msra.mxu0 0.0
        %897 = vmatprep.subr.mxu0 0.0
        %898 = vmatpush1.msra.mxu0 0.0
        %899 = vmatprep.subr.mxu0 0.0
        %900 = vmatpush1.msra.mxu0 0.0
        %901 = vmatprep.subr.mxu0 0.0
        %902 = vmatpush1.msra.mxu0 0.0
        %903 = vmatprep.subr.mxu0 0.0
        %904 = vmatpush1.msra.mxu0 0.0
        %905 = vmatprep.subr.mxu0 0.0
        %906 = vmatpush1.msra.mxu0 0.0
        %907 = vmatprep.subr.mxu0 0.0
        %908 = vmatpush1.msra.mxu0 0.0
        %909 = vmatprep.subr.mxu0 0.0
        %910 = vmatpush1.msra.mxu0 0.0
        %911 = vmatprep.subr.mxu0 0.0
        %912 = vmatpush1.msra.mxu0 0.0
        %913 = vmatprep.subr.mxu0 0.0
        %914 = vmatpush1.msra.mxu0 0.0
        %915 = vmatprep.subr.mxu0 0.0
        %916 = vmatpush1.msra.mxu0 0.0
        %917 = vmatprep.mubr.f32.mxu0 0.0
        %918 = vmatmul.mubr.f32.gmra.mrb[0].mxu0 %v851
        %v919 = vpop.f32.mrb[0].mxu0
        %v920 = vadd.f32 0.0, %v919
        %v921 = vpop.f32.mrb[0].mxu0
        %922 = vdwg.mxu0
        %923 = vst.msk [vmem:[#allocation2] sm:$0xff] %vm760, %v920
        %924 = vrot.lane.b32.xlu0 %v756, 120
        %v925 = vpop.permute.xlu0 %924
        %926 = vrot.lane.b32.xlu0 %v753, 88
        %v927 = vpop.permute.xlu0 %926
        %v928 = vsel %vm760, %v925, 0
        %v930 = vsel %vm760, %v927, 0
        %932 = vmatprep.subr.mxu0 0.0
        %933 = vmatpush1.xpose.msra.mxu0 %v930
        %934 = vmatprep.subr.mxu0 0.0
        %935 = vmatpush1.xpose.msra.mxu0 0.0
        %936 = vmatprep.subr.mxu0 0.0
        %937 = vmatpush1.xpose.msra.mxu0 0.0
        %938 = vmatprep.subr.mxu0 0.0
        %939 = vmatpush1.xpose.msra.mxu0 0.0
        %940 = vmatprep.subr.mxu0 0.0
        %941 = vmatpush1.xpose.msra.mxu0 0.0
        %942 = vmatprep.subr.mxu0 0.0
        %943 = vmatpush1.xpose.msra.mxu0 0.0
        %944 = vmatprep.subr.mxu0 0.0
        %945 = vmatpush1.xpose.msra.mxu0 0.0
        %946 = vmatprep.subr.mxu0 0.0
        %947 = vmatpush1.xpose.msra.mxu0 0.0
        %948 = vmatprep.subr.mxu0 0.0
        %949 = vmatpush1.xpose.msra.mxu0 0.0
        %950 = vmatprep.subr.mxu0 0.0
        %951 = vmatpush1.xpose.msra.mxu0 0.0
        %952 = vmatprep.subr.mxu0 0.0
        %953 = vmatpush1.xpose.msra.mxu0 0.0
        %954 = vmatprep.subr.mxu0 0.0
        %955 = vmatpush1.xpose.msra.mxu0 0.0
        %956 = vmatprep.subr.mxu0 0.0
        %957 = vmatpush1.xpose.msra.mxu0 0.0
        %958 = vmatprep.subr.mxu0 0.0
        %959 = vmatpush1.xpose.msra.mxu0 0.0
        %960 = vmatprep.subr.mxu0 0.0
        %961 = vmatpush1.xpose.msra.mxu0 0.0
        %962 = vmatprep.subr.mxu0 0.0
        %963 = vmatpush1.xpose.msra.mxu0 0.0
        %964 = vmatprep.subr.mxu0 0.0
        %965 = vmatpush1.xpose.msra.mxu0 0.0
        %966 = vmatprep.subr.mxu0 0.0
        %967 = vmatpush1.xpose.msra.mxu0 0.0
        %968 = vmatprep.subr.mxu0 0.0
        %969 = vmatpush1.xpose.msra.mxu0 0.0
        %970 = vmatprep.subr.mxu0 0.0
        %971 = vmatpush1.xpose.msra.mxu0 0.0
        %972 = vmatprep.subr.mxu0 0.0
        %973 = vmatpush1.xpose.msra.mxu0 0.0
        %974 = vmatprep.subr.mxu0 0.0
        %975 = vmatpush1.xpose.msra.mxu0 0.0
        %976 = vmatprep.subr.mxu0 0.0
        %977 = vmatpush1.xpose.msra.mxu0 0.0
        %978 = vmatprep.subr.mxu0 0.0
        %979 = vmatpush1.xpose.msra.mxu0 0.0
        %980 = vmatprep.subr.mxu0 0.0
        %981 = vmatpush1.xpose.msra.mxu0 0.0
        %982 = vmatprep.subr.mxu0 0.0
        %983 = vmatpush1.xpose.msra.mxu0 0.0
        %984 = vmatprep.subr.mxu0 0.0
        %985 = vmatpush1.xpose.msra.mxu0 0.0
        %986 = vmatprep.subr.mxu0 0.0
        %987 = vmatpush1.xpose.msra.mxu0 0.0
        %988 = vmatprep.subr.mxu0 0.0
        %989 = vmatpush1.xpose.msra.mxu0 0.0
        %990 = vmatprep.subr.mxu0 0.0
        %991 = vmatpush1.xpose.msra.mxu0 0.0
        %992 = vmatprep.subr.mxu0 0.0
        %993 = vmatpush1.xpose.msra.mxu0 0.0
        %994 = vmatprep.subr.mxu0 0.0
        %995 = vmatpush1.xpose.msra.mxu0 0.0
        %996 = vmatprep.mubr.f32.mxu0 0.0
        %997 = vmatmul.mubr.f32.gmra.mrb[0].mxu0 %v928
        %v998 = vpop.f32.mrb[0].mxu0
        %v999 = vadd.f32 0.0, %v998
        %v1000 = vpop.f32.mrb[0].mxu0
        %1001 = vdwg.mxu0
        %v1002 = vsel %vm760, %v999, -inf
        %1003 = vmax.xlane.f32.xlu0 %v1002
        %v1004 = vpop.xlane.xlu0 %1003
        %v1005 = vsub.f32 %v999, %v1004
        %v1006 = vmul.f32 %v1005, 1.442695
        %v1007 = vpow.pop %v1006
        %v1008 = vsel %vm760, %v1007, 0.0
        %1009 = vadd.xlane.f32.xlu0 %v1008
        %v1010 = vpop.xlane.xlu0 %1009
        %v1011 = vrcp.pop %v1010
        %v1012 = vmul.f32 %v1007, %v1011
        %1013 = vrot.lane.b32.xlu0 %v753, 56
        %v1014 = vpop.permute.xlu0 %1013
        %v1017 = vsel %vm760, %v1012, 0
        %1019 = vmatprep.subr.mxu0 0.0
        %1020 = vmatpush1.msra.mxu0 %v1014
        %1021 = vmatprep.subr.mxu0 0.0
        %1022 = vmatpush1.msra.mxu0 0.0
        %1023 = vmatprep.subr.mxu0 0.0
        %1024 = vmatpush1.msra.mxu0 0.0
        %1025 = vmatprep.subr.mxu0 0.0
        %1026 = vmatpush1.msra.mxu0 0.0
        %1027 = vmatprep.subr.mxu0 0.0
        %1028 = vmatpush1.msra.mxu0 0.0
        %1029 = vmatprep.subr.mxu0 0.0
        %1030 = vmatpush1.msra.mxu0 0.0
        %1031 = vmatprep.subr.mxu0 0.0
        %1032 = vmatpush1.msra.mxu0 0.0
        %1033 = vmatprep.subr.mxu0 0.0
        %1034 = vmatpush1.msra.mxu0 0.0
        %1035 = vmatprep.subr.mxu0 0.0
        %1036 = vmatpush1.msra.mxu0 0.0
        %1037 = vmatprep.subr.mxu0 0.0
        %1038 = vmatpush1.msra.mxu0 0.0
        %1039 = vmatprep.subr.mxu0 0.0
        %1040 = vmatpush1.msra.mxu0 0.0
        %1041 = vmatprep.subr.mxu0 0.0
        %1042 = vmatpush1.msra.mxu0 0.0
        %1043 = vmatprep.subr.mxu0 0.0
        %1044 = vmatpush1.msra.mxu0 0.0
        %1045 = vmatprep.subr.mxu0 0.0
        %1046 = vmatpush1.msra.mxu0 0.0
        %1047 = vmatprep.subr.mxu0 0.0
        %1048 = vmatpush1.msra.mxu0 0.0
        %1049 = vmatprep.subr.mxu0 0.0
        %1050 = vmatpush1.msra.mxu0 0.0
        %1051 = vmatprep.subr.mxu0 0.0
        %1052 = vmatpush1.msra.mxu0 0.0
        %1053 = vmatprep.subr.mxu0 0.0
        %1054 = vmatpush1.msra.mxu0 0.0
        %1055 = vmatprep.subr.mxu0 0.0
        %1056 = vmatpush1.msra.mxu0 0.0
        %1057 = vmatprep.subr.mxu0 0.0
        %1058 = vmatpush1.msra.mxu0 0.0
        %1059 = vmatprep.subr.mxu0 0.0
        %1060 = vmatpush1.msra.mxu0 0.0
        %1061 = vmatprep.subr.mxu0 0.0
        %1062 = vmatpush1.msra.mxu0 0.0
        %1063 = vmatprep.subr.mxu0 0.0
        %1064 = vmatpush1.msra.mxu0 0.0
        %1065 = vmatprep.subr.mxu0 0.0
        %1066 = vmatpush1.msra.mxu0 0.0
        %1067 = vmatprep.subr.mxu0 0.0
        %1068 = vmatpush1.msra.mxu0 0.0
        %1069 = vmatprep.subr.mxu0 0.0
        %1070 = vmatpush1.msra.mxu0 0.0
        %1071 = vmatprep.subr.mxu0 0.0
        %1072 = vmatpush1.msra.mxu0 0.0
        %1073 = vmatprep.subr.mxu0 0.0
        %1074 = vmatpush1.msra.mxu0 0.0
        %1075 = vmatprep.subr.mxu0 0.0
        %1076 = vmatpush1.msra.mxu0 0.0
        %1077 = vmatprep.subr.mxu0 0.0
        %1078 = vmatpush1.msra.mxu0 0.0
        %1079 = vmatprep.subr.mxu0 0.0
        %1080 = vmatpush1.msra.mxu0 0.0
        %1081 = vmatprep.subr.mxu0 0.0
        %1082 = vmatpush1.msra.mxu0 0.0
        %1083 = vmatprep.mubr.f32.mxu0 0.0
        %1084 = vmatmul.mubr.f32.gmra.mrb[0].mxu0 %v1017
        %v1085 = vpop.f32.mrb[0].mxu0
        %v1086 = vadd.f32 0.0, %v1085
        %v1087 = vpop.f32.mrb[0].mxu0
        %1088 = vdwg.mxu0
        %1090 = vrot.lane.b32.xlu0 %v1086, 8
        %v1091 = vpop.permute.xlu0 %1090
        %vm1093 = vcmask 130112
        %1094 = vst.msk [vmem:[#allocation2] sm:$0xff] %vm1093, %v1091
        %1095 = vrot.lane.b32.xlu0 %v756, 112
        %v1096 = vpop.permute.xlu0 %1095
        %1097 = vrot.lane.b32.xlu0 %v753, 80
        %v1098 = vpop.permute.xlu0 %1097
        %v1099 = vsel %vm760, %v1096, 0
        %v1101 = vsel %vm760, %v1098, 0
        %1103 = vmatprep.subr.mxu0 0.0
        %1104 = vmatpush1.xpose.msra.mxu0 %v1101
        %1105 = vmatprep.subr.mxu0 0.0
        %1106 = vmatpush1.xpose.msra.mxu0 0.0
        %1107 = vmatprep.subr.mxu0 0.0
        %1108 = vmatpush1.xpose.msra.mxu0 0.0
        %1109 = vmatprep.subr.mxu0 0.0
        %1110 = vmatpush1.xpose.msra.mxu0 0.0
        %1111 = vmatprep.subr.mxu0 0.0
        %1112 = vmatpush1.xpose.msra.mxu0 0.0
        %1113 = vmatprep.subr.mxu0 0.0
        %1114 = vmatpush1.xpose.msra.mxu0 0.0
        %1115 = vmatprep.subr.mxu0 0.0
        %1116 = vmatpush1.xpose.msra.mxu0 0.0
        %1117 = vmatprep.subr.mxu0 0.0
        %1118 = vmatpush1.xpose.msra.mxu0 0.0
        %1119 = vmatprep.subr.mxu0 0.0
        %1120 = vmatpush1.xpose.msra.mxu0 0.0
        %1121 = vmatprep.subr.mxu0 0.0
        %1122 = vmatpush1.xpose.msra.mxu0 0.0
        %1123 = vmatprep.subr.mxu0 0.0
        %1124 = vmatpush1.xpose.msra.mxu0 0.0
        %1125 = vmatprep.subr.mxu0 0.0
        %1126 = vmatpush1.xpose.msra.mxu0 0.0
        %1127 = vmatprep.subr.mxu0 0.0
        %1128 = vmatpush1.xpose.msra.mxu0 0.0
        %1129 = vmatprep.subr.mxu0 0.0
        %1130 = vmatpush1.xpose.msra.mxu0 0.0
        %1131 = vmatprep.subr.mxu0 0.0
        %1132 = vmatpush1.xpose.msra.mxu0 0.0
        %1133 = vmatprep.subr.mxu0 0.0
        %1134 = vmatpush1.xpose.msra.mxu0 0.0
        %1135 = vmatprep.subr.mxu0 0.0
        %1136 = vmatpush1.xpose.msra.mxu0 0.0
        %1137 = vmatprep.subr.mxu0 0.0
        %1138 = vmatpush1.xpose.msra.mxu0 0.0
        %1139 = vmatprep.subr.mxu0 0.0
        %1140 = vmatpush1.xpose.msra.mxu0 0.0
        %1141 = vmatprep.subr.mxu0 0.0
        %1142 = vmatpush1.xpose.msra.mxu0 0.0
        %1143 = vmatprep.subr.mxu0 0.0
        %1144 = vmatpush1.xpose.msra.mxu0 0.0
        %1145 = vmatprep.subr.mxu0 0.0
        %1146 = vmatpush1.xpose.msra.mxu0 0.0
        %1147 = vmatprep.subr.mxu0 0.0
        %1148 = vmatpush1.xpose.msra.mxu0 0.0
        %1149 = vmatprep.subr.mxu0 0.0
        %1150 = vmatpush1.xpose.msra.mxu0 0.0
        %1151 = vmatprep.subr.mxu0 0.0
        %1152 = vmatpush1.xpose.msra.mxu0 0.0
        %1153 = vmatprep.subr.mxu0 0.0
        %1154 = vmatpush1.xpose.msra.mxu0 0.0
        %1155 = vmatprep.subr.mxu0 0.0
        %1156 = vmatpush1.xpose.msra.mxu0 0.0
        %1157 = vmatprep.subr.mxu0 0.0
        %1158 = vmatpush1.xpose.msra.mxu0 0.0
        %1159 = vmatprep.subr.mxu0 0.0
        %1160 = vmatpush1.xpose.msra.mxu0 0.0
        %1161 = vmatprep.subr.mxu0 0.0
        %1162 = vmatpush1.xpose.msra.mxu0 0.0
        %1163 = vmatprep.subr.mxu0 0.0
        %1164 = vmatpush1.xpose.msra.mxu0 0.0
        %1165 = vmatprep.subr.mxu0 0.0
        %1166 = vmatpush1.xpose.msra.mxu0 0.0
        %1167 = vmatprep.mubr.f32.mxu0 0.0
        %1168 = vmatmul.mubr.f32.gmra.mrb[0].mxu0 %v1099
        %v1169 = vpop.f32.mrb[0].mxu0
        %v1170 = vadd.f32 0.0, %v1169
        %v1171 = vpop.f32.mrb[0].mxu0
        %1172 = vdwg.mxu0
        %v1173 = vsel %vm760, %v1170, -inf
        %1174 = vmax.xlane.f32.xlu0 %v1173
        %v1175 = vpop.xlane.xlu0 %1174
        %v1176 = vsub.f32 %v1170, %v1175
        %v1177 = vmul.f32 %v1176, 1.442695
        %v1178 = vpow.pop %v1177
        %v1179 = vsel %vm760, %v1178, 0.0
        %1180 = vadd.xlane.f32.xlu0 %v1179
        %v1181 = vpop.xlane.xlu0 %1180
        %v1182 = vrcp.pop %v1181
        %v1183 = vmul.f32 %v1178, %v1182
        %1184 = vrot.lane.b32.xlu0 %v753, 48
        %v1185 = vpop.permute.xlu0 %1184
        %v1188 = vsel %vm760, %v1183, 0
        %1190 = vmatprep.subr.mxu0 0.0
        %1191 = vmatpush1.msra.mxu0 %v1185
        %1192 = vmatprep.subr.mxu0 0.0
        %1193 = vmatpush1.msra.mxu0 0.0
        %1194 = vmatprep.subr.mxu0 0.0
        %1195 = vmatpush1.msra.mxu0 0.0
        %1196 = vmatprep.subr.mxu0 0.0
        %1197 = vmatpush1.msra.mxu0 0.0
        %1198 = vmatprep.subr.mxu0 0.0
        %1199 = vmatpush1.msra.mxu0 0.0
        %1200 = vmatprep.subr.mxu0 0.0
        %1201 = vmatpush1.msra.mxu0 0.0
        %1202 = vmatprep.subr.mxu0 0.0
        %1203 = vmatpush1.msra.mxu0 0.0
        %1204 = vmatprep.subr.mxu0 0.0
        %1205 = vmatpush1.msra.mxu0 0.0
        %1206 = vmatprep.subr.mxu0 0.0
        %1207 = vmatpush1.msra.mxu0 0.0
        %1208 = vmatprep.subr.mxu0 0.0
        %1209 = vmatpush1.msra.mxu0 0.0
        %1210 = vmatprep.subr.mxu0 0.0
        %1211 = vmatpush1.msra.mxu0 0.0
        %1212 = vmatprep.subr.mxu0 0.0
        %1213 = vmatpush1.msra.mxu0 0.0
        %1214 = vmatprep.subr.mxu0 0.0
        %1215 = vmatpush1.msra.mxu0 0.0
        %1216 = vmatprep.subr.mxu0 0.0
        %1217 = vmatpush1.msra.mxu0 0.0
        %1218 = vmatprep.subr.mxu0 0.0
        %1219 = vmatpush1.msra.mxu0 0.0
        %1220 = vmatprep.subr.mxu0 0.0
        %1221 = vmatpush1.msra.mxu0 0.0
        %1222 = vmatprep.subr.mxu0 0.0
        %1223 = vmatpush1.msra.mxu0 0.0
        %1224 = vmatprep.subr.mxu0 0.0
        %1225 = vmatpush1.msra.mxu0 0.0
        %1226 = vmatprep.subr.mxu0 0.0
        %1227 = vmatpush1.msra.mxu0 0.0
        %1228 = vmatprep.subr.mxu0 0.0
        %1229 = vmatpush1.msra.mxu0 0.0
        %1230 = vmatprep.subr.mxu0 0.0
        %1231 = vmatpush1.msra.mxu0 0.0
        %1232 = vmatprep.subr.mxu0 0.0
        %1233 = vmatpush1.msra.mxu0 0.0
        %1234 = vmatprep.subr.mxu0 0.0
        %1235 = vmatpush1.msra.mxu0 0.0
        %1236 = vmatprep.subr.mxu0 0.0
        %1237 = vmatpush1.msra.mxu0 0.0
        %1238 = vmatprep.subr.mxu0 0.0
        %1239 = vmatpush1.msra.mxu0 0.0
        %1240 = vmatprep.subr.mxu0 0.0
        %1241 = vmatpush1.msra.mxu0 0.0
        %1242 = vmatprep.subr.mxu0 0.0
        %1243 = vmatpush1.msra.mxu0 0.0
        %1244 = vmatprep.subr.mxu0 0.0
        %1245 = vmatpush1.msra.mxu0 0.0
        %1246 = vmatprep.subr.mxu0 0.0
        %1247 = vmatpush1.msra.mxu0 0.0
        %1248 = vmatprep.subr.mxu0 0.0
        %1249 = vmatpush1.msra.mxu0 0.0
        %1250 = vmatprep.subr.mxu0 0.0
        %1251 = vmatpush1.msra.mxu0 0.0
        %1252 = vmatprep.subr.mxu0 0.0
        %1253 = vmatpush1.msra.mxu0 0.0
        %1254 = vmatprep.mubr.f32.mxu0 0.0
        %1255 = vmatmul.mubr.f32.gmra.mrb[0].mxu0 %v1188
        %v1256 = vpop.f32.mrb[0].mxu0
        %v1257 = vadd.f32 0.0, %v1256
        %v1258 = vpop.f32.mrb[0].mxu0
        %1259 = vdwg.mxu0
        %1261 = vrot.lane.b32.xlu0 %v1257, 16
        %v1262 = vpop.permute.xlu0 %1261
        %vm1264 = vcmask 195712
        %1265 = vst.msk [vmem:[#allocation2] sm:$0xff] %vm1264, %v1262
        %1266 = vrot.lane.b32.xlu0 %v756, 104
        %v1267 = vpop.permute.xlu0 %1266
        %1268 = vrot.lane.b32.xlu0 %v753, 72
        %v1269 = vpop.permute.xlu0 %1268
        %v1270 = vsel %vm760, %v1267, 0
        %v1272 = vsel %vm760, %v1269, 0
        %1274 = vmatprep.subr.mxu0 0.0
        %1275 = vmatpush1.xpose.msra.mxu0 %v1272
        %1276 = vmatprep.subr.mxu0 0.0
        %1277 = vmatpush1.xpose.msra.mxu0 0.0
        %1278 = vmatprep.subr.mxu0 0.0
        %1279 = vmatpush1.xpose.msra.mxu0 0.0
        %1280 = vmatprep.subr.mxu0 0.0
        %1281 = vmatpush1.xpose.msra.mxu0 0.0
        %1282 = vmatprep.subr.mxu0 0.0
        %1283 = vmatpush1.xpose.msra.mxu0 0.0
        %1284 = vmatprep.subr.mxu0 0.0
        %1285 = vmatpush1.xpose.msra.mxu0 0.0
        %1286 = vmatprep.subr.mxu0 0.0
        %1287 = vmatpush1.xpose.msra.mxu0 0.0
        %1288 = vmatprep.subr.mxu0 0.0
        %1289 = vmatpush1.xpose.msra.mxu0 0.0
        %1290 = vmatprep.subr.mxu0 0.0
        %1291 = vmatpush1.xpose.msra.mxu0 0.0
        %1292 = vmatprep.subr.mxu0 0.0
        %1293 = vmatpush1.xpose.msra.mxu0 0.0
        %1294 = vmatprep.subr.mxu0 0.0
        %1295 = vmatpush1.xpose.msra.mxu0 0.0
        %1296 = vmatprep.subr.mxu0 0.0
        %1297 = vmatpush1.xpose.msra.mxu0 0.0
        %1298 = vmatprep.subr.mxu0 0.0
        %1299 = vmatpush1.xpose.msra.mxu0 0.0
        %1300 = vmatprep.subr.mxu0 0.0
        %1301 = vmatpush1.xpose.msra.mxu0 0.0
        %1302 = vmatprep.subr.mxu0 0.0
        %1303 = vmatpush1.xpose.msra.mxu0 0.0
        %1304 = vmatprep.subr.mxu0 0.0
        %1305 = vmatpush1.xpose.msra.mxu0 0.0
        %1306 = vmatprep.subr.mxu0 0.0
        %1307 = vmatpush1.xpose.msra.mxu0 0.0
        %1308 = vmatprep.subr.mxu0 0.0
        %1309 = vmatpush1.xpose.msra.mxu0 0.0
        %1310 = vmatprep.subr.mxu0 0.0
        %1311 = vmatpush1.xpose.msra.mxu0 0.0
        %1312 = vmatprep.subr.mxu0 0.0
        %1313 = vmatpush1.xpose.msra.mxu0 0.0
        %1314 = vmatprep.subr.mxu0 0.0
        %1315 = vmatpush1.xpose.msra.mxu0 0.0
        %1316 = vmatprep.subr.mxu0 0.0
        %1317 = vmatpush1.xpose.msra.mxu0 0.0
        %1318 = vmatprep.subr.mxu0 0.0
        %1319 = vmatpush1.xpose.msra.mxu0 0.0
        %1320 = vmatprep.subr.mxu0 0.0
        %1321 = vmatpush1.xpose.msra.mxu0 0.0
        %1322 = vmatprep.subr.mxu0 0.0
        %1323 = vmatpush1.xpose.msra.mxu0 0.0
        %1324 = vmatprep.subr.mxu0 0.0
        %1325 = vmatpush1.xpose.msra.mxu0 0.0
        %1326 = vmatprep.subr.mxu0 0.0
        %1327 = vmatpush1.xpose.msra.mxu0 0.0
        %1328 = vmatprep.subr.mxu0 0.0
        %1329 = vmatpush1.xpose.msra.mxu0 0.0
        %1330 = vmatprep.subr.mxu0 0.0
        %1331 = vmatpush1.xpose.msra.mxu0 0.0
        %1332 = vmatprep.subr.mxu0 0.0
        %1333 = vmatpush1.xpose.msra.mxu0 0.0
        %1334 = vmatprep.subr.mxu0 0.0
        %1335 = vmatpush1.xpose.msra.mxu0 0.0
        %1336 = vmatprep.subr.mxu0 0.0
        %1337 = vmatpush1.xpose.msra.mxu0 0.0
        %1338 = vmatprep.mubr.f32.mxu0 0.0
        %1339 = vmatmul.mubr.f32.gmra.mrb[0].mxu0 %v1270
        %v1340 = vpop.f32.mrb[0].mxu0
        %v1341 = vadd.f32 0.0, %v1340
        %v1342 = vpop.f32.mrb[0].mxu0
        %1343 = vdwg.mxu0
        %v1344 = vsel %vm760, %v1341, -inf
        %1345 = vmax.xlane.f32.xlu0 %v1344
        %v1346 = vpop.xlane.xlu0 %1345
        %v1347 = vsub.f32 %v1341, %v1346
        %v1348 = vmul.f32 %v1347, 1.442695
        %v1349 = vpow.pop %v1348
        %v1350 = vsel %vm760, %v1349, 0.0
        %1351 = vadd.xlane.f32.xlu0 %v1350
        %v1352 = vpop.xlane.xlu0 %1351
        %v1353 = vrcp.pop %v1352
        %v1354 = vmul.f32 %v1349, %v1353
        %1355 = vrot.lane.b32.xlu0 %v753, 40
        %v1356 = vpop.permute.xlu0 %1355
        %v1359 = vsel %vm760, %v1354, 0
        %1361 = vmatprep.subr.mxu0 0.0
        %1362 = vmatpush1.msra.mxu0 %v1356
        %1363 = vmatprep.subr.mxu0 0.0
        %1364 = vmatpush1.msra.mxu0 0.0
        %1365 = vmatprep.subr.mxu0 0.0
        %1366 = vmatpush1.msra.mxu0 0.0
        %1367 = vmatprep.subr.mxu0 0.0
        %1368 = vmatpush1.msra.mxu0 0.0
        %1369 = vmatprep.subr.mxu0 0.0
        %1370 = vmatpush1.msra.mxu0 0.0
        %1371 = vmatprep.subr.mxu0 0.0
        %1372 = vmatpush1.msra.mxu0 0.0
        %1373 = vmatprep.subr.mxu0 0.0
        %1374 = vmatpush1.msra.mxu0 0.0
        %1375 = vmatprep.subr.mxu0 0.0
        %1376 = vmatpush1.msra.mxu0 0.0
        %1377 = vmatprep.subr.mxu0 0.0
        %1378 = vmatpush1.msra.mxu0 0.0
        %1379 = vmatprep.subr.mxu0 0.0
        %1380 = vmatpush1.msra.mxu0 0.0
        %1381 = vmatprep.subr.mxu0 0.0
        %1382 = vmatpush1.msra.mxu0 0.0
        %1383 = vmatprep.subr.mxu0 0.0
        %1384 = vmatpush1.msra.mxu0 0.0
        %1385 = vmatprep.subr.mxu0 0.0
        %1386 = vmatpush1.msra.mxu0 0.0
        %1387 = vmatprep.subr.mxu0 0.0
        %1388 = vmatpush1.msra.mxu0 0.0
        %1389 = vmatprep.subr.mxu0 0.0
        %1390 = vmatpush1.msra.mxu0 0.0
        %1391 = vmatprep.subr.mxu0 0.0
        %1392 = vmatpush1.msra.mxu0 0.0
        %1393 = vmatprep.subr.mxu0 0.0
        %1394 = vmatpush1.msra.mxu0 0.0
        %1395 = vmatprep.subr.mxu0 0.0
        %1396 = vmatpush1.msra.mxu0 0.0
        %1397 = vmatprep.subr.mxu0 0.0
        %1398 = vmatpush1.msra.mxu0 0.0
        %1399 = vmatprep.subr.mxu0 0.0
        %1400 = vmatpush1.msra.mxu0 0.0
        %1401 = vmatprep.subr.mxu0 0.0
        %1402 = vmatpush1.msra.mxu0 0.0
        %1403 = vmatprep.subr.mxu0 0.0
        %1404 = vmatpush1.msra.mxu0 0.0
        %1405 = vmatprep.subr.mxu0 0.0
        %1406 = vmatpush1.msra.mxu0 0.0
        %1407 = vmatprep.subr.mxu0 0.0
        %1408 = vmatpush1.msra.mxu0 0.0
        %1409 = vmatprep.subr.mxu0 0.0
        %1410 = vmatpush1.msra.mxu0 0.0
        %1411 = vmatprep.subr.mxu0 0.0
        %1412 = vmatpush1.msra.mxu0 0.0
        %1413 = vmatprep.subr.mxu0 0.0
        %1414 = vmatpush1.msra.mxu0 0.0
        %1415 = vmatprep.subr.mxu0 0.0
        %1416 = vmatpush1.msra.mxu0 0.0
        %1417 = vmatprep.subr.mxu0 0.0
        %1418 = vmatpush1.msra.mxu0 0.0
        %1419 = vmatprep.subr.mxu0 0.0
        %1420 = vmatpush1.msra.mxu0 0.0
        %1421 = vmatprep.subr.mxu0 0.0
        %1422 = vmatpush1.msra.mxu0 0.0
        %1423 = vmatprep.subr.mxu0 0.0
        %1424 = vmatpush1.msra.mxu0 0.0
        %1425 = vmatprep.mubr.f32.mxu0 0.0
        %1426 = vmatmul.mubr.f32.gmra.mrb[0].mxu0 %v1359
        %v1427 = vpop.f32.mrb[0].mxu0
        %v1428 = vadd.f32 0.0, %v1427
        %v1429 = vpop.f32.mrb[0].mxu0
        %1430 = vdwg.mxu0
        %1432 = vrot.lane.b32.xlu0 %v1428, 24
        %v1433 = vpop.permute.xlu0 %1432
        %vm1435 = vcmask 261312
        %1436 = vst.msk [vmem:[#allocation2] sm:$0xff] %vm1435, %v1433
        %v1437 = vld [vmem:[#allocation2] sm:$0xff]
        %v1438 = vld [vmem:[%s630] sm:$0xff]
        %v1439 = vld [vmem:[%s630 + $0x8] sm:$0xff]
        %v1440 = vld [vmem:[%s630 + $0x10] sm:$0xff]
        %v1441 = vld [vmem:[%s630 + $0x18] sm:$0xff]
        %v1442 = vld [vmem:[%s633] sm:$0x1]
        %v1444 = vlaneseq
        %v1445 = vshrl.u32 %v1444, 7
        %v1446 = vsub.s32 0, %v1445
        %v1447 = vrot.slane %v1442, %v1446
        %v1450 = vsel %vm682, %v1437, 0
        %1452 = vmatprep.subr.mxu0 0.0
        %1453 = vmatpush1.msra.mxu0 %v1438
        %1454 = vmatprep.subr.mxu0 0.0
        %1455 = vmatpush1.msra.mxu0 %v1439
        %1456 = vmatprep.subr.mxu0 0.0
        %1457 = vmatpush1.msra.mxu0 %v1440
        %1458 = vmatprep.subr.mxu0 0.0
        %1459 = vmatpush1.msra.mxu0 %v1441
        %1460 = vmatprep.subr.mxu0 0.0
        %1461 = vmatpush1.msra.mxu0 0.0
        %1462 = vmatprep.subr.mxu0 0.0
        %1463 = vmatpush1.msra.mxu0 0.0
        %1464 = vmatprep.subr.mxu0 0.0
        %1465 = vmatpush1.msra.mxu0 0.0
        %1466 = vmatprep.subr.mxu0 0.0
        %1467 = vmatpush1.msra.mxu0 0.0
        %1468 = vmatprep.subr.mxu0 0.0
        %1469 = vmatpush1.msra.mxu0 0.0
        %1470 = vmatprep.subr.mxu0 0.0
        %1471 = vmatpush1.msra.mxu0 0.0
        %1472 = vmatprep.subr.mxu0 0.0
        %1473 = vmatpush1.msra.mxu0 0.0
        %1474 = vmatprep.subr.mxu0 0.0
        %1475 = vmatpush1.msra.mxu0 0.0
        %1476 = vmatprep.subr.mxu0 0.0
        %1477 = vmatpush1.msra.mxu0 0.0
        %1478 = vmatprep.subr.mxu0 0.0
        %1479 = vmatpush1.msra.mxu0 0.0
        %1480 = vmatprep.subr.mxu0 0.0
        %1481 = vmatpush1.msra.mxu0 0.0
        %1482 = vmatprep.subr.mxu0 0.0
        %1483 = vmatpush1.msra.mxu0 0.0
        %1484 = vmatprep.subr.mxu0 0.0
        %1485 = vmatpush1.msra.mxu0 0.0
        %1486 = vmatprep.subr.mxu0 0.0
        %1487 = vmatpush1.msra.mxu0 0.0
        %1488 = vmatprep.subr.mxu0 0.0
        %1489 = vmatpush1.msra.mxu0 0.0
        %1490 = vmatprep.subr.mxu0 0.0
        %1491 = vmatpush1.msra.mxu0 0.0
        %1492 = vmatprep.subr.mxu0 0.0
        %1493 = vmatpush1.msra.mxu0 0.0
        %1494 = vmatprep.subr.mxu0 0.0
        %1495 = vmatpush1.msra.mxu0 0.0
        %1496 = vmatprep.subr.mxu0 0.0
        %1497 = vmatpush1.msra.mxu0 0.0
        %1498 = vmatprep.subr.mxu0 0.0
        %1499 = vmatpush1.msra.mxu0 0.0
        %1500 = vmatprep.subr.mxu0 0.0
        %1501 = vmatpush1.msra.mxu0 0.0
        %1502 = vmatprep.subr.mxu0 0.0
        %1503 = vmatpush1.msra.mxu0 0.0
        %1504 = vmatprep.subr.mxu0 0.0
        %1505 = vmatpush1.msra.mxu0 0.0
        %1506 = vmatprep.subr.mxu0 0.0
        %1507 = vmatpush1.msra.mxu0 0.0
        %1508 = vmatprep.subr.mxu0 0.0
        %1509 = vmatpush1.msra.mxu0 0.0
        %1510 = vmatprep.subr.mxu0 0.0
        %1511 = vmatpush1.msra.mxu0 0.0
        %1512 = vmatprep.subr.mxu0 0.0
        %1513 = vmatpush1.msra.mxu0 0.0
        %1514 = vmatprep.subr.mxu0 0.0
        %1515 = vmatpush1.msra.mxu0 0.0
        %1516 = vmatprep.mubr.f32.mxu0 0.0
        %1517 = vmatmul.mubr.f32.gmra.mrb[0].mxu0 %v1450
        %v1518 = vpop.f32.mrb[0].mxu0
        %v1519 = vadd.f32 %v1447, %v1518
        %v1520 = vpop.f32.mrb[0].mxu0
        %1521 = vdwg.mxu0
        %v1522 = vadd.f32 %v670, %v1519
        %v1523 = vld [vmem:[%s636] sm:$0x1]
        %v1524 = vld [vmem:[%s639] sm:$0x1]
        %v1525 = vsel %vm682, %v1522, 0.0
        %1526 = vadd.xlane.f32.xlu0 %v1525
        %v1527 = vpop.xlane.xlu0 %1526
        %v1528 = vrcp.pop 32.0
        %v1529 = vmul.f32 %v1527, %v1528
        %v1530 = vsub.f32 %v1522, %v1529
        %v1531 = vmul.f32 %v1530, %v1530
        %v1532 = vsel %vm682, %v1531, 0.0
        %1533 = vadd.xlane.f32.xlu0 %v1532
        %v1534 = vpop.xlane.xlu0 %1533
        %v1535 = vmul.f32 %v1534, %v1528
        %v1536 = vadd.f32 %v1535, 1e-05
        %v1537 = vrsqrt.pop %v1536
        %v1538 = vmul.f32 %v1530, %v1537
        %v1540 = vlaneseq
        %v1541 = vshrl.u32 %v1540, 7
        %v1542 = vsub.s32 0, %v1541
        %v1543 = vrot.slane %v1523, %v1542
        %v1545 = vmul.f32 %v1538, %v1543
        %v1547 = vlaneseq
        %v1548 = vshrl.u32 %v1547, 7
        %v1549 = vsub.s32 0, %v1548
        %v1550 = vrot.slane %v1524, %v1549
        %v1552 = vadd.f32 %v1545, %v1550
        %v1553 = vld [vmem:[%s650] sm:$0xff]
        %v1554 = vld [vmem:[%s650 + $0x8] sm:$0xff]
        %v1555 = vld [vmem:[%s650 + $0x10] sm:$0xff]
        %v1556 = vld [vmem:[%s650 + $0x18] sm:$0xff]
        %v1557 = vld [vmem:[%s650 + $0x20] sm:$0xff]
        %v1558 = vld [vmem:[%s650 + $0x28] sm:$0xff]
        %v1559 = vld [vmem:[%s650 + $0x30] sm:$0xff]
        %v1560 = vld [vmem:[%s650 + $0x38] sm:$0xff]
        %v1561 = vld [vmem:[%s650 + $0x40] sm:$0xff]
        %v1562 = vld [vmem:[%s650 + $0x48] sm:$0xff]
        %v1563 = vld [vmem:[%s650 + $0x50] sm:$0xff]
        %v1564 = vld [vmem:[%s650 + $0x58] sm:$0xff]
        %v1565 = vld [vmem:[%s650 + $0x60] sm:$0xff]
        %v1566 = vld [vmem:[%s650 + $0x68] sm:$0xff]
        %v1567 = vld [vmem:[%s650 + $0x70] sm:$0xff]
        %v1568 = vld [vmem:[%s650 + $0x78] sm:$0xff]
        %v1569 = vld [vmem:[%s650 + $0x80] sm:$0xff]
        %v1570 = vld [vmem:[%s650 + $0x88] sm:$0xff]
        %v1571 = vld [vmem:[%s650 + $0x90] sm:$0xff]
        %v1572 = vld [vmem:[%s650 + $0x98] sm:$0xff]
        %v1573 = vld [vmem:[%s650 + $0xa0] sm:$0xff]
        %v1574 = vld [vmem:[%s650 + $0xa8] sm:$0xff]
        %v1575 = vld [vmem:[%s650 + $0xb0] sm:$0xff]
        %v1576 = vld [vmem:[%s650 + $0xb8] sm:$0xff]
        %v1577 = vld [vmem:[%s650 + $0xc0] sm:$0xff]
        %v1578 = vld [vmem:[%s650 + $0xc8] sm:$0xff]
        %v1579 = vld [vmem:[%s650 + $0xd0] sm:$0xff]
        %v1580 = vld [vmem:[%s650 + $0xd8] sm:$0xff]
        %v1581 = vld [vmem:[%s650 + $0xe0] sm:$0xff]
        %v1582 = vld [vmem:[%s650 + $0xe8] sm:$0xff]
        %v1583 = vld [vmem:[%s650 + $0xf0] sm:$0xff]
        %v1584 = vld [vmem:[%s650 + $0xf8] sm:$0xff]
        %v1585 = vld [vmem:[%s650 + $0x100] sm:$0xff]
        %v1586 = vld [vmem:[%s650 + $0x108] sm:$0xff]
        %v1587 = vld [vmem:[%s650 + $0x110] sm:$0xff]
        %v1588 = vld [vmem:[%s650 + $0x118] sm:$0xff]
        %v1589 = vld [vmem:[%s650 + $0x120] sm:$0xff]
        %v1590 = vld [vmem:[%s650 + $0x128] sm:$0xff]
        %v1591 = vld [vmem:[%s650 + $0x130] sm:$0xff]
        %v1592 = vld [vmem:[%s650 + $0x138] sm:$0xff]
        %v1593 = vld [vmem:[%s650 + $0x140] sm:$0xff]
        %v1594 = vld [vmem:[%s650 + $0x148] sm:$0xff]
        %v1595 = vld [vmem:[%s650 + $0x150] sm:$0xff]
        %v1596 = vld [vmem:[%s650 + $0x158] sm:$0xff]
        %v1597 = vld [vmem:[%s650 + $0x160] sm:$0xff]
        %v1598 = vld [vmem:[%s650 + $0x168] sm:$0xff]
        %v1599 = vld [vmem:[%s650 + $0x170] sm:$0xff]
        %v1600 = vld [vmem:[%s650 + $0x178] sm:$0xff]
        %v1601 = vld [vmem:[%s650 + $0x180] sm:$0xff]
        %v1602 = vld [vmem:[%s650 + $0x188] sm:$0xff]
        %v1603 = vld [vmem:[%s650 + $0x190] sm:$0xff]
        %v1604 = vld [vmem:[%s650 + $0x198] sm:$0xff]
        %v1605 = vld [vmem:[%s650 + $0x1a0] sm:$0xff]
        %v1606 = vld [vmem:[%s650 + $0x1a8] sm:$0xff]
        %v1607 = vld [vmem:[%s650 + $0x1b0] sm:$0xff]
        %v1608 = vld [vmem:[%s650 + $0x1b8] sm:$0xff]
        %v1609 = vld [vmem:[%s650 + $0x1c0] sm:$0xff]
        %v1610 = vld [vmem:[%s650 + $0x1c8] sm:$0xff]
        %v1611 = vld [vmem:[%s650 + $0x1d0] sm:$0xff]
        %v1612 = vld [vmem:[%s650 + $0x1d8] sm:$0xff]
        %v1613 = vld [vmem:[%s650 + $0x1e0] sm:$0xff]
        %v1614 = vld [vmem:[%s650 + $0x1e8] sm:$0xff]
        %v1615 = vld [vmem:[%s650 + $0x1f0] sm:$0xff]
        %v1616 = vld [vmem:[%s650 + $0x1f8] sm:$0xff]
        %v1617 = vld [vmem:[%s654] sm:$0xff]
        %v1618 = vld [vmem:[%s654 + $0x8] sm:$0xff]
        %v1621 = vlaneseq
        %v1622 = vshrl.u32 %v1621, 7
        %v1623 = vsub.s32 0, %v1622
        %v1624 = vrot.slane %v1617, %v1623
        %v1625 = vlaneseq
        %v1626 = vshrl.u32 %v1625, 7
        %v1627 = vsub.s32 1, %v1626
        %v1628 = vrot.slane %v1617, %v1627
        %v1629 = vlaneseq
        %v1630 = vshrl.u32 %v1629, 7
        %v1631 = vsub.s32 2, %v1630
        %v1632 = vrot.slane %v1617, %v1631
        %v1633 = vlaneseq
        %v1634 = vshrl.u32 %v1633, 7
        %v1635 = vsub.s32 3, %v1634
        %v1636 = vrot.slane %v1617, %v1635
        %v1637 = vlaneseq
        %v1638 = vshrl.u32 %v1637, 7
        %v1639 = vsub.s32 4, %v1638
        %v1640 = vrot.slane %v1617, %v1639
        %v1641 = vlaneseq
        %v1642 = vshrl.u32 %v1641, 7
        %v1643 = vsub.s32 5, %v1642
        %v1644 = vrot.slane %v1617, %v1643
        %v1645 = vlaneseq
        %v1646 = vshrl.u32 %v1645, 7
        %v1647 = vsub.s32 6, %v1646
        %v1648 = vrot.slane %v1617, %v1647
        %v1649 = vlaneseq
        %v1650 = vshrl.u32 %v1649, 7
        %v1651 = vsub.s32 7, %v1650
        %v1652 = vrot.slane %v1617, %v1651
        %v1653 = vlaneseq
        %v1654 = vshrl.u32 %v1653, 7
        %v1655 = vsub.s32 0, %v1654
        %v1656 = vrot.slane %v1618, %v1655
        %v1657 = vlaneseq
        %v1658 = vshrl.u32 %v1657, 7
        %v1659 = vsub.s32 1, %v1658
        %v1660 = vrot.slane %v1618, %v1659
        %v1661 = vlaneseq
        %v1662 = vshrl.u32 %v1661, 7
        %v1663 = vsub.s32 2, %v1662
        %v1664 = vrot.slane %v1618, %v1663
        %v1665 = vlaneseq
        %v1666 = vshrl.u32 %v1665, 7
        %v1667 = vsub.s32 3, %v1666
        %v1668 = vrot.slane %v1618, %v1667
        %v1669 = vlaneseq
        %v1670 = vshrl.u32 %v1669, 7
        %v1671 = vsub.s32 4, %v1670
        %v1672 = vrot.slane %v1618, %v1671
        %v1673 = vlaneseq
        %v1674 = vshrl.u32 %v1673, 7
        %v1675 = vsub.s32 5, %v1674
        %v1676 = vrot.slane %v1618, %v1675
        %v1677 = vlaneseq
        %v1678 = vshrl.u32 %v1677, 7
        %v1679 = vsub.s32 6, %v1678
        %v1680 = vrot.slane %v1618, %v1679
        %v1681 = vlaneseq
        %v1682 = vshrl.u32 %v1681, 7
        %v1683 = vsub.s32 7, %v1682
        %v1684 = vrot.slane %v1618, %v1683
        %v1702 = vsel %vm682, %v1552, 0
        %1704 = vmatprep.subr.mxu0 %v1554
        %1705 = vmatpush1.msra.mxu0 %v1553
        %1706 = vmatprep.subr.mxu0 %v1570
        %1707 = vmatpush1.msra.mxu0 %v1569
        %1708 = vmatprep.subr.mxu0 %v1586
        %1709 = vmatpush1.msra.mxu0 %v1585
        %1710 = vmatprep.subr.mxu0 %v1602
        %1711 = vmatpush1.msra.mxu0 %v1601
        %1712 = vmatprep.subr.mxu0 0.0
        %1713 = vmatpush1.msra.mxu0 0.0
        %1714 = vmatprep.subr.mxu0 0.0
        %1715 = vmatpush1.msra.mxu0 0.0
        %1716 = vmatprep.subr.mxu0 0.0
        %1717 = vmatpush1.msra.mxu0 0.0
        %1718 = vmatprep.subr.mxu0 0.0
        %1719 = vmatpush1.msra.mxu0 0.0
        %1720 = vmatprep.subr.mxu0 0.0
        %1721 = vmatpush1.msra.mxu0 0.0
        %1722 = vmatprep.subr.mxu0 0.0
        %1723 = vmatpush1.msra.mxu0 0.0
        %1724 = vmatprep.subr.mxu0 0.0
        %1725 = vmatpush1.msra.mxu0 0.0
        %1726 = vmatprep.subr.mxu0 0.0
        %1727 = vmatpush1.msra.mxu0 0.0
        %1728 = vmatprep.subr.mxu0 0.0
        %1729 = vmatpush1.msra.mxu0 0.0
        %1730 = vmatprep.subr.mxu0 0.0
        %1731 = vmatpush1.msra.mxu0 0.0
        %1732 = vmatprep.subr.mxu0 0.0
        %1733 = vmatpush1.msra.mxu0 0.0
        %1734 = vmatprep.subr.mxu0 0.0
        %1735 = vmatpush1.msra.mxu0 0.0
        %1736 = vmatprep.subr.mxu0 0.0
        %1737 = vmatpush1.msra.mxu0 0.0
        %1738 = vmatprep.subr.mxu0 0.0
        %1739 = vmatpush1.msra.mxu0 0.0
        %1740 = vmatprep.subr.mxu0 0.0
        %1741 = vmatpush1.msra.mxu0 0.0
        %1742 = vmatprep.subr.mxu0 0.0
        %1743 = vmatpush1.msra.mxu0 0.0
        %1744 = vmatprep.subr.mxu0 0.0
        %1745 = vmatpush1.msra.mxu0 0.0
        %1746 = vmatprep.subr.mxu0 0.0
        %1747 = vmatpush1.msra.mxu0 0.0
        %1748 = vmatprep.subr.mxu0 0.0
        %1749 = vmatpush1.msra.mxu0 0.0
        %1750 = vmatprep.subr.mxu0 0.0
        %1751 = vmatpush1.msra.mxu0 0.0
        %1752 = vmatprep.subr.mxu0 0.0
        %1753 = vmatpush1.msra.mxu0 0.0
        %1754 = vmatprep.subr.mxu0 0.0
        %1755 = vmatpush1.msra.mxu0 0.0
        %1756 = vmatprep.subr.mxu0 0.0
        %1757 = vmatpush1.msra.mxu0 0.0
        %1758 = vmatprep.subr.mxu0 0.0
        %1759 = vmatpush1.msra.mxu0 0.0
        %1760 = vmatprep.subr.mxu0 0.0
        %1761 = vmatpush1.msra.mxu0 0.0
        %1762 = vmatprep.subr.mxu0 0.0
        %1763 = vmatpush1.msra.mxu0 0.0
        %1764 = vmatprep.subr.mxu0 0.0
        %1765 = vmatpush1.msra.mxu0 0.0
        %1766 = vmatprep.subr.mxu0 0.0
        %1767 = vmatpush1.msra.mxu0 0.0
        %1768 = vmatprep.mubr.f32.mxu0 0.0
        %1769 = vmatmul.mubr.f32.gmra.mrb[0].mxu0 %v1702
        %v1770 = vpop.f32.mrb[0].mxu0
        %v1771 = vadd.f32 %v1624, %v1770
        %v1772 = vpop.f32.mrb[0].mxu0
        %v1773 = vadd.f32 %v1628, %v1772
        %1774 = vdwg.mxu0
        %1775 = vmatprep.subr.mxu0 %v1556
        %1776 = vmatpush1.msra.mxu0 %v1555
        %1777 = vmatprep.subr.mxu0 %v1572
        %1778 = vmatpush1.msra.mxu0 %v1571
        %1779 = vmatprep.subr.mxu0 %v1588
        %1780 = vmatpush1.msra.mxu0 %v1587
        %1781 = vmatprep.subr.mxu0 %v1604
        %1782 = vmatpush1.msra.mxu0 %v1603
        %1783 = vmatprep.subr.mxu0 0.0
        %1784 = vmatpush1.msra.mxu0 0.0
        %1785 = vmatprep.subr.mxu0 0.0
        %1786 = vmatpush1.msra.mxu0 0.0
        %1787 = vmatprep.subr.mxu0 0.0
        %1788 = vmatpush1.msra.mxu0 0.0
        %1789 = vmatprep.subr.mxu0 0.0
        %1790 = vmatpush1.msra.mxu0 0.0
        %1791 = vmatprep.subr.mxu0 0.0
        %1792 = vmatpush1.msra.mxu0 0.0
        %1793 = vmatprep.subr.mxu0 0.0
        %1794 = vmatpush1.msra.mxu0 0.0
        %1795 = vmatprep.subr.mxu0 0.0
        %1796 = vmatpush1.msra.mxu0 0.0
        %1797 = vmatprep.subr.mxu0 0.0
        %1798 = vmatpush1.msra.mxu0 0.0
        %1799 = vmatprep.subr.mxu0 0.0
        %1800 = vmatpush1.msra.mxu0 0.0
        %1801 = vmatprep.subr.mxu0 0.0
        %1802 = vmatpush1.msra.mxu0 0.0
        %1803 = vmatprep.subr.mxu0 0.0
        %1804 = vmatpush1.msra.mxu0 0.0
        %1805 = vmatprep.subr.mxu0 0.0
        %1806 = vmatpush1.msra.mxu0 0.0
        %1807 = vmatprep.subr.mxu0 0.0
        %1808 = vmatpush1.msra.mxu0 0.0
        %1809 = vmatprep.subr.mxu0 0.0
        %1810 = vmatpush1.msra.mxu0 0.0
        %1811 = vmatprep.subr.mxu0 0.0
        %1812 = vmatpush1.msra.mxu0 0.0
        %1813 = vmatprep.subr.mxu0 0.0
        %1814 = vmatpush1.msra.mxu0 0.0
        %1815 = vmatprep.subr.mxu0 0.0
        %1816 = vmatpush1.msra.mxu0 0.0
        %1817 = vmatprep.subr.mxu0 0.0
        %1818 = vmatpush1.msra.mxu0 0.0
        %1819 = vmatprep.subr.mxu0 0.0
        %1820 = vmatpush1.msra.mxu0 0.0
        %1821 = vmatprep.subr.mxu0 0.0
        %1822 = vmatpush1.msra.mxu0 0.0
        %1823 = vmatprep.subr.mxu0 0.0
        %1824 = vmatpush1.msra.mxu0 0.0
        %1825 = vmatprep.subr.mxu0 0.0
        %1826 = vmatpush1.msra.mxu0 0.0
        %1827 = vmatprep.subr.mxu0 0.0
        %1828 = vmatpush1.msra.mxu0 0.0
        %1829 = vmatprep.subr.mxu0 0.0
        %1830 = vmatpush1.msra.mxu0 0.0
        %1831 = vmatprep.subr.mxu0 0.0
        %1832 = vmatpush1.msra.mxu0 0.0
        %1833 = vmatprep.subr.mxu0 0.0
        %1834 = vmatpush1.msra.mxu0 0.0
        %1835 = vmatprep.subr.mxu0 0.0
        %1836 = vmatpush1.msra.mxu0 0.0
        %1837 = vmatprep.subr.mxu0 0.0
        %1838 = vmatpush1.msra.mxu0 0.0
        %1839 = vmatprep.mubr.f32.mxu0 0.0
        %1840 = vmatmul.mubr.f32.gmra.mrb[0].mxu0 %v1702
        %v1841 = vpop.f32.mrb[0].mxu0
        %v1842 = vadd.f32 %v1632, %v1841
        %v1843 = vpop.f32.mrb[0].mxu0
        %v1844 = vadd.f32 %v1636, %v1843
        %1845 = vdwg.mxu0
        %1846 = vmatprep.subr.mxu0 %v1558
        %1847 = vmatpush1.msra.mxu0 %v1557
        %1848 = vmatprep.subr.mxu0 %v1574
        %1849 = vmatpush1.msra.mxu0 %v1573
        %1850 = vmatprep.subr.mxu0 %v1590
        %1851 = vmatpush1.msra.mxu0 %v1589
        %1852 = vmatprep.subr.mxu0 %v1606
        %1853 = vmatpush1.msra.mxu0 %v1605
        %1854 = vmatprep.subr.mxu0 0.0
        %1855 = vmatpush1.msra.mxu0 0.0
        %1856 = vmatprep.subr.mxu0 0.0
        %1857 = vmatpush1.msra.mxu0 0.0
        %1858 = vmatprep.subr.mxu0 0.0
        %1859 = vmatpush1.msra.mxu0 0.0
        %1860 = vmatprep.subr.mxu0 0.0
        %1861 = vmatpush1.msra.mxu0 0.0
        %1862 = vmatprep.subr.mxu0 0.0
        %1863 = vmatpush1.msra.mxu0 0.0
        %1864 = vmatprep.subr.mxu0 0.0
        %1865 = vmatpush1.msra.mxu0 0.0
        %1866 = vmatprep.subr.mxu0 0.0
        %1867 = vmatpush1.msra.mxu0 0.0
        %1868 = vmatprep.subr.mxu0 0.0
        %1869 = vmatpush1.msra.mxu0 0.0
        %1870 = vmatprep.subr.mxu0 0.0
        %1871 = vmatpush1.msra.mxu0 0.0
        %1872 = vmatprep.subr.mxu0 0.0
        %1873 = vmatpush1.msra.mxu0 0.0
        %1874 = vmatprep.subr.mxu0 0.0
        %1875 = vmatpush1.msra.mxu0 0.0
        %1876 = vmatprep.subr.mxu0 0.0
        %1877 = vmatpush1.msra.mxu0 0.0
        %1878 = vmatprep.subr.mxu0 0.0
        %1879 = vmatpush1.msra.mxu0 0.0
        %1880 = vmatprep.subr.mxu0 0.0
        %1881 = vmatpush1.msra.mxu0 0.0
        %1882 = vmatprep.subr.mxu0 0.0
        %1883 = vmatpush1.msra.mxu0 0.0
        %1884 = vmatprep.subr.mxu0 0.0
        %1885 = vmatpush1.msra.mxu0 0.0
        %1886 = vmatprep.subr.mxu0 0.0
        %1887 = vmatpush1.msra.mxu0 0.0
        %1888 = vmatprep.subr.mxu0 0.0
        %1889 = vmatpush1.msra.mxu0 0.0
        %1890 = vmatprep.subr.mxu0 0.0
        %1891 = vmatpush1.msra.mxu0 0.0
        %1892 = vmatprep.subr.mxu0 0.0
        %1893 = vmatpush1.msra.mxu0 0.0
        %1894 = vmatprep.subr.mxu0 0.0
        %1895 = vmatpush1.msra.mxu0 0.0
        %1896 = vmatprep.subr.mxu0 0.0
        %1897 = vmatpush1.msra.mxu0 0.0
        %1898 = vmatprep.subr.mxu0 0.0
        %1899 = vmatpush1.msra.mxu0 0.0
        %1900 = vmatprep.subr.mxu0 0.0
        %1901 = vmatpush1.msra.mxu0 0.0
        %1902 = vmatprep.subr.mxu0 0.0
        %1903 = vmatpush1.msra.mxu0 0.0
        %1904 = vmatprep.subr.mxu0 0.0
        %1905 = vmatpush1.msra.mxu0 0.0
        %1906 = vmatprep.subr.mxu0 0.0
        %1907 = vmatpush1.msra.mxu0 0.0
        %1908 = vmatprep.subr.mxu0 0.0
        %1909 = vmatpush1.msra.mxu0 0.0
        %1910 = vmatprep.mubr.f32.mxu0 0.0
        %1911 = vmatmul.mubr.f32.gmra.mrb[0].mxu0 %v1702
        %v1912 = vpop.f32.mrb[0].mxu0
        %v1913 = vadd.f32 %v1640, %v1912
        %v1914 = vpop.f32.mrb[0].mxu0
        %v1915 = vadd.f32 %v1644, %v1914
        %1916 = vdwg.mxu0
        %1917 = vmatprep.subr.mxu0 %v1560
        %1918 = vmatpush1.msra.mxu0 %v1559
        %1919 = vmatprep.subr.mxu0 %v1576
        %1920 = vmatpush1.msra.mxu0 %v1575
        %1921 = vmatprep.subr.mxu0 %v1592
        %1922 = vmatpush1.msra.mxu0 %v1591
        %1923 = vmatprep.subr.mxu0 %v1608
        %1924 = vmatpush1.msra.mxu0 %v1607
        %1925 = vmatprep.subr.mxu0 0.0
        %1926 = vmatpush1.msra.mxu0 0.0
        %1927 = vmatprep.subr.mxu0 0.0
        %1928 = vmatpush1.msra.mxu0 0.0
        %1929 = vmatprep.subr.mxu0 0.0
        %1930 = vmatpush1.msra.mxu0 0.0
        %1931 = vmatprep.subr.mxu0 0.0
        %1932 = vmatpush1.msra.mxu0 0.0
        %1933 = vmatprep.subr.mxu0 0.0
        %1934 = vmatpush1.msra.mxu0 0.0
        %1935 = vmatprep.subr.mxu0 0.0
        %1936 = vmatpush1.msra.mxu0 0.0
        %1937 = vmatprep.subr.mxu0 0.0
        %1938 = vmatpush1.msra.mxu0 0.0
        %1939 = vmatprep.subr.mxu0 0.0
        %1940 = vmatpush1.msra.mxu0 0.0
        %1941 = vmatprep.subr.mxu0 0.0
        %1942 = vmatpush1.msra.mxu0 0.0
        %1943 = vmatprep.subr.mxu0 0.0
        %1944 = vmatpush1.msra.mxu0 0.0
        %1945 = vmatprep.subr.mxu0 0.0
        %1946 = vmatpush1.msra.mxu0 0.0
        %1947 = vmatprep.subr.mxu0 0.0
        %1948 = vmatpush1.msra.mxu0 0.0
        %1949 = vmatprep.subr.mxu0 0.0
        %1950 = vmatpush1.msra.mxu0 0.0
        %1951 = vmatprep.subr.mxu0 0.0
        %1952 = vmatpush1.msra.mxu0 0.0
        %1953 = vmatprep.subr.mxu0 0.0
        %1954 = vmatpush1.msra.mxu0 0.0
        %1955 = vmatprep.subr.mxu0 0.0
        %1956 = vmatpush1.msra.mxu0 0.0
        %1957 = vmatprep.subr.mxu0 0.0
        %1958 = vmatpush1.msra.mxu0 0.0
        %1959 = vmatprep.subr.mxu0 0.0
        %1960 = vmatpush1.msra.mxu0 0.0
        %1961 = vmatprep.subr.mxu0 0.0
        %1962 = vmatpush1.msra.mxu0 0.0
        %1963 = vmatprep.subr.mxu0 0.0
        %1964 = vmatpush1.msra.mxu0 0.0
        %1965 = vmatprep.subr.mxu0 0.0
        %1966 = vmatpush1.msra.mxu0 0.0
        %1967 = vmatprep.subr.mxu0 0.0
        %1968 = vmatpush1.msra.mxu0 0.0
        %1969 = vmatprep.subr.mxu0 0.0
        %1970 = vmatpush1.msra.mxu0 0.0
        %1971 = vmatprep.subr.mxu0 0.0
        %1972 = vmatpush1.msra.mxu0 0.0
        %1973 = vmatprep.subr.mxu0 0.0
        %1974 = vmatpush1.msra.mxu0 0.0
        %1975 = vmatprep.subr.mxu0 0.0
        %1976 = vmatpush1.msra.mxu0 0.0
        %1977 = vmatprep.subr.mxu0 0.0
        %1978 = vmatpush1.msra.mxu0 0.0
        %1979 = vmatprep.subr.mxu0 0.0
        %1980 = vmatpush1.msra.mxu0 0.0
        %1981 = vmatprep.mubr.f32.mxu0 0.0
        %1982 = vmatmul.mubr.f32.gmra.mrb[0].mxu0 %v1702
        %v1983 = vpop.f32.mrb[0].mxu0
        %v1984 = vadd.f32 %v1648, %v1983
        %v1985 = vpop.f32.mrb[0].mxu0
        %v1986 = vadd.f32 %v1652, %v1985
        %1987 = vdwg.mxu0
        %1988 = vmatprep.subr.mxu0 %v1562
        %1989 = vmatpush1.msra.mxu0 %v1561
        %1990 = vmatprep.subr.mxu0 %v1578
        %1991 = vmatpush1.msra.mxu0 %v1577
        %1992 = vmatprep.subr.mxu0 %v1594
        %1993 = vmatpush1.msra.mxu0 %v1593
        %1994 = vmatprep.subr.mxu0 %v1610
        %1995 = vmatpush1.msra.mxu0 %v1609
        %1996 = vmatprep.subr.mxu0 0.0
        %1997 = vmatpush1.msra.mxu0 0.0
        %1998 = vmatprep.subr.mxu0 0.0
        %1999 = vmatpush1.msra.mxu0 0.0
        %2000 = vmatprep.subr.mxu0 0.0
        %2001 = vmatpush1.msra.mxu0 0.0
        %2002 = vmatprep.subr.mxu0 0.0
        %2003 = vmatpush1.msra.mxu0 0.0
        %2004 = vmatprep.subr.mxu0 0.0
        %2005 = vmatpush1.msra.mxu0 0.0
        %2006 = vmatprep.subr.mxu0 0.0
        %2007 = vmatpush1.msra.mxu0 0.0
        %2008 = vmatprep.subr.mxu0 0.0
        %2009 = vmatpush1.msra.mxu0 0.0
        %2010 = vmatprep.subr.mxu0 0.0
        %2011 = vmatpush1.msra.mxu0 0.0
        %2012 = vmatprep.subr.mxu0 0.0
        %2013 = vmatpush1.msra.mxu0 0.0
        %2014 = vmatprep.subr.mxu0 0.0
        %2015 = vmatpush1.msra.mxu0 0.0
        %2016 = vmatprep.subr.mxu0 0.0
        %2017 = vmatpush1.msra.mxu0 0.0
        %2018 = vmatprep.subr.mxu0 0.0
        %2019 = vmatpush1.msra.mxu0 0.0
        %2020 = vmatprep.subr.mxu0 0.0
        %2021 = vmatpush1.msra.mxu0 0.0
        %2022 = vmatprep.subr.mxu0 0.0
        %2023 = vmatpush1.msra.mxu0 0.0
        %2024 = vmatprep.subr.mxu0 0.0
        %2025 = vmatpush1.msra.mxu0 0.0
        %2026 = vmatprep.subr.mxu0 0.0
        %2027 = vmatpush1.msra.mxu0 0.0
        %2028 = vmatprep.subr.mxu0 0.0
        %2029 = vmatpush1.msra.mxu0 0.0
        %2030 = vmatprep.subr.mxu0 0.0
        %2031 = vmatpush1.msra.mxu0 0.0
        %2032 = vmatprep.subr.mxu0 0.0
        %2033 = vmatpush1.msra.mxu0 0.0
        %2034 = vmatprep.subr.mxu0 0.0
        %2035 = vmatpush1.msra.mxu0 0.0
        %2036 = vmatprep.subr.mxu0 0.0
        %2037 = vmatpush1.msra.mxu0 0.0
        %2038 = vmatprep.subr.mxu0 0.0
        %2039 = vmatpush1.msra.mxu0 0.0
        %2040 = vmatprep.subr.mxu0 0.0
        %2041 = vmatpush1.msra.mxu0 0.0
        %2042 = vmatprep.subr.mxu0 0.0
        %2043 = vmatpush1.msra.mxu0 0.0
        %2044 = vmatprep.subr.mxu0 0.0
        %2045 = vmatpush1.msra.mxu0 0.0
        %2046 = vmatprep.subr.mxu0 0.0
        %2047 = vmatpush1.msra.mxu0 0.0
        %2048 = vmatprep.subr.mxu0 0.0
        %2049 = vmatpush1.msra.mxu0 0.0
        %2050 = vmatprep.subr.mxu0 0.0
        %2051 = vmatpush1.msra.mxu0 0.0
        %2052 = vmatprep.mubr.f32.mxu0 0.0
        %2053 = vmatmul.mubr.f32.gmra.mrb[0].mxu0 %v1702
        %v2054 = vpop.f32.mrb[0].mxu0
        %v2055 = vadd.f32 %v1656, %v2054
        %v2056 = vpop.f32.mrb[0].mxu0
        %v2057 = vadd.f32 %v1660, %v2056
        %2058 = vdwg.mxu0
        %2059 = vmatprep.subr.mxu0 %v1564
        %2060 = vmatpush1.msra.mxu0 %v1563
        %2061 = vmatprep.subr.mxu0 %v1580
        %2062 = vmatpush1.msra.mxu0 %v1579
        %2063 = vmatprep.subr.mxu0 %v1596
        %2064 = vmatpush1.msra.mxu0 %v1595
        %2065 = vmatprep.subr.mxu0 %v1612
        %2066 = vmatpush1.msra.mxu0 %v1611
        %2067 = vmatprep.subr.mxu0 0.0
        %2068 = vmatpush1.msra.mxu0 0.0
        %2069 = vmatprep.subr.mxu0 0.0
        %2070 = vmatpush1.msra.mxu0 0.0
        %2071 = vmatprep.subr.mxu0 0.0
        %2072 = vmatpush1.msra.mxu0 0.0
        %2073 = vmatprep.subr.mxu0 0.0
        %2074 = vmatpush1.msra.mxu0 0.0
        %2075 = vmatprep.subr.mxu0 0.0
        %2076 = vmatpush1.msra.mxu0 0.0
        %2077 = vmatprep.subr.mxu0 0.0
        %2078 = vmatpush1.msra.mxu0 0.0
        %2079 = vmatprep.subr.mxu0 0.0
        %2080 = vmatpush1.msra.mxu0 0.0
        %2081 = vmatprep.subr.mxu0 0.0
        %2082 = vmatpush1.msra.mxu0 0.0
        %2083 = vmatprep.subr.mxu0 0.0
        %2084 = vmatpush1.msra.mxu0 0.0
        %2085 = vmatprep.subr.mxu0 0.0
        %2086 = vmatpush1.msra.mxu0 0.0
        %2087 = vmatprep.subr.mxu0 0.0
        %2088 = vmatpush1.msra.mxu0 0.0
        %2089 = vmatprep.subr.mxu0 0.0
        %2090 = vmatpush1.msra.mxu0 0.0
        %2091 = vmatprep.subr.mxu0 0.0
        %2092 = vmatpush1.msra.mxu0 0.0
        %2093 = vmatprep.subr.mxu0 0.0
        %2094 = vmatpush1.msra.mxu0 0.0
        %2095 = vmatprep.subr.mxu0 0.0
        %2096 = vmatpush1.msra.mxu0 0.0
        %2097 = vmatprep.subr.mxu0 0.0
        %2098 = vmatpush1.msra.mxu0 0.0
        %2099 = vmatprep.subr.mxu0 0.0
        %2100 = vmatpush1.msra.mxu0 0.0
        %2101 = vmatprep.subr.mxu0 0.0
        %2102 = vmatpush1.msra.mxu0 0.0
        %2103 = vmatprep.subr.mxu0 0.0
        %2104 = vmatpush1.msra.mxu0 0.0
        %2105 = vmatprep.subr.mxu0 0.0
        %2106 = vmatpush1.msra.mxu0 0.0
        %2107 = vmatprep.subr.mxu0 0.0
        %2108 = vmatpush1.msra.mxu0 0.0
        %2109 = vmatprep.subr.mxu0 0.0
        %2110 = vmatpush1.msra.mxu0 0.0
        %2111 = vmatprep.subr.mxu0 0.0
        %2112 = vmatpush1.msra.mxu0 0.0
        %2113 = vmatprep.subr.mxu0 0.0
        %2114 = vmatpush1.msra.mxu0 0.0
        %2115 = vmatprep.subr.mxu0 0.0
        %2116 = vmatpush1.msra.mxu0 0.0
        %2117 = vmatprep.subr.mxu0 0.0
        %2118 = vmatpush1.msra.mxu0 0.0
        %2119 = vmatprep.subr.mxu0 0.0
        %2120 = vmatpush1.msra.mxu0 0.0
        %2121 = vmatprep.subr.mxu0 0.0
        %2122 = vmatpush1.msra.mxu0 0.0
        %2123 = vmatprep.mubr.f32.mxu0 0.0
        %2124 = vmatmul.mubr.f32.gmra.mrb[0].mxu0 %v1702
        %v2125 = vpop.f32.mrb[0].mxu0
        %v2126 = vadd.f32 %v1664, %v2125
        %v2127 = vpop.f32.mrb[0].mxu0
        %v2128 = vadd.f32 %v1668, %v2127
        %2129 = vdwg.mxu0
        %2130 = vmatprep.subr.mxu0 %v1566
        %2131 = vmatpush1.msra.mxu0 %v1565
        %2132 = vmatprep.subr.mxu0 %v1582
        %2133 = vmatpush1.msra.mxu0 %v1581
        %2134 = vmatprep.subr.mxu0 %v1598
        %2135 = vmatpush1.msra.mxu0 %v1597
        %2136 = vmatprep.subr.mxu0 %v1614
        %2137 = vmatpush1.msra.mxu0 %v1613
        %2138 = vmatprep.subr.mxu0 0.0
        %2139 = vmatpush1.msra.mxu0 0.0
        %2140 = vmatprep.subr.mxu0 0.0
        %2141 = vmatpush1.msra.mxu0 0.0
        %2142 = vmatprep.subr.mxu0 0.0
        %2143 = vmatpush1.msra.mxu0 0.0
        %2144 = vmatprep.subr.mxu0 0.0
        %2145 = vmatpush1.msra.mxu0 0.0
        %2146 = vmatprep.subr.mxu0 0.0
        %2147 = vmatpush1.msra.mxu0 0.0
        %2148 = vmatprep.subr.mxu0 0.0
        %2149 = vmatpush1.msra.mxu0 0.0
        %2150 = vmatprep.subr.mxu0 0.0
        %2151 = vmatpush1.msra.mxu0 0.0
        %2152 = vmatprep.subr.mxu0 0.0
        %2153 = vmatpush1.msra.mxu0 0.0
        %2154 = vmatprep.subr.mxu0 0.0
        %2155 = vmatpush1.msra.mxu0 0.0
        %2156 = vmatprep.subr.mxu0 0.0
        %2157 = vmatpush1.msra.mxu0 0.0
        %2158 = vmatprep.subr.mxu0 0.0
        %2159 = vmatpush1.msra.mxu0 0.0
        %2160 = vmatprep.subr.mxu0 0.0
        %2161 = vmatpush1.msra.mxu0 0.0
        %2162 = vmatprep.subr.mxu0 0.0
        %2163 = vmatpush1.msra.mxu0 0.0
        %2164 = vmatprep.subr.mxu0 0.0
        %2165 = vmatpush1.msra.mxu0 0.0
        %2166 = vmatprep.subr.mxu0 0.0
        %2167 = vmatpush1.msra.mxu0 0.0
        %2168 = vmatprep.subr.mxu0 0.0
        %2169 = vmatpush1.msra.mxu0 0.0
        %2170 = vmatprep.subr.mxu0 0.0
        %2171 = vmatpush1.msra.mxu0 0.0
        %2172 = vmatprep.subr.mxu0 0.0
        %2173 = vmatpush1.msra.mxu0 0.0
        %2174 = vmatprep.subr.mxu0 0.0
        %2175 = vmatpush1.msra.mxu0 0.0
        %2176 = vmatprep.subr.mxu0 0.0
        %2177 = vmatpush1.msra.mxu0 0.0
        %2178 = vmatprep.subr.mxu0 0.0
        %2179 = vmatpush1.msra.mxu0 0.0
        %2180 = vmatprep.subr.mxu0 0.0
        %2181 = vmatpush1.msra.mxu0 0.0
        %2182 = vmatprep.subr.mxu0 0.0
        %2183 = vmatpush1.msra.mxu0 0.0
        %2184 = vmatprep.subr.mxu0 0.0
        %2185 = vmatpush1.msra.mxu0 0.0
        %2186 = vmatprep.subr.mxu0 0.0
        %2187 = vmatpush1.msra.mxu0 0.0
        %2188 = vmatprep.subr.mxu0 0.0
        %2189 = vmatpush1.msra.mxu0 0.0
        %2190 = vmatprep.subr.mxu0 0.0
        %2191 = vmatpush1.msra.mxu0 0.0
        %2192 = vmatprep.subr.mxu0 0.0
        %2193 = vmatpush1.msra.mxu0 0.0
        %2194 = vmatprep.mubr.f32.mxu0 0.0
        %2195 = vmatmul.mubr.f32.gmra.mrb[0].mxu0 %v1702
        %v2196 = vpop.f32.mrb[0].mxu0
        %v2197 = vadd.f32 %v1672, %v2196
        %v2198 = vpop.f32.mrb[0].mxu0
        %v2199 = vadd.f32 %v1676, %v2198
        %2200 = vdwg.mxu0
        %2201 = vmatprep.subr.mxu0 %v1568
        %2202 = vmatpush1.msra.mxu0 %v1567
        %2203 = vmatprep.subr.mxu0 %v1584
        %2204 = vmatpush1.msra.mxu0 %v1583
        %2205 = vmatprep.subr.mxu0 %v1600
        %2206 = vmatpush1.msra.mxu0 %v1599
        %2207 = vmatprep.subr.mxu0 %v1616
        %2208 = vmatpush1.msra.mxu0 %v1615
        %2209 = vmatprep.subr.mxu0 0.0
        %2210 = vmatpush1.msra.mxu0 0.0
        %2211 = vmatprep.subr.mxu0 0.0
        %2212 = vmatpush1.msra.mxu0 0.0
        %2213 = vmatprep.subr.mxu0 0.0
        %2214 = vmatpush1.msra.mxu0 0.0
        %2215 = vmatprep.subr.mxu0 0.0
        %2216 = vmatpush1.msra.mxu0 0.0
        %2217 = vmatprep.subr.mxu0 0.0
        %2218 = vmatpush1.msra.mxu0 0.0
        %2219 = vmatprep.subr.mxu0 0.0
        %2220 = vmatpush1.msra.mxu0 0.0
        %2221 = vmatprep.subr.mxu0 0.0
        %2222 = vmatpush1.msra.mxu0 0.0
        %2223 = vmatprep.subr.mxu0 0.0
        %2224 = vmatpush1.msra.mxu0 0.0
        %2225 = vmatprep.subr.mxu0 0.0
        %2226 = vmatpush1.msra.mxu0 0.0
        %2227 = vmatprep.subr.mxu0 0.0
        %2228 = vmatpush1.msra.mxu0 0.0
        %2229 = vmatprep.subr.mxu0 0.0
        %2230 = vmatpush1.msra.mxu0 0.0
        %2231 = vmatprep.subr.mxu0 0.0
        %2232 = vmatpush1.msra.mxu0 0.0
        %2233 = vmatprep.subr.mxu0 0.0
        %2234 = vmatpush1.msra.mxu0 0.0
        %2235 = vmatprep.subr.mxu0 0.0
        %2236 = vmatpush1.msra.mxu0 0.0
        %2237 = vmatprep.subr.mxu0 0.0
        %2238 = vmatpush1.msra.mxu0 0.0
        %2239 = vmatprep.subr.mxu0 0.0
        %2240 = vmatpush1.msra.mxu0 0.0
        %2241 = vmatprep.subr.mxu0 0.0
        %2242 = vmatpush1.msra.mxu0 0.0
        %2243 = vmatprep.subr.mxu0 0.0
        %2244 = vmatpush1.msra.mxu0 0.0
        %2245 = vmatprep.subr.mxu0 0.0
        %2246 = vmatpush1.msra.mxu0 0.0
        %2247 = vmatprep.subr.mxu0 0.0
        %2248 = vmatpush1.msra.mxu0 0.0
        %2249 = vmatprep.subr.mxu0 0.0
        %2250 = vmatpush1.msra.mxu0 0.0
        %2251 = vmatprep.subr.mxu0 0.0
        %2252 = vmatpush1.msra.mxu0 0.0
        %2253 = vmatprep.subr.mxu0 0.0
        %2254 = vmatpush1.msra.mxu0 0.0
        %2255 = vmatprep.subr.mxu0 0.0
        %2256 = vmatpush1.msra.mxu0 0.0
        %2257 = vmatprep.subr.mxu0 0.0
        %2258 = vmatpush1.msra.mxu0 0.0
        %2259 = vmatprep.subr.mxu0 0.0
        %2260 = vmatpush1.msra.mxu0 0.0
        %2261 = vmatprep.subr.mxu0 0.0
        %2262 = vmatpush1.msra.mxu0 0.0
        %2263 = vmatprep.subr.mxu0 0.0
        %2264 = vmatpush1.msra.mxu0 0.0
        %2265 = vmatprep.mubr.f32.mxu0 0.0
        %2266 = vmatmul.mubr.f32.gmra.mrb[0].mxu0 %v1702
        %v2267 = vpop.f32.mrb[0].mxu0
        %v2268 = vadd.f32 %v1680, %v2267
        %v2269 = vpop.f32.mrb[0].mxu0
        %v2270 = vadd.f32 %v1684, %v2269
        %2271 = vdwg.mxu0
        %v2272 = vmax.f32 %v1771, 0.0
        %v2273 = vmax.f32 %v1773, 0.0
        %v2274 = vmax.f32 %v1842, 0.0
        %v2275 = vmax.f32 %v1844, 0.0
        %v2276 = vmax.f32 %v1913, 0.0
        %v2277 = vmax.f32 %v1915, 0.0
        %v2278 = vmax.f32 %v1984, 0.0
        %v2279 = vmax.f32 %v1986, 0.0
        %v2280 = vmax.f32 %v2055, 0.0
        %v2281 = vmax.f32 %v2057, 0.0
        %v2282 = vmax.f32 %v2126, 0.0
        %v2283 = vmax.f32 %v2128, 0.0
        %v2284 = vmax.f32 %v2197, 0.0
        %v2285 = vmax.f32 %v2199, 0.0
        %v2286 = vmax.f32 %v2268, 0.0
        %v2287 = vmax.f32 %v2270, 0.0
        %v2288 = vld [vmem:[%s659] sm:$0xff]
        %v2289 = vld [vmem:[%s659 + $0x8] sm:$0xff]
        %v2290 = vld [vmem:[%s659 + $0x10] sm:$0xff]
        %v2291 = vld [vmem:[%s659 + $0x18] sm:$0xff]
        %v2292 = vld [vmem:[%s659 + $0x20] sm:$0xff]
        %v2293 = vld [vmem:[%s659 + $0x28] sm:$0xff]
        %v2294 = vld [vmem:[%s659 + $0x30] sm:$0xff]
        %v2295 = vld [vmem:[%s659 + $0x38] sm:$0xff]
        %v2296 = vld [vmem:[%s659 + $0x40] sm:$0xff]
        %v2297 = vld [vmem:[%s659 + $0x48] sm:$0xff]
        %v2298 = vld [vmem:[%s659 + $0x50] sm:$0xff]
        %v2299 = vld [vmem:[%s659 + $0x58] sm:$0xff]
        %v2300 = vld [vmem:[%s659 + $0x60] sm:$0xff]
        %v2301 = vld [vmem:[%s659 + $0x68] sm:$0xff]
        %v2302 = vld [vmem:[%s659 + $0x70] sm:$0xff]
        %v2303 = vld [vmem:[%s659 + $0x78] sm:$0xff]
        %v2304 = vld [vmem:[%s659 + $0x80] sm:$0xff]
        %v2305 = vld [vmem:[%s659 + $0x88] sm:$0xff]
        %v2306 = vld [vmem:[%s659 + $0x90] sm:$0xff]
        %v2307 = vld [vmem:[%s659 + $0x98] sm:$0xff]
        %v2308 = vld [vmem:[%s659 + $0xa0] sm:$0xff]
        %v2309 = vld [vmem:[%s659 + $0xa8] sm:$0xff]
        %v2310 = vld [vmem:[%s659 + $0xb0] sm:$0xff]
        %v2311 = vld [vmem:[%s659 + $0xb8] sm:$0xff]
        %v2312 = vld [vmem:[%s659 + $0xc0] sm:$0xff]
        %v2313 = vld [vmem:[%s659 + $0xc8] sm:$0xff]
        %v2314 = vld [vmem:[%s659 + $0xd0] sm:$0xff]
        %v2315 = vld [vmem:[%s659 + $0xd8] sm:$0xff]
        %v2316 = vld [vmem:[%s659 + $0xe0] sm:$0xff]
        %v2317 = vld [vmem:[%s659 + $0xe8] sm:$0xff]
        %v2318 = vld [vmem:[%s659 + $0xf0] sm:$0xff]
        %v2319 = vld [vmem:[%s659 + $0xf8] sm:$0xff]
        %v2320 = vld [vmem:[%s659 + $0x100] sm:$0xff]
        %v2321 = vld [vmem:[%s659 + $0x108] sm:$0xff]
        %v2322 = vld [vmem:[%s659 + $0x110] sm:$0xff]
        %v2323 = vld [vmem:[%s659 + $0x118] sm:$0xff]
        %v2324 = vld [vmem:[%s659 + $0x120] sm:$0xff]
        %v2325 = vld [vmem:[%s659 + $0x128] sm:$0xff]
        %v2326 = vld [vmem:[%s659 + $0x130] sm:$0xff]
        %v2327 = vld [vmem:[%s659 + $0x138] sm:$0xff]
        %v2328 = vld [vmem:[%s659 + $0x140] sm:$0xff]
        %v2329 = vld [vmem:[%s659 + $0x148] sm:$0xff]
        %v2330 = vld [vmem:[%s659 + $0x150] sm:$0xff]
        %v2331 = vld [vmem:[%s659 + $0x158] sm:$0xff]
        %v2332 = vld [vmem:[%s659 + $0x160] sm:$0xff]
        %v2333 = vld [vmem:[%s659 + $0x168] sm:$0xff]
        %v2334 = vld [vmem:[%s659 + $0x170] sm:$0xff]
        %v2335 = vld [vmem:[%s659 + $0x178] sm:$0xff]
        %v2336 = vld [vmem:[%s659 + $0x180] sm:$0xff]
        %v2337 = vld [vmem:[%s659 + $0x188] sm:$0xff]
        %v2338 = vld [vmem:[%s659 + $0x190] sm:$0xff]
        %v2339 = vld [vmem:[%s659 + $0x198] sm:$0xff]
        %v2340 = vld [vmem:[%s659 + $0x1a0] sm:$0xff]
        %v2341 = vld [vmem:[%s659 + $0x1a8] sm:$0xff]
        %v2342 = vld [vmem:[%s659 + $0x1b0] sm:$0xff]
        %v2343 = vld [vmem:[%s659 + $0x1b8] sm:$0xff]
        %v2344 = vld [vmem:[%s659 + $0x1c0] sm:$0xff]
        %v2345 = vld [vmem:[%s659 + $0x1c8] sm:$0xff]
        %v2346 = vld [vmem:[%s659 + $0x1d0] sm:$0xff]
        %v2347 = vld [vmem:[%s659 + $0x1d8] sm:$0xff]
        %v2348 = vld [vmem:[%s659 + $0x1e0] sm:$0xff]
        %v2349 = vld [vmem:[%s659 + $0x1e8] sm:$0xff]
        %v2350 = vld [vmem:[%s659 + $0x1f0] sm:$0xff]
        %v2351 = vld [vmem:[%s659 + $0x1f8] sm:$0xff]
        %v2352 = vld [vmem:[%s659 + $0x200] sm:$0xff]
        %v2353 = vld [vmem:[%s659 + $0x208] sm:$0xff]
        %v2354 = vld [vmem:[%s659 + $0x210] sm:$0xff]
        %v2355 = vld [vmem:[%s659 + $0x218] sm:$0xff]
        %v2356 = vld [vmem:[%s659 + $0x220] sm:$0xff]
        %v2357 = vld [vmem:[%s659 + $0x228] sm:$0xff]
        %v2358 = vld [vmem:[%s659 + $0x230] sm:$0xff]
        %v2359 = vld [vmem:[%s659 + $0x238] sm:$0xff]
        %v2360 = vld [vmem:[%s659 + $0x240] sm:$0xff]
        %v2361 = vld [vmem:[%s659 + $0x248] sm:$0xff]
        %v2362 = vld [vmem:[%s659 + $0x250] sm:$0xff]
        %v2363 = vld [vmem:[%s659 + $0x258] sm:$0xff]
        %v2364 = vld [vmem:[%s659 + $0x260] sm:$0xff]
        %v2365 = vld [vmem:[%s659 + $0x268] sm:$0xff]
        %v2366 = vld [vmem:[%s659 + $0x270] sm:$0xff]
        %v2367 = vld [vmem:[%s659 + $0x278] sm:$0xff]
        %v2368 = vld [vmem:[%s659 + $0x280] sm:$0xff]
        %v2369 = vld [vmem:[%s659 + $0x288] sm:$0xff]
        %v2370 = vld [vmem:[%s659 + $0x290] sm:$0xff]
        %v2371 = vld [vmem:[%s659 + $0x298] sm:$0xff]
        %v2372 = vld [vmem:[%s659 + $0x2a0] sm:$0xff]
        %v2373 = vld [vmem:[%s659 + $0x2a8] sm:$0xff]
        %v2374 = vld [vmem:[%s659 + $0x2b0] sm:$0xff]
        %v2375 = vld [vmem:[%s659 + $0x2b8] sm:$0xff]
        %v2376 = vld [vmem:[%s659 + $0x2c0] sm:$0xff]
        %v2377 = vld [vmem:[%s659 + $0x2c8] sm:$0xff]
        %v2378 = vld [vmem:[%s659 + $0x2d0] sm:$0xff]
        %v2379 = vld [vmem:[%s659 + $0x2d8] sm:$0xff]
        %v2380 = vld [vmem:[%s659 + $0x2e0] sm:$0xff]
        %v2381 = vld [vmem:[%s659 + $0x2e8] sm:$0xff]
        %v2382 = vld [vmem:[%s659 + $0x2f0] sm:$0xff]
        %v2383 = vld [vmem:[%s659 + $0x2f8] sm:$0xff]
        %v2384 = vld [vmem:[%s659 + $0x300] sm:$0xff]
        %v2385 = vld [vmem:[%s659 + $0x308] sm:$0xff]
        %v2386 = vld [vmem:[%s659 + $0x310] sm:$0xff]
        %v2387 = vld [vmem:[%s659 + $0x318] sm:$0xff]
        %v2388 = vld [vmem:[%s659 + $0x320] sm:$0xff]
        %v2389 = vld [vmem:[%s659 + $0x328] sm:$0xff]
        %v2390 = vld [vmem:[%s659 + $0x330] sm:$0xff]
        %v2391 = vld [vmem:[%s659 + $0x338] sm:$0xff]
        %v2392 = vld [vmem:[%s659 + $0x340] sm:$0xff]
        %v2393 = vld [vmem:[%s659 + $0x348] sm:$0xff]
        %v2394 = vld [vmem:[%s659 + $0x350] sm:$0xff]
        %v2395 = vld [vmem:[%s659 + $0x358] sm:$0xff]
        %v2396 = vld [vmem:[%s659 + $0x360] sm:$0xff]
        %v2397 = vld [vmem:[%s659 + $0x368] sm:$0xff]
        %v2398 = vld [vmem:[%s659 + $0x370] sm:$0xff]
        %v2399 = vld [vmem:[%s659 + $0x378] sm:$0xff]
        %v2400 = vld [vmem:[%s659 + $0x380] sm:$0xff]
        %v2401 = vld [vmem:[%s659 + $0x388] sm:$0xff]
        %v2402 = vld [vmem:[%s659 + $0x390] sm:$0xff]
        %v2403 = vld [vmem:[%s659 + $0x398] sm:$0xff]
        %v2404 = vld [vmem:[%s659 + $0x3a0] sm:$0xff]
        %v2405 = vld [vmem:[%s659 + $0x3a8] sm:$0xff]
        %v2406 = vld [vmem:[%s659 + $0x3b0] sm:$0xff]
        %v2407 = vld [vmem:[%s659 + $0x3b8] sm:$0xff]
        %v2408 = vld [vmem:[%s659 + $0x3c0] sm:$0xff]
        %v2409 = vld [vmem:[%s659 + $0x3c8] sm:$0xff]
        %v2410 = vld [vmem:[%s659 + $0x3d0] sm:$0xff]
        %v2411 = vld [vmem:[%s659 + $0x3d8] sm:$0xff]
        %v2412 = vld [vmem:[%s659 + $0x3e0] sm:$0xff]
        %v2413 = vld [vmem:[%s659 + $0x3e8] sm:$0xff]
        %v2414 = vld [vmem:[%s659 + $0x3f0] sm:$0xff]
        %v2415 = vld [vmem:[%s659 + $0x3f8] sm:$0xff]
        %v2416 = vld [vmem:[%s659 + $0x400] sm:$0xff]
        %v2417 = vld [vmem:[%s659 + $0x408] sm:$0xff]
        %v2418 = vld [vmem:[%s659 + $0x410] sm:$0xff]
        %v2419 = vld [vmem:[%s659 + $0x418] sm:$0xff]
        %v2420 = vld [vmem:[%s659 + $0x420] sm:$0xff]
        %v2421 = vld [vmem:[%s659 + $0x428] sm:$0xff]
        %v2422 = vld [vmem:[%s659 + $0x430] sm:$0xff]
        %v2423 = vld [vmem:[%s659 + $0x438] sm:$0xff]
        %v2424 = vld [vmem:[%s659 + $0x440] sm:$0xff]
        %v2425 = vld [vmem:[%s659 + $0x448] sm:$0xff]
        %v2426 = vld [vmem:[%s659 + $0x450] sm:$0xff]
        %v2427 = vld [vmem:[%s659 + $0x458] sm:$0xff]
        %v2428 = vld [vmem:[%s659 + $0x460] sm:$0xff]
        %v2429 = vld [vmem:[%s659 + $0x468] sm:$0xff]
        %v2430 = vld [vmem:[%s659 + $0x470] sm:$0xff]
        %v2431 = vld [vmem:[%s659 + $0x478] sm:$0xff]
        %v2432 = vld [vmem:[%s659 + $0x480] sm:$0xff]
        %v2433 = vld [vmem:[%s659 + $0x488] sm:$0xff]
        %v2434 = vld [vmem:[%s659 + $0x490] sm:$0xff]
        %v2435 = vld [vmem:[%s659 + $0x498] sm:$0xff]
        %v2436 = vld [vmem:[%s659 + $0x4a0] sm:$0xff]
        %v2437 = vld [vmem:[%s659 + $0x4a8] sm:$0xff]
        %v2438 = vld [vmem:[%s659 + $0x4b0] sm:$0xff]
        %v2439 = vld [vmem:[%s659 + $0x4b8] sm:$0xff]
        %v2440 = vld [vmem:[%s659 + $0x4c0] sm:$0xff]
        %v2441 = vld [vmem:[%s659 + $0x4c8] sm:$0xff]
        %v2442 = vld [vmem:[%s659 + $0x4d0] sm:$0xff]
        %v2443 = vld [vmem:[%s659 + $0x4d8] sm:$0xff]
        %v2444 = vld [vmem:[%s659 + $0x4e0] sm:$0xff]
        %v2445 = vld [vmem:[%s659 + $0x4e8] sm:$0xff]
        %v2446 = vld [vmem:[%s659 + $0x4f0] sm:$0xff]
        %v2447 = vld [vmem:[%s659 + $0x4f8] sm:$0xff]
        %v2448 = vld [vmem:[%s659 + $0x500] sm:$0xff]
        %v2449 = vld [vmem:[%s659 + $0x508] sm:$0xff]
        %v2450 = vld [vmem:[%s659 + $0x510] sm:$0xff]
        %v2451 = vld [vmem:[%s659 + $0x518] sm:$0xff]
        %v2452 = vld [vmem:[%s659 + $0x520] sm:$0xff]
        %v2453 = vld [vmem:[%s659 + $0x528] sm:$0xff]
        %v2454 = vld [vmem:[%s659 + $0x530] sm:$0xff]
        %v2455 = vld [vmem:[%s659 + $0x538] sm:$0xff]
        %v2456 = vld [vmem:[%s659 + $0x540] sm:$0xff]
        %v2457 = vld [vmem:[%s659 + $0x548] sm:$0xff]
        %v2458 = vld [vmem:[%s659 + $0x550] sm:$0xff]
        %v2459 = vld [vmem:[%s659 + $0x558] sm:$0xff]
        %v2460 = vld [vmem:[%s659 + $0x560] sm:$0xff]
        %v2461 = vld [vmem:[%s659 + $0x568] sm:$0xff]
        %v2462 = vld [vmem:[%s659 + $0x570] sm:$0xff]
        %v2463 = vld [vmem:[%s659 + $0x578] sm:$0xff]
        %v2464 = vld [vmem:[%s659 + $0x580] sm:$0xff]
        %v2465 = vld [vmem:[%s659 + $0x588] sm:$0xff]
        %v2466 = vld [vmem:[%s659 + $0x590] sm:$0xff]
        %v2467 = vld [vmem:[%s659 + $0x598] sm:$0xff]
        %v2468 = vld [vmem:[%s659 + $0x5a0] sm:$0xff]
        %v2469 = vld [vmem:[%s659 + $0x5a8] sm:$0xff]
        %v2470 = vld [vmem:[%s659 + $0x5b0] sm:$0xff]
        %v2471 = vld [vmem:[%s659 + $0x5b8] sm:$0xff]
        %v2472 = vld [vmem:[%s659 + $0x5c0] sm:$0xff]
        %v2473 = vld [vmem:[%s659 + $0x5c8] sm:$0xff]
        %v2474 = vld [vmem:[%s659 + $0x5d0] sm:$0xff]
        %v2475 = vld [vmem:[%s659 + $0x5d8] sm:$0xff]
        %v2476 = vld [vmem:[%s659 + $0x5e0] sm:$0xff]
        %v2477 = vld [vmem:[%s659 + $0x5e8] sm:$0xff]
        %v2478 = vld [vmem:[%s659 + $0x5f0] sm:$0xff]
        %v2479 = vld [vmem:[%s659 + $0x5f8] sm:$0xff]
        %v2480 = vld [vmem:[%s659 + $0x600] sm:$0xff]
        %v2481 = vld [vmem:[%s659 + $0x608] sm:$0xff]
        %v2482 = vld [vmem:[%s659 + $0x610] sm:$0xff]
        %v2483 = vld [vmem:[%s659 + $0x618] sm:$0xff]
        %v2484 = vld [vmem:[%s659 + $0x620] sm:$0xff]
        %v2485 = vld [vmem:[%s659 + $0x628] sm:$0xff]
        %v2486 = vld [vmem:[%s659 + $0x630] sm:$0xff]
        %v2487 = vld [vmem:[%s659 + $0x638] sm:$0xff]
        %v2488 = vld [vmem:[%s659 + $0x640] sm:$0xff]
        %v2489 = vld [vmem:[%s659 + $0x648] sm:$0xff]
        %v2490 = vld [vmem:[%s659 + $0x650] sm:$0xff]
        %v2491 = vld [vmem:[%s659 + $0x658] sm:$0xff]
        %v2492 = vld [vmem:[%s659 + $0x660] sm:$0xff]
        %v2493 = vld [vmem:[%s659 + $0x668] sm:$0xff]
        %v2494 = vld [vmem:[%s659 + $0x670] sm:$0xff]
        %v2495 = vld [vmem:[%s659 + $0x678] sm:$0xff]
        %v2496 = vld [vmem:[%s659 + $0x680] sm:$0xff]
        %v2497 = vld [vmem:[%s659 + $0x688] sm:$0xff]
        %v2498 = vld [vmem:[%s659 + $0x690] sm:$0xff]
        %v2499 = vld [vmem:[%s659 + $0x698] sm:$0xff]
        %v2500 = vld [vmem:[%s659 + $0x6a0] sm:$0xff]
        %v2501 = vld [vmem:[%s659 + $0x6a8] sm:$0xff]
        %v2502 = vld [vmem:[%s659 + $0x6b0] sm:$0xff]
        %v2503 = vld [vmem:[%s659 + $0x6b8] sm:$0xff]
        %v2504 = vld [vmem:[%s659 + $0x6c0] sm:$0xff]
        %v2505 = vld [vmem:[%s659 + $0x6c8] sm:$0xff]
        %v2506 = vld [vmem:[%s659 + $0x6d0] sm:$0xff]
        %v2507 = vld [vmem:[%s659 + $0x6d8] sm:$0xff]
        %v2508 = vld [vmem:[%s659 + $0x6e0] sm:$0xff]
        %v2509 = vld [vmem:[%s659 + $0x6e8] sm:$0xff]
        %v2510 = vld [vmem:[%s659 + $0x6f0] sm:$0xff]
        %v2511 = vld [vmem:[%s659 + $0x6f8] sm:$0xff]
        %v2512 = vld [vmem:[%s659 + $0x700] sm:$0xff]
        %v2513 = vld [vmem:[%s659 + $0x708] sm:$0xff]
        %v2514 = vld [vmem:[%s659 + $0x710] sm:$0xff]
        %v2515 = vld [vmem:[%s659 + $0x718] sm:$0xff]
        %v2516 = vld [vmem:[%s659 + $0x720] sm:$0xff]
        %v2517 = vld [vmem:[%s659 + $0x728] sm:$0xff]
        %v2518 = vld [vmem:[%s659 + $0x730] sm:$0xff]
        %v2519 = vld [vmem:[%s659 + $0x738] sm:$0xff]
        %v2520 = vld [vmem:[%s659 + $0x740] sm:$0xff]
        %v2521 = vld [vmem:[%s659 + $0x748] sm:$0xff]
        %v2522 = vld [vmem:[%s659 + $0x750] sm:$0xff]
        %v2523 = vld [vmem:[%s659 + $0x758] sm:$0xff]
        %v2524 = vld [vmem:[%s659 + $0x760] sm:$0xff]
        %v2525 = vld [vmem:[%s659 + $0x768] sm:$0xff]
        %v2526 = vld [vmem:[%s659 + $0x770] sm:$0xff]
        %v2527 = vld [vmem:[%s659 + $0x778] sm:$0xff]
        %v2528 = vld [vmem:[%s659 + $0x780] sm:$0xff]
        %v2529 = vld [vmem:[%s659 + $0x788] sm:$0xff]
        %v2530 = vld [vmem:[%s659 + $0x790] sm:$0xff]
        %v2531 = vld [vmem:[%s659 + $0x798] sm:$0xff]
        %v2532 = vld [vmem:[%s659 + $0x7a0] sm:$0xff]
        %v2533 = vld [vmem:[%s659 + $0x7a8] sm:$0xff]
        %v2534 = vld [vmem:[%s659 + $0x7b0] sm:$0xff]
        %v2535 = vld [vmem:[%s659 + $0x7b8] sm:$0xff]
        %v2536 = vld [vmem:[%s659 + $0x7c0] sm:$0xff]
        %v2537 = vld [vmem:[%s659 + $0x7c8] sm:$0xff]
        %v2538 = vld [vmem:[%s659 + $0x7d0] sm:$0xff]
        %v2539 = vld [vmem:[%s659 + $0x7d8] sm:$0xff]
        %v2540 = vld [vmem:[%s659 + $0x7e0] sm:$0xff]
        %v2541 = vld [vmem:[%s659 + $0x7e8] sm:$0xff]
        %v2542 = vld [vmem:[%s659 + $0x7f0] sm:$0xff]
        %v2543 = vld [vmem:[%s659 + $0x7f8] sm:$0xff]
        %v2544 = vld [vmem:[%s662] sm:$0x1]
        %v2546 = vlaneseq
        %v2547 = vshrl.u32 %v2546, 7
        %v2548 = vsub.s32 0, %v2547
        %v2549 = vrot.slane %v2544, %v2548
        %2551 = vmatprep.subr.mxu0 0.0
        %2552 = vmatpush1.msra.mxu0 %v2288
        %2553 = vmatprep.subr.mxu0 0.0
        %2554 = vmatpush1.msra.mxu0 %v2289
        %2555 = vmatprep.subr.mxu0 0.0
        %2556 = vmatpush1.msra.mxu0 %v2290
        %2557 = vmatprep.subr.mxu0 0.0
        %2558 = vmatpush1.msra.mxu0 %v2291
        %2559 = vmatprep.subr.mxu0 0.0
        %2560 = vmatpush1.msra.mxu0 %v2292
        %2561 = vmatprep.subr.mxu0 0.0
        %2562 = vmatpush1.msra.mxu0 %v2293
        %2563 = vmatprep.subr.mxu0 0.0
        %2564 = vmatpush1.msra.mxu0 %v2294
        %2565 = vmatprep.subr.mxu0 0.0
        %2566 = vmatpush1.msra.mxu0 %v2295
        %2567 = vmatprep.subr.mxu0 0.0
        %2568 = vmatpush1.msra.mxu0 %v2296
        %2569 = vmatprep.subr.mxu0 0.0
        %2570 = vmatpush1.msra.mxu0 %v2297
        %2571 = vmatprep.subr.mxu0 0.0
        %2572 = vmatpush1.msra.mxu0 %v2298
        %2573 = vmatprep.subr.mxu0 0.0
        %2574 = vmatpush1.msra.mxu0 %v2299
        %2575 = vmatprep.subr.mxu0 0.0
        %2576 = vmatpush1.msra.mxu0 %v2300
        %2577 = vmatprep.subr.mxu0 0.0
        %2578 = vmatpush1.msra.mxu0 %v2301
        %2579 = vmatprep.subr.mxu0 0.0
        %2580 = vmatpush1.msra.mxu0 %v2302
        %2581 = vmatprep.subr.mxu0 0.0
        %2582 = vmatpush1.msra.mxu0 %v2303
        %2583 = vmatprep.subr.mxu0 0.0
        %2584 = vmatpush1.msra.mxu0 %v2304
        %2585 = vmatprep.subr.mxu0 0.0
        %2586 = vmatpush1.msra.mxu0 %v2305
        %2587 = vmatprep.subr.mxu0 0.0
        %2588 = vmatpush1.msra.mxu0 %v2306
        %2589 = vmatprep.subr.mxu0 0.0
        %2590 = vmatpush1.msra.mxu0 %v2307
        %2591 = vmatprep.subr.mxu0 0.0
        %2592 = vmatpush1.msra.mxu0 %v2308
        %2593 = vmatprep.subr.mxu0 0.0
        %2594 = vmatpush1.msra.mxu0 %v2309
        %2595 = vmatprep.subr.mxu0 0.0
        %2596 = vmatpush1.msra.mxu0 %v2310
        %2597 = vmatprep.subr.mxu0 0.0
        %2598 = vmatpush1.msra.mxu0 %v2311
        %2599 = vmatprep.subr.mxu0 0.0
        %2600 = vmatpush1.msra.mxu0 %v2312
        %2601 = vmatprep.subr.mxu0 0.0
        %2602 = vmatpush1.msra.mxu0 %v2313
        %2603 = vmatprep.subr.mxu0 0.0
        %2604 = vmatpush1.msra.mxu0 %v2314
        %2605 = vmatprep.subr.mxu0 0.0
        %2606 = vmatpush1.msra.mxu0 %v2315
        %2607 = vmatprep.subr.mxu0 0.0
        %2608 = vmatpush1.msra.mxu0 %v2316
        %2609 = vmatprep.subr.mxu0 0.0
        %2610 = vmatpush1.msra.mxu0 %v2317
        %2611 = vmatprep.subr.mxu0 0.0
        %2612 = vmatpush1.msra.mxu0 %v2318
        %2613 = vmatprep.subr.mxu0 0.0
        %2614 = vmatpush1.msra.mxu0 %v2319
        %2615 = vmatprep.mubr.f32.mxu0 %v2273
        %2616 = vmatmul.mubr.f32.gmra.mrb[0].mxu0 %v2272
        %v2617 = vpop.f32.mrb[0].mxu0
        %v2618 = vadd.f32 %v2549, %v2617
        %v2619 = vpop.f32.mrb[0].mxu0
        %2620 = vdwg.mxu0
        %2621 = vmatprep.subr.mxu0 0.0
        %2622 = vmatpush1.msra.mxu0 %v2320
        %2623 = vmatprep.subr.mxu0 0.0
        %2624 = vmatpush1.msra.mxu0 %v2321
        %2625 = vmatprep.subr.mxu0 0.0
        %2626 = vmatpush1.msra.mxu0 %v2322
        %2627 = vmatprep.subr.mxu0 0.0
        %2628 = vmatpush1.msra.mxu0 %v2323
        %2629 = vmatprep.subr.mxu0 0.0
        %2630 = vmatpush1.msra.mxu0 %v2324
        %2631 = vmatprep.subr.mxu0 0.0
        %2632 = vmatpush1.msra.mxu0 %v2325
        %2633 = vmatprep.subr.mxu0 0.0
        %2634 = vmatpush1.msra.mxu0 %v2326
        %2635 = vmatprep.subr.mxu0 0.0
        %2636 = vmatpush1.msra.mxu0 %v2327
        %2637 = vmatprep.subr.mxu0 0.0
        %2638 = vmatpush1.msra.mxu0 %v2328
        %2639 = vmatprep.subr.mxu0 0.0
        %2640 = vmatpush1.msra.mxu0 %v2329
        %2641 = vmatprep.subr.mxu0 0.0
        %2642 = vmatpush1.msra.mxu0 %v2330
        %2643 = vmatprep.subr.mxu0 0.0
        %2644 = vmatpush1.msra.mxu0 %v2331
        %2645 = vmatprep.subr.mxu0 0.0
        %2646 = vmatpush1.msra.mxu0 %v2332
        %2647 = vmatprep.subr.mxu0 0.0
        %2648 = vmatpush1.msra.mxu0 %v2333
        %2649 = vmatprep.subr.mxu0 0.0
        %2650 = vmatpush1.msra.mxu0 %v2334
        %2651 = vmatprep.subr.mxu0 0.0
        %2652 = vmatpush1.msra.mxu0 %v2335
        %2653 = vmatprep.subr.mxu0 0.0
        %2654 = vmatpush1.msra.mxu0 %v2336
        %2655 = vmatprep.subr.mxu0 0.0
        %2656 = vmatpush1.msra.mxu0 %v2337
        %2657 = vmatprep.subr.mxu0 0.0
        %2658 = vmatpush1.msra.mxu0 %v2338
        %2659 = vmatprep.subr.mxu0 0.0
        %2660 = vmatpush1.msra.mxu0 %v2339
        %2661 = vmatprep.subr.mxu0 0.0
        %2662 = vmatpush1.msra.mxu0 %v2340
        %2663 = vmatprep.subr.mxu0 0.0
        %2664 = vmatpush1.msra.mxu0 %v2341
        %2665 = vmatprep.subr.mxu0 0.0
        %2666 = vmatpush1.msra.mxu0 %v2342
        %2667 = vmatprep.subr.mxu0 0.0
        %2668 = vmatpush1.msra.mxu0 %v2343
        %2669 = vmatprep.subr.mxu0 0.0
        %2670 = vmatpush1.msra.mxu0 %v2344
        %2671 = vmatprep.subr.mxu0 0.0
        %2672 = vmatpush1.msra.mxu0 %v2345
        %2673 = vmatprep.subr.mxu0 0.0
        %2674 = vmatpush1.msra.mxu0 %v2346
        %2675 = vmatprep.subr.mxu0 0.0
        %2676 = vmatpush1.msra.mxu0 %v2347
        %2677 = vmatprep.subr.mxu0 0.0
        %2678 = vmatpush1.msra.mxu0 %v2348
        %2679 = vmatprep.subr.mxu0 0.0
        %2680 = vmatpush1.msra.mxu0 %v2349
        %2681 = vmatprep.subr.mxu0 0.0
        %2682 = vmatpush1.msra.mxu0 %v2350
        %2683 = vmatprep.subr.mxu0 0.0
        %2684 = vmatpush1.msra.mxu0 %v2351
        %2685 = vmatprep.mubr.f32.mxu0 %v2275
        %2686 = vmatmul.mubr.f32.gmra.mrb[0].mxu0 %v2274
        %v2687 = vpop.f32.mrb[0].mxu0
        %v2688 = vadd.f32 %v2618, %v2687
        %v2689 = vpop.f32.mrb[0].mxu0
        %2690 = vdwg.mxu0
        %2691 = vmatprep.subr.mxu0 0.0
        %2692 = vmatpush1.msra.mxu0 %v2352
        %2693 = vmatprep.subr.mxu0 0.0
        %2694 = vmatpush1.msra.mxu0 %v2353
        %2695 = vmatprep.subr.mxu0 0.0
        %2696 = vmatpush1.msra.mxu0 %v2354
        %2697 = vmatprep.subr.mxu0 0.0
        %2698 = vmatpush1.msra.mxu0 %v2355
        %2699 = vmatprep.subr.mxu0 0.0
        %2700 = vmatpush1.msra.mxu0 %v2356
        %2701 = vmatprep.subr.mxu0 0.0
        %2702 = vmatpush1.msra.mxu0 %v2357
        %2703 = vmatprep.subr.mxu0 0.0
        %2704 = vmatpush1.msra.mxu0 %v2358
        %2705 = vmatprep.subr.mxu0 0.0
        %2706 = vmatpush1.msra.mxu0 %v2359
        %2707 = vmatprep.subr.mxu0 0.0
        %2708 = vmatpush1.msra.mxu0 %v2360
        %2709 = vmatprep.subr.mxu0 0.0
        %2710 = vmatpush1.msra.mxu0 %v2361
        %2711 = vmatprep.subr.mxu0 0.0
        %2712 = vmatpush1.msra.mxu0 %v2362
        %2713 = vmatprep.subr.mxu0 0.0
        %2714 = vmatpush1.msra.mxu0 %v2363
        %2715 = vmatprep.subr.mxu0 0.0
        %2716 = vmatpush1.msra.mxu0 %v2364
        %2717 = vmatprep.subr.mxu0 0.0
        %2718 = vmatpush1.msra.mxu0 %v2365
        %2719 = vmatprep.subr.mxu0 0.0
        %2720 = vmatpush1.msra.mxu0 %v2366
        %2721 = vmatprep.subr.mxu0 0.0
        %2722 = vmatpush1.msra.mxu0 %v2367
        %2723 = vmatprep.subr.mxu0 0.0
        %2724 = vmatpush1.msra.mxu0 %v2368
        %2725 = vmatprep.subr.mxu0 0.0
        %2726 = vmatpush1.msra.mxu0 %v2369
        %2727 = vmatprep.subr.mxu0 0.0
        %2728 = vmatpush1.msra.mxu0 %v2370
        %2729 = vmatprep.subr.mxu0 0.0
        %2730 = vmatpush1.msra.mxu0 %v2371
        %2731 = vmatprep.subr.mxu0 0.0
        %2732 = vmatpush1.msra.mxu0 %v2372
        %2733 = vmatprep.subr.mxu0 0.0
        %2734 = vmatpush1.msra.mxu0 %v2373
        %2735 = vmatprep.subr.mxu0 0.0
        %2736 = vmatpush1.msra.mxu0 %v2374
        %2737 = vmatprep.subr.mxu0 0.0
        %2738 = vmatpush1.msra.mxu0 %v2375
        %2739 = vmatprep.subr.mxu0 0.0
        %2740 = vmatpush1.msra.mxu0 %v2376
        %2741 = vmatprep.subr.mxu0 0.0
        %2742 = vmatpush1.msra.mxu0 %v2377
        %2743 = vmatprep.subr.mxu0 0.0
        %2744 = vmatpush1.msra.mxu0 %v2378
        %2745 = vmatprep.subr.mxu0 0.0
        %2746 = vmatpush1.msra.mxu0 %v2379
        %2747 = vmatprep.subr.mxu0 0.0
        %2748 = vmatpush1.msra.mxu0 %v2380
        %2749 = vmatprep.subr.mxu0 0.0
        %2750 = vmatpush1.msra.mxu0 %v2381
        %2751 = vmatprep.subr.mxu0 0.0
        %2752 = vmatpush1.msra.mxu0 %v2382
        %2753 = vmatprep.subr.mxu0 0.0
        %2754 = vmatpush1.msra.mxu0 %v2383
        %2755 = vmatprep.mubr.f32.mxu0 %v2277
        %2756 = vmatmul.mubr.f32.gmra.mrb[0].mxu0 %v2276
        %v2757 = vpop.f32.mrb[0].mxu0
        %v2758 = vadd.f32 %v2688, %v2757
        %v2759 = vpop.f32.mrb[0].mxu0
        %2760 = vdwg.mxu0
        %2761 = vmatprep.subr.mxu0 0.0
        %2762 = vmatpush1.msra.mxu0 %v2384
        %2763 = vmatprep.subr.mxu0 0.0
        %2764 = vmatpush1.msra.mxu0 %v2385
        %2765 = vmatprep.subr.mxu0 0.0
        %2766 = vmatpush1.msra.mxu0 %v2386
        %2767 = vmatprep.subr.mxu0 0.0
        %2768 = vmatpush1.msra.mxu0 %v2387
        %2769 = vmatprep.subr.mxu0 0.0
        %2770 = vmatpush1.msra.mxu0 %v2388
        %2771 = vmatprep.subr.mxu0 0.0
        %2772 = vmatpush1.msra.mxu0 %v2389
        %2773 = vmatprep.subr.mxu0 0.0
        %2774 = vmatpush1.msra.mxu0 %v2390
        %2775 = vmatprep.subr.mxu0 0.0
        %2776 = vmatpush1.msra.mxu0 %v2391
        %2777 = vmatprep.subr.mxu0 0.0
        %2778 = vmatpush1.msra.mxu0 %v2392
        %2779 = vmatprep.subr.mxu0 0.0
        %2780 = vmatpush1.msra.mxu0 %v2393
        %2781 = vmatprep.subr.mxu0 0.0
        %2782 = vmatpush1.msra.mxu0 %v2394
        %2783 = vmatprep.subr.mxu0 0.0
        %2784 = vmatpush1.msra.mxu0 %v2395
        %2785 = vmatprep.subr.mxu0 0.0
        %2786 = vmatpush1.msra.mxu0 %v2396
        %2787 = vmatprep.subr.mxu0 0.0
        %2788 = vmatpush1.msra.mxu0 %v2397
        %2789 = vmatprep.subr.mxu0 0.0
        %2790 = vmatpush1.msra.mxu0 %v2398
        %2791 = vmatprep.subr.mxu0 0.0
        %2792 = vmatpush1.msra.mxu0 %v2399
        %2793 = vmatprep.subr.mxu0 0.0
        %2794 = vmatpush1.msra.mxu0 %v2400
        %2795 = vmatprep.subr.mxu0 0.0
        %2796 = vmatpush1.msra.mxu0 %v2401
        %2797 = vmatprep.subr.mxu0 0.0
        %2798 = vmatpush1.msra.mxu0 %v2402
        %2799 = vmatprep.subr.mxu0 0.0
        %2800 = vmatpush1.msra.mxu0 %v2403
        %2801 = vmatprep.subr.mxu0 0.0
        %2802 = vmatpush1.msra.mxu0 %v2404
        %2803 = vmatprep.subr.mxu0 0.0
        %2804 = vmatpush1.msra.mxu0 %v2405
        %2805 = vmatprep.subr.mxu0 0.0
        %2806 = vmatpush1.msra.mxu0 %v2406
        %2807 = vmatprep.subr.mxu0 0.0
        %2808 = vmatpush1.msra.mxu0 %v2407
        %2809 = vmatprep.subr.mxu0 0.0
        %2810 = vmatpush1.msra.mxu0 %v2408
        %2811 = vmatprep.subr.mxu0 0.0
        %2812 = vmatpush1.msra.mxu0 %v2409
        %2813 = vmatprep.subr.mxu0 0.0
        %2814 = vmatpush1.msra.mxu0 %v2410
        %2815 = vmatprep.subr.mxu0 0.0
        %2816 = vmatpush1.msra.mxu0 %v2411
        %2817 = vmatprep.subr.mxu0 0.0
        %2818 = vmatpush1.msra.mxu0 %v2412
        %2819 = vmatprep.subr.mxu0 0.0
        %2820 = vmatpush1.msra.mxu0 %v2413
        %2821 = vmatprep.subr.mxu0 0.0
        %2822 = vmatpush1.msra.mxu0 %v2414
        %2823 = vmatprep.subr.mxu0 0.0
        %2824 = vmatpush1.msra.mxu0 %v2415
        %2825 = vmatprep.mubr.f32.mxu0 %v2279
        %2826 = vmatmul.mubr.f32.gmra.mrb[0].mxu0 %v2278
        %v2827 = vpop.f32.mrb[0].mxu0
        %v2828 = vadd.f32 %v2758, %v2827
        %v2829 = vpop.f32.mrb[0].mxu0
        %2830 = vdwg.mxu0
        %2831 = vmatprep.subr.mxu0 0.0
        %2832 = vmatpush1.msra.mxu0 %v2416
        %2833 = vmatprep.subr.mxu0 0.0
        %2834 = vmatpush1.msra.mxu0 %v2417
        %2835 = vmatprep.subr.mxu0 0.0
        %2836 = vmatpush1.msra.mxu0 %v2418
        %2837 = vmatprep.subr.mxu0 0.0
        %2838 = vmatpush1.msra.mxu0 %v2419
        %2839 = vmatprep.subr.mxu0 0.0
        %2840 = vmatpush1.msra.mxu0 %v2420
        %2841 = vmatprep.subr.mxu0 0.0
        %2842 = vmatpush1.msra.mxu0 %v2421
        %2843 = vmatprep.subr.mxu0 0.0
        %2844 = vmatpush1.msra.mxu0 %v2422
        %2845 = vmatprep.subr.mxu0 0.0
        %2846 = vmatpush1.msra.mxu0 %v2423
        %2847 = vmatprep.subr.mxu0 0.0
        %2848 = vmatpush1.msra.mxu0 %v2424
        %2849 = vmatprep.subr.mxu0 0.0
        %2850 = vmatpush1.msra.mxu0 %v2425
        %2851 = vmatprep.subr.mxu0 0.0
        %2852 = vmatpush1.msra.mxu0 %v2426
        %2853 = vmatprep.subr.mxu0 0.0
        %2854 = vmatpush1.msra.mxu0 %v2427
        %2855 = vmatprep.subr.mxu0 0.0
        %2856 = vmatpush1.msra.mxu0 %v2428
        %2857 = vmatprep.subr.mxu0 0.0
        %2858 = vmatpush1.msra.mxu0 %v2429
        %2859 = vmatprep.subr.mxu0 0.0
        %2860 = vmatpush1.msra.mxu0 %v2430
        %2861 = vmatprep.subr.mxu0 0.0
        %2862 = vmatpush1.msra.mxu0 %v2431
        %2863 = vmatprep.subr.mxu0 0.0
        %2864 = vmatpush1.msra.mxu0 %v2432
        %2865 = vmatprep.subr.mxu0 0.0
        %2866 = vmatpush1.msra.mxu0 %v2433
        %2867 = vmatprep.subr.mxu0 0.0
        %2868 = vmatpush1.msra.mxu0 %v2434
        %2869 = vmatprep.subr.mxu0 0.0
        %2870 = vmatpush1.msra.mxu0 %v2435
        %2871 = vmatprep.subr.mxu0 0.0
        %2872 = vmatpush1.msra.mxu0 %v2436
        %2873 = vmatprep.subr.mxu0 0.0
        %2874 = vmatpush1.msra.mxu0 %v2437
        %2875 = vmatprep.subr.mxu0 0.0
        %2876 = vmatpush1.msra.mxu0 %v2438
        %2877 = vmatprep.subr.mxu0 0.0
        %2878 = vmatpush1.msra.mxu0 %v2439
        %2879 = vmatprep.subr.mxu0 0.0
        %2880 = vmatpush1.msra.mxu0 %v2440
        %2881 = vmatprep.subr.mxu0 0.0
        %2882 = vmatpush1.msra.mxu0 %v2441
        %2883 = vmatprep.subr.mxu0 0.0
        %2884 = vmatpush1.msra.mxu0 %v2442
        %2885 = vmatprep.subr.mxu0 0.0
        %2886 = vmatpush1.msra.mxu0 %v2443
        %2887 = vmatprep.subr.mxu0 0.0
        %2888 = vmatpush1.msra.mxu0 %v2444
        %2889 = vmatprep.subr.mxu0 0.0
        %2890 = vmatpush1.msra.mxu0 %v2445
        %2891 = vmatprep.subr.mxu0 0.0
        %2892 = vmatpush1.msra.mxu0 %v2446
        %2893 = vmatprep.subr.mxu0 0.0
        %2894 = vmatpush1.msra.mxu0 %v2447
        %2895 = vmatprep.mubr.f32.mxu0 %v2281
        %2896 = vmatmul.mubr.f32.gmra.mrb[0].mxu0 %v2280
        %v2897 = vpop.f32.mrb[0].mxu0
        %v2898 = vadd.f32 %v2828, %v2897
        %v2899 = vpop.f32.mrb[0].mxu0
        %2900 = vdwg.mxu0
        %2901 = vmatprep.subr.mxu0 0.0
        %2902 = vmatpush1.msra.mxu0 %v2448
        %2903 = vmatprep.subr.mxu0 0.0
        %2904 = vmatpush1.msra.mxu0 %v2449
        %2905 = vmatprep.subr.mxu0 0.0
        %2906 = vmatpush1.msra.mxu0 %v2450
        %2907 = vmatprep.subr.mxu0 0.0
        %2908 = vmatpush1.msra.mxu0 %v2451
        %2909 = vmatprep.subr.mxu0 0.0
        %2910 = vmatpush1.msra.mxu0 %v2452
        %2911 = vmatprep.subr.mxu0 0.0
        %2912 = vmatpush1.msra.mxu0 %v2453
        %2913 = vmatprep.subr.mxu0 0.0
        %2914 = vmatpush1.msra.mxu0 %v2454
        %2915 = vmatprep.subr.mxu0 0.0
        %2916 = vmatpush1.msra.mxu0 %v2455
        %2917 = vmatprep.subr.mxu0 0.0
        %2918 = vmatpush1.msra.mxu0 %v2456
        %2919 = vmatprep.subr.mxu0 0.0
        %2920 = vmatpush1.msra.mxu0 %v2457
        %2921 = vmatprep.subr.mxu0 0.0
        %2922 = vmatpush1.msra.mxu0 %v2458
        %2923 = vmatprep.subr.mxu0 0.0
        %2924 = vmatpush1.msra.mxu0 %v2459
        %2925 = vmatprep.subr.mxu0 0.0
        %2926 = vmatpush1.msra.mxu0 %v2460
        %2927 = vmatprep.subr.mxu0 0.0
        %2928 = vmatpush1.msra.mxu0 %v2461
        %2929 = vmatprep.subr.mxu0 0.0
        %2930 = vmatpush1.msra.mxu0 %v2462
        %2931 = vmatprep.subr.mxu0 0.0
        %2932 = vmatpush1.msra.mxu0 %v2463
        %2933 = vmatprep.subr.mxu0 0.0
        %2934 = vmatpush1.msra.mxu0 %v2464
        %2935 = vmatprep.subr.mxu0 0.0
        %2936 = vmatpush1.msra.mxu0 %v2465
        %2937 = vmatprep.subr.mxu0 0.0
        %2938 = vmatpush1.msra.mxu0 %v2466
        %2939 = vmatprep.subr.mxu0 0.0
        %2940 = vmatpush1.msra.mxu0 %v2467
        %2941 = vmatprep.subr.mxu0 0.0
        %2942 = vmatpush1.msra.mxu0 %v2468
        %2943 = vmatprep.subr.mxu0 0.0
        %2944 = vmatpush1.msra.mxu0 %v2469
        %2945 = vmatprep.subr.mxu0 0.0
        %2946 = vmatpush1.msra.mxu0 %v2470
        %2947 = vmatprep.subr.mxu0 0.0
        %2948 = vmatpush1.msra.mxu0 %v2471
        %2949 = vmatprep.subr.mxu0 0.0
        %2950 = vmatpush1.msra.mxu0 %v2472
        %2951 = vmatprep.subr.mxu0 0.0
        %2952 = vmatpush1.msra.mxu0 %v2473
        %2953 = vmatprep.subr.mxu0 0.0
        %2954 = vmatpush1.msra.mxu0 %v2474
        %2955 = vmatprep.subr.mxu0 0.0
        %2956 = vmatpush1.msra.mxu0 %v2475
        %2957 = vmatprep.subr.mxu0 0.0
        %2958 = vmatpush1.msra.mxu0 %v2476
        %2959 = vmatprep.subr.mxu0 0.0
        %2960 = vmatpush1.msra.mxu0 %v2477
        %2961 = vmatprep.subr.mxu0 0.0
        %2962 = vmatpush1.msra.mxu0 %v2478
        %2963 = vmatprep.subr.mxu0 0.0
        %2964 = vmatpush1.msra.mxu0 %v2479
        %2965 = vmatprep.mubr.f32.mxu0 %v2283
        %2966 = vmatmul.mubr.f32.gmra.mrb[0].mxu0 %v2282
        %v2967 = vpop.f32.mrb[0].mxu0
        %v2968 = vadd.f32 %v2898, %v2967
        %v2969 = vpop.f32.mrb[0].mxu0
        %2970 = vdwg.mxu0
        %2971 = vmatprep.subr.mxu0 0.0
        %2972 = vmatpush1.msra.mxu0 %v2480
        %2973 = vmatprep.subr.mxu0 0.0
        %2974 = vmatpush1.msra.mxu0 %v2481
        %2975 = vmatprep.subr.mxu0 0.0
        %2976 = vmatpush1.msra.mxu0 %v2482
        %2977 = vmatprep.subr.mxu0 0.0
        %2978 = vmatpush1.msra.mxu0 %v2483
        %2979 = vmatprep.subr.mxu0 0.0
        %2980 = vmatpush1.msra.mxu0 %v2484
        %2981 = vmatprep.subr.mxu0 0.0
        %2982 = vmatpush1.msra.mxu0 %v2485
        %2983 = vmatprep.subr.mxu0 0.0
        %2984 = vmatpush1.msra.mxu0 %v2486
        %2985 = vmatprep.subr.mxu0 0.0
        %2986 = vmatpush1.msra.mxu0 %v2487
        %2987 = vmatprep.subr.mxu0 0.0
        %2988 = vmatpush1.msra.mxu0 %v2488
        %2989 = vmatprep.subr.mxu0 0.0
        %2990 = vmatpush1.msra.mxu0 %v2489
        %2991 = vmatprep.subr.mxu0 0.0
        %2992 = vmatpush1.msra.mxu0 %v2490
        %2993 = vmatprep.subr.mxu0 0.0
        %2994 = vmatpush1.msra.mxu0 %v2491
        %2995 = vmatprep.subr.mxu0 0.0
        %2996 = vmatpush1.msra.mxu0 %v2492
        %2997 = vmatprep.subr.mxu0 0.0
        %2998 = vmatpush1.msra.mxu0 %v2493
        %2999 = vmatprep.subr.mxu0 0.0
        %3000 = vmatpush1.msra.mxu0 %v2494
        %3001 = vmatprep.subr.mxu0 0.0
        %3002 = vmatpush1.msra.mxu0 %v2495
        %3003 = vmatprep.subr.mxu0 0.0
        %3004 = vmatpush1.msra.mxu0 %v2496
        %3005 = vmatprep.subr.mxu0 0.0
        %3006 = vmatpush1.msra.mxu0 %v2497
        %3007 = vmatprep.subr.mxu0 0.0
        %3008 = vmatpush1.msra.mxu0 %v2498
        %3009 = vmatprep.subr.mxu0 0.0
        %3010 = vmatpush1.msra.mxu0 %v2499
        %3011 = vmatprep.subr.mxu0 0.0
        %3012 = vmatpush1.msra.mxu0 %v2500
        %3013 = vmatprep.subr.mxu0 0.0
        %3014 = vmatpush1.msra.mxu0 %v2501
        %3015 = vmatprep.subr.mxu0 0.0
        %3016 = vmatpush1.msra.mxu0 %v2502
        %3017 = vmatprep.subr.mxu0 0.0
        %3018 = vmatpush1.msra.mxu0 %v2503
        %3019 = vmatprep.subr.mxu0 0.0
        %3020 = vmatpush1.msra.mxu0 %v2504
        %3021 = vmatprep.subr.mxu0 0.0
        %3022 = vmatpush1.msra.mxu0 %v2505
        %3023 = vmatprep.subr.mxu0 0.0
        %3024 = vmatpush1.msra.mxu0 %v2506
        %3025 = vmatprep.subr.mxu0 0.0
        %3026 = vmatpush1.msra.mxu0 %v2507
        %3027 = vmatprep.subr.mxu0 0.0
        %3028 = vmatpush1.msra.mxu0 %v2508
        %3029 = vmatprep.subr.mxu0 0.0
        %3030 = vmatpush1.msra.mxu0 %v2509
        %3031 = vmatprep.subr.mxu0 0.0
        %3032 = vmatpush1.msra.mxu0 %v2510
        %3033 = vmatprep.subr.mxu0 0.0
        %3034 = vmatpush1.msra.mxu0 %v2511
        %3035 = vmatprep.mubr.f32.mxu0 %v2285
        %3036 = vmatmul.mubr.f32.gmra.mrb[0].mxu0 %v2284
        %v3037 = vpop.f32.mrb[0].mxu0
        %v3038 = vadd.f32 %v2968, %v3037
        %v3039 = vpop.f32.mrb[0].mxu0
        %3040 = vdwg.mxu0
        %3041 = vmatprep.subr.mxu0 0.0
        %3042 = vmatpush1.msra.mxu0 %v2512
        %3043 = vmatprep.subr.mxu0 0.0
        %3044 = vmatpush1.msra.mxu0 %v2513
        %3045 = vmatprep.subr.mxu0 0.0
        %3046 = vmatpush1.msra.mxu0 %v2514
        %3047 = vmatprep.subr.mxu0 0.0
        %3048 = vmatpush1.msra.mxu0 %v2515
        %3049 = vmatprep.subr.mxu0 0.0
        %3050 = vmatpush1.msra.mxu0 %v2516
        %3051 = vmatprep.subr.mxu0 0.0
        %3052 = vmatpush1.msra.mxu0 %v2517
        %3053 = vmatprep.subr.mxu0 0.0
        %3054 = vmatpush1.msra.mxu0 %v2518
        %3055 = vmatprep.subr.mxu0 0.0
        %3056 = vmatpush1.msra.mxu0 %v2519
        %3057 = vmatprep.subr.mxu0 0.0
        %3058 = vmatpush1.msra.mxu0 %v2520
        %3059 = vmatprep.subr.mxu0 0.0
        %3060 = vmatpush1.msra.mxu0 %v2521
        %3061 = vmatprep.subr.mxu0 0.0
        %3062 = vmatpush1.msra.mxu0 %v2522
        %3063 = vmatprep.subr.mxu0 0.0
        %3064 = vmatpush1.msra.mxu0 %v2523
        %3065 = vmatprep.subr.mxu0 0.0
        %3066 = vmatpush1.msra.mxu0 %v2524
        %3067 = vmatprep.subr.mxu0 0.0
        %3068 = vmatpush1.msra.mxu0 %v2525
        %3069 = vmatprep.subr.mxu0 0.0
        %3070 = vmatpush1.msra.mxu0 %v2526
        %3071 = vmatprep.subr.mxu0 0.0
        %3072 = vmatpush1.msra.mxu0 %v2527
        %3073 = vmatprep.subr.mxu0 0.0
        %3074 = vmatpush1.msra.mxu0 %v2528
        %3075 = vmatprep.subr.mxu0 0.0
        %3076 = vmatpush1.msra.mxu0 %v2529
        %3077 = vmatprep.subr.mxu0 0.0
        %3078 = vmatpush1.msra.mxu0 %v2530
        %3079 = vmatprep.subr.mxu0 0.0
        %3080 = vmatpush1.msra.mxu0 %v2531
        %3081 = vmatprep.subr.mxu0 0.0
        %3082 = vmatpush1.msra.mxu0 %v2532
        %3083 = vmatprep.subr.mxu0 0.0
        %3084 = vmatpush1.msra.mxu0 %v2533
        %3085 = vmatprep.subr.mxu0 0.0
        %3086 = vmatpush1.msra.mxu0 %v2534
        %3087 = vmatprep.subr.mxu0 0.0
        %3088 = vmatpush1.msra.mxu0 %v2535
        %3089 = vmatprep.subr.mxu0 0.0
        %3090 = vmatpush1.msra.mxu0 %v2536
        %3091 = vmatprep.subr.mxu0 0.0
        %3092 = vmatpush1.msra.mxu0 %v2537
        %3093 = vmatprep.subr.mxu0 0.0
        %3094 = vmatpush1.msra.mxu0 %v2538
        %3095 = vmatprep.subr.mxu0 0.0
        %3096 = vmatpush1.msra.mxu0 %v2539
        %3097 = vmatprep.subr.mxu0 0.0
        %3098 = vmatpush1.msra.mxu0 %v2540
        %3099 = vmatprep.subr.mxu0 0.0
        %3100 = vmatpush1.msra.mxu0 %v2541
        %3101 = vmatprep.subr.mxu0 0.0
        %3102 = vmatpush1.msra.mxu0 %v2542
        %3103 = vmatprep.subr.mxu0 0.0
        %3104 = vmatpush1.msra.mxu0 %v2543
        %3105 = vmatprep.mubr.f32.mxu0 %v2287
        %3106 = vmatmul.mubr.f32.gmra.mrb[0].mxu0 %v2286
        %v3107 = vpop.f32.mrb[0].mxu0
        %v3108 = vadd.f32 %v3038, %v3107
        %v3109 = vpop.f32.mrb[0].mxu0
        %3110 = vdwg.mxu0
        %v3111 = vadd.f32 %v1552, %v3108
        %v3112 = vld [vmem:[%s642] sm:$0x1]
        %v3113 = vld [vmem:[%s645] sm:$0x1]
        %v3114 = vsel %vm682, %v3111, 0.0
        %3115 = vadd.xlane.f32.xlu0 %v3114
        %v3116 = vpop.xlane.xlu0 %3115
        %v3117 = vmul.f32 %v3116, %v1528
        %v3118 = vsub.f32 %v3111, %v3117
        %v3119 = vmul.f32 %v3118, %v3118
        %v3120 = vsel %vm682, %v3119, 0.0
        %3121 = vadd.xlane.f32.xlu0 %v3120
        %v3122 = vpop.xlane.xlu0 %3121
        %v3123 = vmul.f32 %v3122, %v1528
        %v3124 = vadd.f32 %v3123, 1e-05
        %v3125 = vrsqrt.pop %v3124
        %v3126 = vmul.f32 %v3118, %v3125
        %v3128 = vlaneseq
        %v3129 = vshrl.u32 %v3128, 7
        %v3130 = vsub.s32 0, %v3129
        %v3131 = vrot.slane %v3112, %v3130
        %v3133 = vmul.f32 %v3126, %v3131
        %v3135 = vlaneseq
        %v3136 = vshrl.u32 %v3135, 7
        %v3137 = vsub.s32 0, %v3136
        %v3138 = vrot.slane %v3113, %v3137
        %v3140 = vadd.f32 %v3133, %v3138
        %3141 = vst.msk [vmem:[%s617] sm:$0xff] %vm682, %v3140
        %s3142 = sand.u32 %s388, 1
        %s3143 = scalar_lea.sflag [#allocation5], %s3142
        %s3144 = sand.u32 %s388, 1
        %s3145 = smul.addr %s3144, 8
        %s3146 = scalar_lea.vmem [#allocation6], %s3145
        // Predicated region
        $region81: #{tpu_custom_call.1} parent=71 // pred_check
          %p3147 = pneg %p398
        $region82: #{tpu_custom_call.1} parent=71 // pred_check_branch
          %3149 = sbr.rel (%p3147) target = $region84
        $region83: #{tpu_custom_call.1} parent=71 // pred_region
          %s3151 = ssub.s32 128, 128
          %3152 = vsyncadd %s3143, %s3151
          %s3153 = smul.addr %s34, 128
          %s3154 = scalar_lea.hbm %s13, %s3153
          %s3156 = sshll.u32 %s3146, 4
          %s3157 = int_to_ptr.vmem [resolvable:$true] %s3156
          %3159 = dma.vmem_to_hbm [thread:$0]  %s3157, 128, %s3154, %s3143
        $region84: #{tpu_custom_call.1} parent=71 // pred_fallthru
          _
      $region72: #{tpu_custom_call.1} parent=5 // pred_fallthru
        _
      %p3160 = scmp.le.s32.totalorder 2, %s25
      // Predicated region
      $region85: #{tpu_custom_call.1} parent=5 // pred_check
        %p3161 = pneg %p3160
      $region86: #{tpu_custom_call.1} parent=5 // pred_check_branch
        %3163 = sbr.rel (%p3161) target = $region88
      $region87: #{tpu_custom_call.1} parent=5 // pred_region
        %s3164 = ssub.s32 %s25, 2
        // Predicated region
        $region89: #{tpu_custom_call.1} parent=87 // pred_check
          %p3165 = pneg %p404
        $region90: #{tpu_custom_call.1} parent=87 // pred_check_branch
          %3167 = sbr.rel (%p3165) target = $region92
        $region91: #{tpu_custom_call.1} parent=87 // pred_region
          %s3168 = sand.u32 %s389, 1
          %s3169 = scalar_lea.sflag [#allocation5], %s3168
          %s3170 = sand.u32 %s389, 1
          %s3171 = smul.addr %s3170, 8
          %s3172 = scalar_lea.vmem [#allocation6], %s3171
          %3173 = dma.done %s3169, 128
        $region92: #{tpu_custom_call.1} parent=87 // pred_fallthru
          _
      $region88: #{tpu_custom_call.1} parent=5 // pred_fallthru
        _
    $region6: #{tpu_custom_call.1} parent=1 // loop_footer
      %s29 = sadd.s32 1, %s25
    $region7: #{tpu_custom_call.1} parent=1 // loop_footer_branch
      %24 = sbr.rel target = $region3
    $region8: #{tpu_custom_call.1} parent=1 // loop_exit
      _
    %3174 = vsyncpa [#allocation4], 1
    %s3175 = scalar_lea.sflag [#allocation4], 1
    %3176 = vsyncpa %s3175, 1
    %3177 = vsyncpa [#allocation5], 1
    %s3178 = scalar_lea.sflag [#allocation5], 1
    %3179 = vsyncpa %s3178, 1

</llo_original>
